<compile_context>
chip_gen: v7x
topology: tpu7x:2x2x1
jax: 0.10.0
libtpu: 0.0.40
codegen_flags: <defaults>
</compile_context>

<pallas_src>
import functools
import math

import jax
import jax.numpy as jnp
from jax.experimental import pallas as pl
from jax.experimental.pallas import tpu as pltpu  # noqa: F401  (TPU backend assumed)

D_MODEL = 32
N_HEADS = 4
HEAD_DIM = D_MODEL // N_HEADS
D_FF = 64
NUM_LAYERS = 2
EPS = 1e-5
SLAB_W = 64                              # lane width of both parameter slabs

# ---- weight-slab row layout (per layer, all rows SLAB_W lanes wide) ----
SA_WQ, SA_WK, SA_WV, SA_WO = 0, 1, 2, 3  # [32,32] blocks in lanes 0:32
CA_WQ, CA_WK, CA_WV, CA_WO = 4, 5, 6, 7
W_FFN1_OFF = 8 * D_MODEL                 # rows 256:288  ([32, 64], full width)
W_FFN2_OFF = 9 * D_MODEL                 # rows 288:352  ([64, 32] in lanes 0:32)
W_ROWS_PER_LAYER = 9 * D_MODEL + D_FF    # 352

# ---- vector-slab row layout (per layer) ----
SA_BQ, SA_BK, SA_BV, SA_BO = 0, 1, 2, 3
CA_BQ, CA_BK, CA_BV, CA_BO = 4, 5, 6, 7
FFN_B1, FFN_B2 = 8, 9
N1_G, N1_B, N2_G, N2_B, N3_G, N3_B = 10, 11, 12, 13, 14, 15
V_ROWS_PER_LAYER = 16
V_FIN_G = NUM_LAYERS * V_ROWS_PER_LAYER          # final-norm gamma row
V_FIN_B = V_FIN_G + 1                            # final-norm beta row
V_ROWS_TOTAL = ((V_FIN_B + 1 + 7) // 8) * 8      # pad rows to a multiple of 8


# ------------------------- fused decoder kernel -------------------------

def _decoder_kernel(tgt_ref, mem_ref, qp_ref, pp_ref, w_ref, v_ref, o_ref,
                    *, n_tgt, n_mem, batch):
    D, H, hd = D_MODEL, N_HEADS, HEAD_DIM
    scale = 1.0 / math.sqrt(hd)

    # ---- parameter-slab accessors (static slices only) ----
    def w_attn(l, i):                                   # [D, D]
        r = l * W_ROWS_PER_LAYER + i * D
        return w_ref[r:r + D, :][:, :D]

    def w_ffn1(l):                                      # [D, D_FF]
        r = l * W_ROWS_PER_LAYER + W_FFN1_OFF
        return w_ref[r:r + D, :]

    def w_ffn2(l):                                      # [D_FF, D]
        r = l * W_ROWS_PER_LAYER + W_FFN2_OFF
        return w_ref[r:r + D_FF, :][:, :D]

    def vrow(r, width=D):                               # [1, width]
        return v_ref[r:r + 1, :][:, :width]

    def brow(l, i, width=D):
        return vrow(l * V_ROWS_PER_LAYER + i, width)

    # ---- per-head lane masks over the embedding dim (2-D iota, no slicing) ----
    col = jax.lax.broadcasted_iota(jnp.int32, (1, D), 1)
    head_masks = [
        jnp.where((col >= h * hd) & (col < (h + 1) * hd), 1.0, 0.0
                  ).astype(jnp.float32)
        for h in range(H)
    ]

    # ---- additive batch masks: rows/cols are batch-interleaved (batch = idx % B) ----
    def batch_mask(rows, cols):
        ri = jax.lax.broadcasted_iota(jnp.int32, (rows, cols), 0)
        ci = jax.lax.broadcasted_iota(jnp.int32, (rows, cols), 1)
        return jnp.where((ri % batch) == (ci % batch), 0.0, -1e9
                         ).astype(jnp.float32)

    mask_self = batch_mask(H * n_tgt, n_tgt)
    mask_cross = batch_mask(H * n_tgt, n_mem)

    def layer_norm(x, g, b):
        mean = jnp.mean(x, axis=-1, keepdims=True)
        c = x - mean
        var = jnp.mean(c * c, axis=-1, keepdims=True)
        return c * jax.lax.rsqrt(var + EPS) * g + b

    def attention(q, k, v, amask):
        # q: [n_tgt, D]; k, v: [n_k, D]; amask: [H*n_tgt, n_k].
        qs = q * scale
        # One score matmul for all batches & heads: stack masked Q copies
        # along sublanes; zeros outside head-h lanes select head-h of K.
        q_stk = jnp.concatenate([qs * m for m in head_masks], axis=0)
        s = jax.lax.dot_general(q_stk, k, (((1,), (1,)), ((), ())),
                                preferred_element_type=jnp.float32)
        s = s + amask                                   # block off-batch keys
        s = s - jnp.max(s, axis=-1, keepdims=True)
        e = jnp.exp(s)
        p = e / jnp.sum(e, axis=-1, keepdims=True)      # exact divide
        o = jnp.dot(p, v, preferred_element_type=jnp.float32)   # [H*n_tgt, D]
        # Re-mask each head block to its lane range and sum (== concat heads).
        acc = o[0:n_tgt] * head_masks[0]
        for h in range(1, H):
            acc = acc + o[h * n_tgt:(h + 1) * n_tgt] * head_masks[h]
        return acc

    x = tgt_ref[...]             # [n_tgt, D], rows are (t*B + b)
    mem = mem_ref[...]           # [n_mem, D]
    qp = qp_ref[...]             # [n_tgt, D]
    mem_k = mem + pp_ref[...]    # memory + pos (cross-attention key input)

    # ---- hoisted cross-attention K/V projections (independent of x) ----
    cross_k, cross_v = [], []
    for l in range(NUM_LAYERS):
        cross_k.append(
            jnp.dot(mem_k, w_attn(l, CA_WK), preferred_element_type=jnp.float32)
            + brow(l, CA_BK))
        cross_v.append(
            jnp.dot(mem, w_attn(l, CA_WV), preferred_element_type=jnp.float32)
            + brow(l, CA_BV))

    for l in range(NUM_LAYERS):
        # ---- self-attention: q = k = x + query_pos, v = x ----
        qin = x + qp
        q = jnp.dot(qin, w_attn(l, SA_WQ), preferred_element_type=jnp.float32) + brow(l, SA_BQ)
        k = jnp.dot(qin, w_attn(l, SA_WK), preferred_element_type=jnp.float32) + brow(l, SA_BK)
        v = jnp.dot(x, w_attn(l, SA_WV), preferred_element_type=jnp.float32) + brow(l, SA_BV)
        a = attention(q, k, v, mask_self)
        a = jnp.dot(a, w_attn(l, SA_WO), preferred_element_type=jnp.float32) + brow(l, SA_BO)
        x = layer_norm(x + a, brow(l, N1_G), brow(l, N1_B))

        # ---- cross-attention: q = x + query_pos, k = memory + pos, v = memory ----
        qin = x + qp
        q = jnp.dot(qin, w_attn(l, CA_WQ), preferred_element_type=jnp.float32) + brow(l, CA_BQ)
        a = attention(q, cross_k[l], cross_v[l], mask_cross)
        a = jnp.dot(a, w_attn(l, CA_WO), preferred_element_type=jnp.float32) + brow(l, CA_BO)
        x = layer_norm(x + a, brow(l, N2_G), brow(l, N2_B))

        # ---- feed-forward: LN(x + W2 relu(W1 x + b1) + b2) ----
        hid = jnp.maximum(
            jnp.dot(x, w_ffn1(l), preferred_element_type=jnp.float32)
            + brow(l, FFN_B1, D_FF), 0.0)
        y = jnp.dot(hid, w_ffn2(l), preferred_element_type=jnp.float32) + brow(l, FFN_B2)
        x = layer_norm(x + y, brow(l, N3_G), brow(l, N3_B))

    # ---- final decoder LayerNorm (self.norm in the PyTorch module) ----
    x = layer_norm(x, vrow(V_FIN_G), vrow(V_FIN_B))
    o_ref[...] = x.astype(o_ref.dtype)


# ------------------------- wrapper (one pallas_call) -------------------------

@jax.jit
def transformer_decoder(tgt, memory, pos, query_pos, packed):
    # tgt / query_pos: [T, B, D]; memory / pos: [S, B, D]  (sequence-first API)
    T, B, D = tgt.shape
    S = memory.shape[0]
    n_tgt, n_mem = T * B, S * B

    kernel = functools.partial(_decoder_kernel, n_tgt=n_tgt, n_mem=n_mem, batch=B)
    out2d = pl.pallas_call(
        kernel,
        out_shape=jax.ShapeDtypeStruct((n_tgt, D), jnp.float32),
        # No grid: whole problem (<0.5 MB) lives in VMEM as single full-array
        # blocks (default BlockSpecs); a grid would only add per-step overhead.
    )(tgt.reshape(n_tgt, D), memory.reshape(n_mem, D),
      query_pos.reshape(n_tgt, D), pos.reshape(n_mem, D),
      packed["w"], packed["v"])

    # [T*B, D] -> [T, B, D] -> unsqueeze(0); row-major reshapes are free.
    return out2d.reshape(T, B, D)[None]


# ------------------------- parameter init / packing -------------------------

def init_params(key):
    """PyTorch-layout parameters (in_proj [3D, D], linear [out, in])."""
    def dense(k, dout, din):
        return jax.random.normal(k, (dout, din), jnp.float32) * 0.02

    def vec(k, n, scale=0.02):
        return jax.random.normal(k, (n,), jnp.float32) * scale

    def attn_params(k):
        k1, k2, k3, k4 = jax.random.split(k, 4)
        return {"in_proj_w": dense(k1, 3 * D_MODEL, D_MODEL),
                "in_proj_b": vec(k2, 3 * D_MODEL),
                "out_w": dense(k3, D_MODEL, D_MODEL),
                "out_b": vec(k4, D_MODEL)}

    layers = []
    for lk in jax.random.split(key, NUM_LAYERS):
        ks = jax.random.split(lk, 12)
        layers.append({
            "self_attn": attn_params(ks[0]),
            "cross_attn": attn_params(ks[1]),
            "lin1_w": dense(ks[2], D_FF, D_MODEL),
            "lin1_b": vec(ks[3], D_FF),
            "lin2_w": dense(ks[4], D_MODEL, D_FF),
            "lin2_b": vec(ks[5], D_MODEL),
            "norm1_g": 1.0 + vec(ks[6], D_MODEL, 0.05),
            "norm1_b": vec(ks[7], D_MODEL, 0.05),
            "norm2_g": 1.0 + vec(ks[8], D_MODEL, 0.05),
            "norm2_b": vec(ks[9], D_MODEL, 0.05),
            "norm3_g": 1.0 + vec(ks[10], D_MODEL, 0.05),
            "norm3_b": vec(ks[11], D_MODEL, 0.05),
        })
    kg, kb = jax.random.split(jax.random.fold_in(key, 7))
    return {"layers": layers,
            "norm_g": 1.0 + vec(kg, D_MODEL, 0.05),
            "norm_b": vec(kb, D_MODEL, 0.05)}


def pack_params(params):
    """One-time pack: pre-transpose weights and pack everything into 2 slabs."""
    D = D_MODEL

    def pad_w(a):                        # pad last dim to SLAB_W lanes
        return jnp.pad(a, ((0, 0), (0, SLAB_W - a.shape[-1])))

    def pad_v(a):                        # 1-D vector -> [1, SLAB_W]
        return jnp.pad(a, (0, SLAB_W - a.shape[0]))[None, :]

    w_rows, v_rows = [], []
    for p in params["layers"]:
        # weights: sa_wq..sa_wo, ca_wq..ca_wo, ffn_w1, ffn_w2 (all x @ W layout)
        for key in ("self_attn", "cross_attn"):
            w = p[key]["in_proj_w"]
            for blk in (w[:D].T, w[D:2 * D].T, w[2 * D:].T, p[key]["out_w"].T):
                w_rows.append(pad_w(blk))
        w_rows.append(pad_w(p["lin1_w"].T))
        w_rows.append(pad_w(p["lin2_w"].T))
        # vectors: biases / norm gammas & betas
        for key in ("self_attn", "cross_attn"):
            b = p[key]["in_proj_b"]
            for r in (b[:D], b[D:2 * D], b[2 * D:], p[key]["out_b"]):
                v_rows.append(pad_v(r))
        for r in (p["lin1_b"], p["lin2_b"],
                  p["norm1_g"], p["norm1_b"], p["norm2_g"], p["norm2_b"],
                  p["norm3_g"], p["norm3_b"]):
            v_rows.append(pad_v(r))

    v_rows.append(pad_v(params["norm_g"]))
    v_rows.append(pad_v(params["norm_b"]))
    v_rows.append(jnp.zeros((V_ROWS_TOTAL - V_FIN_B - 1, SLAB_W), jnp.float32))

    w_slab = jnp.concatenate(w_rows, axis=0)
    v_slab = jnp.concatenate(v_rows, axis=0)
    assert w_slab.shape == (NUM_LAYERS * W_ROWS_PER_LAYER, SLAB_W)
    assert v_slab.shape == (V_ROWS_TOTAL, SLAB_W)
    return {"w": w_slab, "v": v_slab}


# ------------------------- pure-JAX reference -------------------------

def reference_decoder(tgt, memory, pos, query_pos, params):
    """Mirrors nn.TransformerDecoder with DETR post-norm layers (eval mode)."""
    H, hd = N_HEADS, HEAD_DIM

    def mha(q_in, k_in, v_in, p):
        Lq, B, D = q_in.shape
        Lk = k_in.shape[0]
        w, b = p["in_proj_w"], p["in_proj_b"]
        q = q_in @ w[:D].T + b[:D]
        k = k_in @ w[D:2 * D].T + b[D:2 * D]
        v = v_in @ w[2 * D:].T + b[2 * D:]
        q = q.reshape(Lq, B * H, hd).transpose(1, 0, 2) / math.sqrt(hd)
        k = k.reshape(Lk, B * H, hd).transpose(1, 0, 2)
        v = v.reshape(Lk, B * H, hd).transpose(1, 0, 2)
        s = jnp.einsum("bqd,bkd->bqk", q, k)
        a = jax.nn.softmax(s, axis=-1)
        o = jnp.einsum("bqk,bkd->bqd", a, v)
        o = o.transpose(1, 0, 2).reshape(Lq, B, D)
        return o @ p["out_w"].T + p["out_b"]

    def ln(x, g, b):
        m = x.mean(-1, keepdims=True)
        v = ((x - m) ** 2).mean(-1, keepdims=True)
        return (x - m) / jnp.sqrt(v + EPS) * g + b

    x = tgt
    mem_k = memory + pos
    for p in params["layers"]:
        qk = x + query_pos
        x = ln(x + mha(qk, qk, x, p["self_attn"]), p["norm1_g"], p["norm1_b"])
        x = ln(x + mha(x + query_pos, mem_k, memory, p["cross_attn"]),
               p["norm2_g"], p["norm2_b"])
        h = jax.nn.relu(x @ p["lin1_w"].T + p["lin1_b"])
        x = ln(x + h @ p["lin2_w"].T + p["lin2_b"], p["norm3_g"], p["norm3_b"])
    x = ln(x, params["norm_g"], params["norm_b"])
    return x[None]


if __name__ == "__main__":
    key = jax.random.PRNGKey(0)
    kp, kt, km, kq, kpos = jax.random.split(key, 5)
    T, S, B = 8, 16, 2   # num queries, memory length, batch
    params = init_params(kp)
    packed = pack_params(params)
    tgt = jax.random.normal(kt, (T, B, D_MODEL), jnp.float32)
    memory = jax.random.normal(km, (S, B, D_MODEL), jnp.float32)
    query_pos = jax.random.normal(kq, (T, B, D_MODEL), jnp.float32)
    pos = jax.random.normal(kpos, (S, B, D_MODEL), jnp.float32)

    out = jax.block_until_ready(
        transformer_decoder(tgt, memory, pos, query_pos, packed))
    assert out.shape == (1, T, B, D_MODEL)
    assert bool(jnp.all(jnp.isfinite(out)))

    # Loose parity check vs. pure-JAX reference (both sides use default-precision
    # MXU matmuls; tolerance leaves large headroom over that rounding noise).
    ref = reference_decoder(tgt, memory, pos, query_pos, params)
    err = float(jnp.max(jnp.abs(out - ref)))
    assert err < 1e-1, f"kernel/reference mismatch: max abs err = {err}"
    print("KERNEL_OK")
</pallas_src>

<mosaic_0001>
module attributes {stable_mosaic.version = 11 : i64} {
  func.func @_decoder_kernel(%arg0: memref<16x32xf32, #tpu.memory_space<vmem>>, %arg1: memref<32x32xf32, #tpu.memory_space<vmem>>, %arg2: memref<16x32xf32, #tpu.memory_space<vmem>>, %arg3: memref<32x32xf32, #tpu.memory_space<vmem>>, %arg4: memref<704x64xf32, #tpu.memory_space<vmem>>, %arg5: memref<40x64xf32, #tpu.memory_space<vmem>>, %arg6: memref<16x32xf32, #tpu.memory_space<vmem>>) attributes {dimension_semantics = [], scalar_prefetch = 0 : i64, scratch_operands = 0 : i64, tpu.core_type = #tpu.core_type<tc>} {
    %0 = tpu.iota {dimensions = array<i32: 1>} : vector<1x32xi32>
    %c0_i32 = arith.constant 0 : i32
    %1 = vector.broadcast %c0_i32 : i32 to vector<1x32xi32>
    %2 = arith.cmpi sge, %0, %1 : vector<1x32xi32>
    %c8_i32 = arith.constant 8 : i32
    %3 = vector.broadcast %c8_i32 : i32 to vector<1x32xi32>
    %4 = arith.cmpi slt, %0, %3 : vector<1x32xi32>
    %5 = arith.andi %2, %4 : vector<1x32xi1>
    %cst = arith.constant 1.000000e+00 : f32
    %cst_0 = arith.constant 0.000000e+00 : f32
    %6 = vector.broadcast %cst : f32 to vector<1x32xf32>
    %7 = vector.broadcast %cst_0 : f32 to vector<1x32xf32>
    %8 = arith.select %5, %6, %7 : vector<1x32xi1>, vector<1x32xf32>
    %c8_i32_1 = arith.constant 8 : i32
    %9 = vector.broadcast %c8_i32_1 : i32 to vector<1x32xi32>
    %10 = arith.cmpi sge, %0, %9 : vector<1x32xi32>
    %c16_i32 = arith.constant 16 : i32
    %11 = vector.broadcast %c16_i32 : i32 to vector<1x32xi32>
    %12 = arith.cmpi slt, %0, %11 : vector<1x32xi32>
    %13 = arith.andi %10, %12 : vector<1x32xi1>
    %cst_2 = arith.constant 1.000000e+00 : f32
    %cst_3 = arith.constant 0.000000e+00 : f32
    %14 = vector.broadcast %cst_2 : f32 to vector<1x32xf32>
    %15 = vector.broadcast %cst_3 : f32 to vector<1x32xf32>
    %16 = arith.select %13, %14, %15 : vector<1x32xi1>, vector<1x32xf32>
    %c16_i32_4 = arith.constant 16 : i32
    %17 = vector.broadcast %c16_i32_4 : i32 to vector<1x32xi32>
    %18 = arith.cmpi sge, %0, %17 : vector<1x32xi32>
    %c24_i32 = arith.constant 24 : i32
    %19 = vector.broadcast %c24_i32 : i32 to vector<1x32xi32>
    %20 = arith.cmpi slt, %0, %19 : vector<1x32xi32>
    %21 = arith.andi %18, %20 : vector<1x32xi1>
    %cst_5 = arith.constant 1.000000e+00 : f32
    %cst_6 = arith.constant 0.000000e+00 : f32
    %22 = vector.broadcast %cst_5 : f32 to vector<1x32xf32>
    %23 = vector.broadcast %cst_6 : f32 to vector<1x32xf32>
    %24 = arith.select %21, %22, %23 : vector<1x32xi1>, vector<1x32xf32>
    %c24_i32_7 = arith.constant 24 : i32
    %25 = vector.broadcast %c24_i32_7 : i32 to vector<1x32xi32>
    %26 = arith.cmpi sge, %0, %25 : vector<1x32xi32>
    %c32_i32 = arith.constant 32 : i32
    %27 = vector.broadcast %c32_i32 : i32 to vector<1x32xi32>
    %28 = arith.cmpi slt, %0, %27 : vector<1x32xi32>
    %29 = arith.andi %26, %28 : vector<1x32xi1>
    %cst_8 = arith.constant 1.000000e+00 : f32
    %cst_9 = arith.constant 0.000000e+00 : f32
    %30 = vector.broadcast %cst_8 : f32 to vector<1x32xf32>
    %31 = vector.broadcast %cst_9 : f32 to vector<1x32xf32>
    %32 = arith.select %29, %30, %31 : vector<1x32xi1>, vector<1x32xf32>
    %33 = tpu.iota {dimensions = array<i32: 0>} : vector<64x16xi32>
    %34 = tpu.iota {dimensions = array<i32: 1>} : vector<64x16xi32>
    %c2_i32 = arith.constant 2 : i32
    %c0_i32_10 = arith.constant 0 : i32
    %35 = arith.cmpi eq, %c2_i32, %c0_i32_10 : i32
    %c1_i32 = arith.constant 1 : i32
    %36 = arith.select %35, %c1_i32, %c2_i32 : i32
    %37 = vector.broadcast %36 : i32 to vector<64x16xi32>
    %38 = arith.remsi %33, %37 : vector<64x16xi32>
    %c0_i32_11 = arith.constant 0 : i32
    %39 = vector.broadcast %c0_i32_11 : i32 to vector<64x16xi32>
    %40 = arith.cmpi ne, %38, %39 : vector<64x16xi32>
    %c0_i32_12 = arith.constant 0 : i32
    %41 = vector.broadcast %c0_i32_12 : i32 to vector<64x16xi32>
    %42 = arith.cmpi slt, %38, %41 : vector<64x16xi32>
    %c0_i32_13 = arith.constant 0 : i32
    %43 = arith.cmpi slt, %36, %c0_i32_13 : i32
    %44 = vector.broadcast %43 : i1 to vector<64x16xi1>
    %45 = vector.broadcast %44 : vector<64x16xi1> to vector<64x16xi1>
    %46 = arith.xori %42, %45 : vector<64x16xi1>
    %47 = arith.andi %46, %40 : vector<64x16xi1>
    %48 = vector.broadcast %36 : i32 to vector<64x16xi32>
    %49 = arith.addi %38, %48 : vector<64x16xi32>
    %50 = arith.select %47, %49, %38 : vector<64x16xi1>, vector<64x16xi32>
    %c2_i32_14 = arith.constant 2 : i32
    %c0_i32_15 = arith.constant 0 : i32
    %51 = arith.cmpi eq, %c2_i32_14, %c0_i32_15 : i32
    %c1_i32_16 = arith.constant 1 : i32
    %52 = arith.select %51, %c1_i32_16, %c2_i32_14 : i32
    %53 = vector.broadcast %52 : i32 to vector<64x16xi32>
    %54 = arith.remsi %34, %53 : vector<64x16xi32>
    %c0_i32_17 = arith.constant 0 : i32
    %55 = vector.broadcast %c0_i32_17 : i32 to vector<64x16xi32>
    %56 = arith.cmpi ne, %54, %55 : vector<64x16xi32>
    %c0_i32_18 = arith.constant 0 : i32
    %57 = vector.broadcast %c0_i32_18 : i32 to vector<64x16xi32>
    %58 = arith.cmpi slt, %54, %57 : vector<64x16xi32>
    %c0_i32_19 = arith.constant 0 : i32
    %59 = arith.cmpi slt, %52, %c0_i32_19 : i32
    %60 = vector.broadcast %59 : i1 to vector<64x16xi1>
    %61 = vector.broadcast %60 : vector<64x16xi1> to vector<64x16xi1>
    %62 = arith.xori %58, %61 : vector<64x16xi1>
    %63 = arith.andi %62, %56 : vector<64x16xi1>
    %64 = vector.broadcast %52 : i32 to vector<64x16xi32>
    %65 = arith.addi %54, %64 : vector<64x16xi32>
    %66 = arith.select %63, %65, %54 : vector<64x16xi1>, vector<64x16xi32>
    %67 = arith.cmpi eq, %50, %66 : vector<64x16xi32>
    %cst_20 = arith.constant 0.000000e+00 : f32
    %cst_21 = arith.constant -1.000000e+09 : f32
    %68 = vector.broadcast %cst_20 : f32 to vector<64x16xf32>
    %69 = vector.broadcast %cst_21 : f32 to vector<64x16xf32>
    %70 = arith.select %67, %68, %69 : vector<64x16xi1>, vector<64x16xf32>
    %71 = tpu.iota {dimensions = array<i32: 0>} : vector<64x32xi32>
    %72 = tpu.iota {dimensions = array<i32: 1>} : vector<64x32xi32>
    %c2_i32_22 = arith.constant 2 : i32
    %c0_i32_23 = arith.constant 0 : i32
    %73 = arith.cmpi eq, %c2_i32_22, %c0_i32_23 : i32
    %c1_i32_24 = arith.constant 1 : i32
    %74 = arith.select %73, %c1_i32_24, %c2_i32_22 : i32
    %75 = vector.broadcast %74 : i32 to vector<64x32xi32>
    %76 = arith.remsi %71, %75 : vector<64x32xi32>
    %c0_i32_25 = arith.constant 0 : i32
    %77 = vector.broadcast %c0_i32_25 : i32 to vector<64x32xi32>
    %78 = arith.cmpi ne, %76, %77 : vector<64x32xi32>
    %c0_i32_26 = arith.constant 0 : i32
    %79 = vector.broadcast %c0_i32_26 : i32 to vector<64x32xi32>
    %80 = arith.cmpi slt, %76, %79 : vector<64x32xi32>
    %c0_i32_27 = arith.constant 0 : i32
    %81 = arith.cmpi slt, %74, %c0_i32_27 : i32
    %82 = vector.broadcast %81 : i1 to vector<64x32xi1>
    %83 = vector.broadcast %82 : vector<64x32xi1> to vector<64x32xi1>
    %84 = arith.xori %80, %83 : vector<64x32xi1>
    %85 = arith.andi %84, %78 : vector<64x32xi1>
    %86 = vector.broadcast %74 : i32 to vector<64x32xi32>
    %87 = arith.addi %76, %86 : vector<64x32xi32>
    %88 = arith.select %85, %87, %76 : vector<64x32xi1>, vector<64x32xi32>
    %c2_i32_28 = arith.constant 2 : i32
    %c0_i32_29 = arith.constant 0 : i32
    %89 = arith.cmpi eq, %c2_i32_28, %c0_i32_29 : i32
    %c1_i32_30 = arith.constant 1 : i32
    %90 = arith.select %89, %c1_i32_30, %c2_i32_28 : i32
    %91 = vector.broadcast %90 : i32 to vector<64x32xi32>
    %92 = arith.remsi %72, %91 : vector<64x32xi32>
    %c0_i32_31 = arith.constant 0 : i32
    %93 = vector.broadcast %c0_i32_31 : i32 to vector<64x32xi32>
    %94 = arith.cmpi ne, %92, %93 : vector<64x32xi32>
    %c0_i32_32 = arith.constant 0 : i32
    %95 = vector.broadcast %c0_i32_32 : i32 to vector<64x32xi32>
    %96 = arith.cmpi slt, %92, %95 : vector<64x32xi32>
    %c0_i32_33 = arith.constant 0 : i32
    %97 = arith.cmpi slt, %90, %c0_i32_33 : i32
    %98 = vector.broadcast %97 : i1 to vector<64x32xi1>
    %99 = vector.broadcast %98 : vector<64x32xi1> to vector<64x32xi1>
    %100 = arith.xori %96, %99 : vector<64x32xi1>
    %101 = arith.andi %100, %94 : vector<64x32xi1>
    %102 = vector.broadcast %90 : i32 to vector<64x32xi32>
    %103 = arith.addi %92, %102 : vector<64x32xi32>
    %104 = arith.select %101, %103, %92 : vector<64x32xi1>, vector<64x32xi32>
    %105 = arith.cmpi eq, %88, %104 : vector<64x32xi32>
    %cst_34 = arith.constant 0.000000e+00 : f32
    %cst_35 = arith.constant -1.000000e+09 : f32
    %106 = vector.broadcast %cst_34 : f32 to vector<64x32xf32>
    %107 = vector.broadcast %cst_35 : f32 to vector<64x32xf32>
    %108 = arith.select %105, %106, %107 : vector<64x32xi1>, vector<64x32xf32>
    %c0 = arith.constant 0 : index
    %c0_36 = arith.constant 0 : index
    %109 = vector.load %arg0[%c0, %c0_36] : memref<16x32xf32, #tpu.memory_space<vmem>>, vector<16x32xf32>
    %c0_37 = arith.constant 0 : index
    %c0_38 = arith.constant 0 : index
    %110 = vector.load %arg1[%c0_37, %c0_38] : memref<32x32xf32, #tpu.memory_space<vmem>>, vector<32x32xf32>
    %c0_39 = arith.constant 0 : index
    %c0_40 = arith.constant 0 : index
    %111 = vector.load %arg2[%c0_39, %c0_40] : memref<16x32xf32, #tpu.memory_space<vmem>>, vector<16x32xf32>
    %c0_41 = arith.constant 0 : index
    %c0_42 = arith.constant 0 : index
    %112 = vector.load %arg3[%c0_41, %c0_42] : memref<32x32xf32, #tpu.memory_space<vmem>>, vector<32x32xf32>
    %113 = arith.addf %110, %112 : vector<32x32xf32>
    %c160 = arith.constant 160 : index
    %c0_43 = arith.constant 0 : index
    %114 = vector.load %arg4[%c160, %c0_43] : memref<704x64xf32, #tpu.memory_space<vmem>>, vector<32x64xf32>
    %115 = vector.extract_strided_slice %114 {offsets = [0, 0], sizes = [32, 32], strides = [1, 1]} : vector<32x64xf32> to vector<32x32xf32>
    %cst_44 = arith.constant dense<0.000000e+00> : vector<32x32xf32>
    %116 = tpu.matmul %113, %115, %cst_44 {dimension_numbers = #tpu.dot_dimension_numbers<[1], [0], [0], [1], [0, 0, 1, 1], [], []>} : vector<32x32xf32>, vector<32x32xf32>, vector<32x32xf32> -> vector<32x32xf32>
    %c5 = arith.constant 5 : index
    %c0_45 = arith.constant 0 : index
    %117 = vector.load %arg5[%c5, %c0_45] : memref<40x64xf32, #tpu.memory_space<vmem>>, vector<1x64xf32>
    %118 = vector.extract_strided_slice %117 {offsets = [0, 0], sizes = [1, 32], strides = [1, 1]} : vector<1x64xf32> to vector<1x32xf32>
    %119 = vector.broadcast %118 : vector<1x32xf32> to vector<32x32xf32>
    %120 = arith.addf %116, %119 : vector<32x32xf32>
    %c192 = arith.constant 192 : index
    %c0_46 = arith.constant 0 : index
    %121 = vector.load %arg4[%c192, %c0_46] : memref<704x64xf32, #tpu.memory_space<vmem>>, vector<32x64xf32>
    %122 = vector.extract_strided_slice %121 {offsets = [0, 0], sizes = [32, 32], strides = [1, 1]} : vector<32x64xf32> to vector<32x32xf32>
    %cst_47 = arith.constant dense<0.000000e+00> : vector<32x32xf32>
    %123 = tpu.matmul %110, %122, %cst_47 {dimension_numbers = #tpu.dot_dimension_numbers<[1], [0], [0], [1], [0, 0, 1, 1], [], []>} : vector<32x32xf32>, vector<32x32xf32>, vector<32x32xf32> -> vector<32x32xf32>
    %c6 = arith.constant 6 : index
    %c0_48 = arith.constant 0 : index
    %124 = vector.load %arg5[%c6, %c0_48] : memref<40x64xf32, #tpu.memory_space<vmem>>, vector<1x64xf32>
    %125 = vector.extract_strided_slice %124 {offsets = [0, 0], sizes = [1, 32], strides = [1, 1]} : vector<1x64xf32> to vector<1x32xf32>
    %126 = vector.broadcast %125 : vector<1x32xf32> to vector<32x32xf32>
    %127 = arith.addf %123, %126 : vector<32x32xf32>
    %c512 = arith.constant 512 : index
    %c0_49 = arith.constant 0 : index
    %128 = vector.load %arg4[%c512, %c0_49] : memref<704x64xf32, #tpu.memory_space<vmem>>, vector<32x64xf32>
    %129 = vector.extract_strided_slice %128 {offsets = [0, 0], sizes = [32, 32], strides = [1, 1]} : vector<32x64xf32> to vector<32x32xf32>
    %cst_50 = arith.constant dense<0.000000e+00> : vector<32x32xf32>
    %130 = tpu.matmul %113, %129, %cst_50 {dimension_numbers = #tpu.dot_dimension_numbers<[1], [0], [0], [1], [0, 0, 1, 1], [], []>} : vector<32x32xf32>, vector<32x32xf32>, vector<32x32xf32> -> vector<32x32xf32>
    %c21 = arith.constant 21 : index
    %c0_51 = arith.constant 0 : index
    %131 = vector.load %arg5[%c21, %c0_51] : memref<40x64xf32, #tpu.memory_space<vmem>>, vector<1x64xf32>
    %132 = vector.extract_strided_slice %131 {offsets = [0, 0], sizes = [1, 32], strides = [1, 1]} : vector<1x64xf32> to vector<1x32xf32>
    %133 = vector.broadcast %132 : vector<1x32xf32> to vector<32x32xf32>
    %134 = arith.addf %130, %133 : vector<32x32xf32>
    %c544 = arith.constant 544 : index
    %c0_52 = arith.constant 0 : index
    %135 = vector.load %arg4[%c544, %c0_52] : memref<704x64xf32, #tpu.memory_space<vmem>>, vector<32x64xf32>
    %136 = vector.extract_strided_slice %135 {offsets = [0, 0], sizes = [32, 32], strides = [1, 1]} : vector<32x64xf32> to vector<32x32xf32>
    %cst_53 = arith.constant dense<0.000000e+00> : vector<32x32xf32>
    %137 = tpu.matmul %110, %136, %cst_53 {dimension_numbers = #tpu.dot_dimension_numbers<[1], [0], [0], [1], [0, 0, 1, 1], [], []>} : vector<32x32xf32>, vector<32x32xf32>, vector<32x32xf32> -> vector<32x32xf32>
    %c22 = arith.constant 22 : index
    %c0_54 = arith.constant 0 : index
    %138 = vector.load %arg5[%c22, %c0_54] : memref<40x64xf32, #tpu.memory_space<vmem>>, vector<1x64xf32>
    %139 = vector.extract_strided_slice %138 {offsets = [0, 0], sizes = [1, 32], strides = [1, 1]} : vector<1x64xf32> to vector<1x32xf32>
    %140 = vector.broadcast %139 : vector<1x32xf32> to vector<32x32xf32>
    %141 = arith.addf %137, %140 : vector<32x32xf32>
    %142 = arith.addf %109, %111 : vector<16x32xf32>
    %c0_55 = arith.constant 0 : index
    %c0_56 = arith.constant 0 : index
    %143 = vector.load %arg4[%c0_55, %c0_56] : memref<704x64xf32, #tpu.memory_space<vmem>>, vector<32x64xf32>
    %144 = vector.extract_strided_slice %143 {offsets = [0, 0], sizes = [32, 32], strides = [1, 1]} : vector<32x64xf32> to vector<32x32xf32>
    %cst_57 = arith.constant dense<0.000000e+00> : vector<16x32xf32>
    %145 = tpu.matmul %142, %144, %cst_57 {dimension_numbers = #tpu.dot_dimension_numbers<[1], [0], [0], [1], [0, 0, 1, 1], [], []>} : vector<16x32xf32>, vector<32x32xf32>, vector<16x32xf32> -> vector<16x32xf32>
    %c0_58 = arith.constant 0 : index
    %c0_59 = arith.constant 0 : index
    %146 = vector.load %arg5[%c0_58, %c0_59] : memref<40x64xf32, #tpu.memory_space<vmem>>, vector<1x64xf32>
    %147 = vector.extract_strided_slice %146 {offsets = [0, 0], sizes = [1, 32], strides = [1, 1]} : vector<1x64xf32> to vector<1x32xf32>
    %148 = vector.broadcast %147 : vector<1x32xf32> to vector<16x32xf32>
    %149 = arith.addf %145, %148 : vector<16x32xf32>
    %c32 = arith.constant 32 : index
    %c0_60 = arith.constant 0 : index
    %150 = vector.load %arg4[%c32, %c0_60] : memref<704x64xf32, #tpu.memory_space<vmem>>, vector<32x64xf32>
    %151 = vector.extract_strided_slice %150 {offsets = [0, 0], sizes = [32, 32], strides = [1, 1]} : vector<32x64xf32> to vector<32x32xf32>
    %cst_61 = arith.constant dense<0.000000e+00> : vector<16x32xf32>
    %152 = tpu.matmul %142, %151, %cst_61 {dimension_numbers = #tpu.dot_dimension_numbers<[1], [0], [0], [1], [0, 0, 1, 1], [], []>} : vector<16x32xf32>, vector<32x32xf32>, vector<16x32xf32> -> vector<16x32xf32>
    %c1 = arith.constant 1 : index
    %c0_62 = arith.constant 0 : index
    %153 = vector.load %arg5[%c1, %c0_62] : memref<40x64xf32, #tpu.memory_space<vmem>>, vector<1x64xf32>
    %154 = vector.extract_strided_slice %153 {offsets = [0, 0], sizes = [1, 32], strides = [1, 1]} : vector<1x64xf32> to vector<1x32xf32>
    %155 = vector.broadcast %154 : vector<1x32xf32> to vector<16x32xf32>
    %156 = arith.addf %152, %155 : vector<16x32xf32>
    %c64 = arith.constant 64 : index
    %c0_63 = arith.constant 0 : index
    %157 = vector.load %arg4[%c64, %c0_63] : memref<704x64xf32, #tpu.memory_space<vmem>>, vector<32x64xf32>
    %158 = vector.extract_strided_slice %157 {offsets = [0, 0], sizes = [32, 32], strides = [1, 1]} : vector<32x64xf32> to vector<32x32xf32>
    %cst_64 = arith.constant dense<0.000000e+00> : vector<16x32xf32>
    %159 = tpu.matmul %109, %158, %cst_64 {dimension_numbers = #tpu.dot_dimension_numbers<[1], [0], [0], [1], [0, 0, 1, 1], [], []>} : vector<16x32xf32>, vector<32x32xf32>, vector<16x32xf32> -> vector<16x32xf32>
    %c2 = arith.constant 2 : index
    %c0_65 = arith.constant 0 : index
    %160 = vector.load %arg5[%c2, %c0_65] : memref<40x64xf32, #tpu.memory_space<vmem>>, vector<1x64xf32>
    %161 = vector.extract_strided_slice %160 {offsets = [0, 0], sizes = [1, 32], strides = [1, 1]} : vector<1x64xf32> to vector<1x32xf32>
    %162 = vector.broadcast %161 : vector<1x32xf32> to vector<16x32xf32>
    %163 = arith.addf %159, %162 : vector<16x32xf32>
    %cst_66 = arith.constant 0.353553385 : f32
    %164 = vector.broadcast %cst_66 : f32 to vector<16x32xf32>
    %165 = arith.mulf %149, %164 : vector<16x32xf32>
    %166 = vector.broadcast %8 : vector<1x32xf32> to vector<16x32xf32>
    %167 = arith.mulf %165, %166 : vector<16x32xf32>
    %168 = vector.broadcast %16 : vector<1x32xf32> to vector<16x32xf32>
    %169 = arith.mulf %165, %168 : vector<16x32xf32>
    %170 = vector.broadcast %24 : vector<1x32xf32> to vector<16x32xf32>
    %171 = arith.mulf %165, %170 : vector<16x32xf32>
    %172 = vector.broadcast %32 : vector<1x32xf32> to vector<16x32xf32>
    %173 = arith.mulf %165, %172 : vector<16x32xf32>
    %174 = tpu.concatenate %167, %169, %171, %173 in 0 : vector<16x32xf32>, vector<16x32xf32>, vector<16x32xf32>, vector<16x32xf32> -> vector<64x32xf32>
    %cst_67 = arith.constant dense<0.000000e+00> : vector<64x16xf32>
    %175 = tpu.matmul %174, %156, %cst_67 {dimension_numbers = #tpu.dot_dimension_numbers<[1], [1], [0], [0], [0, 0, 1, 0], [], []>} : vector<64x32xf32>, vector<16x32xf32>, vector<64x16xf32> -> vector<64x16xf32>
    %176 = arith.addf %175, %70 : vector<64x16xf32>
    %cst_68 = arith.constant dense<0xFF800000> : vector<64xf32>
    %177 = vector.multi_reduction <maximumf>, %176, %cst_68 [1] : vector<64x16xf32> to vector<64xf32>
    %178 = vector.shape_cast %177 : vector<64xf32> to vector<64x1xf32>
    %179 = vector.broadcast %178 : vector<64x1xf32> to vector<64x16xf32>
    %180 = arith.subf %176, %179 : vector<64x16xf32>
    %181 = math.exp %180 : vector<64x16xf32>
    %cst_69 = arith.constant dense<0.000000e+00> : vector<64xf32>
    %182 = vector.multi_reduction <add>, %181, %cst_69 [1] : vector<64x16xf32> to vector<64xf32>
    %183 = vector.shape_cast %182 : vector<64xf32> to vector<64x1xf32>
    %184 = vector.broadcast %183 : vector<64x1xf32> to vector<64x16xf32>
    %185 = arith.divf %181, %184 : vector<64x16xf32>
    %cst_70 = arith.constant dense<0.000000e+00> : vector<64x32xf32>
    %186 = tpu.matmul %185, %163, %cst_70 {dimension_numbers = #tpu.dot_dimension_numbers<[1], [0], [0], [1], [0, 0, 1, 1], [], []>} : vector<64x16xf32>, vector<16x32xf32>, vector<64x32xf32> -> vector<64x32xf32>
    %187 = vector.extract_strided_slice %186 {offsets = [0, 0], sizes = [16, 32], strides = [1, 1]} : vector<64x32xf32> to vector<16x32xf32>
    %188 = vector.broadcast %8 : vector<1x32xf32> to vector<16x32xf32>
    %189 = arith.mulf %187, %188 : vector<16x32xf32>
    %190 = vector.extract_strided_slice %186 {offsets = [16, 0], sizes = [16, 32], strides = [1, 1]} : vector<64x32xf32> to vector<16x32xf32>
    %191 = vector.broadcast %16 : vector<1x32xf32> to vector<16x32xf32>
    %192 = arith.mulf %190, %191 : vector<16x32xf32>
    %193 = arith.addf %189, %192 : vector<16x32xf32>
    %194 = vector.extract_strided_slice %186 {offsets = [32, 0], sizes = [16, 32], strides = [1, 1]} : vector<64x32xf32> to vector<16x32xf32>
    %195 = vector.broadcast %24 : vector<1x32xf32> to vector<16x32xf32>
    %196 = arith.mulf %194, %195 : vector<16x32xf32>
    %197 = arith.addf %193, %196 : vector<16x32xf32>
    %198 = vector.extract_strided_slice %186 {offsets = [48, 0], sizes = [16, 32], strides = [1, 1]} : vector<64x32xf32> to vector<16x32xf32>
    %199 = vector.broadcast %32 : vector<1x32xf32> to vector<16x32xf32>
    %200 = arith.mulf %198, %199 : vector<16x32xf32>
    %201 = arith.addf %197, %200 : vector<16x32xf32>
    %c96 = arith.constant 96 : index
    %c0_71 = arith.constant 0 : index
    %202 = vector.load %arg4[%c96, %c0_71] : memref<704x64xf32, #tpu.memory_space<vmem>>, vector<32x64xf32>
    %203 = vector.extract_strided_slice %202 {offsets = [0, 0], sizes = [32, 32], strides = [1, 1]} : vector<32x64xf32> to vector<32x32xf32>
    %cst_72 = arith.constant dense<0.000000e+00> : vector<16x32xf32>
    %204 = tpu.matmul %201, %203, %cst_72 {dimension_numbers = #tpu.dot_dimension_numbers<[1], [0], [0], [1], [0, 0, 1, 1], [], []>} : vector<16x32xf32>, vector<32x32xf32>, vector<16x32xf32> -> vector<16x32xf32>
    %c3 = arith.constant 3 : index
    %c0_73 = arith.constant 0 : index
    %205 = vector.load %arg5[%c3, %c0_73] : memref<40x64xf32, #tpu.memory_space<vmem>>, vector<1x64xf32>
    %206 = vector.extract_strided_slice %205 {offsets = [0, 0], sizes = [1, 32], strides = [1, 1]} : vector<1x64xf32> to vector<1x32xf32>
    %207 = vector.broadcast %206 : vector<1x32xf32> to vector<16x32xf32>
    %208 = arith.addf %204, %207 : vector<16x32xf32>
    %209 = arith.addf %109, %208 : vector<16x32xf32>
    %c10 = arith.constant 10 : index
    %c0_74 = arith.constant 0 : index
    %210 = vector.load %arg5[%c10, %c0_74] : memref<40x64xf32, #tpu.memory_space<vmem>>, vector<1x64xf32>
    %211 = vector.extract_strided_slice %210 {offsets = [0, 0], sizes = [1, 32], strides = [1, 1]} : vector<1x64xf32> to vector<1x32xf32>
    %c11 = arith.constant 11 : index
    %c0_75 = arith.constant 0 : index
    %212 = vector.load %arg5[%c11, %c0_75] : memref<40x64xf32, #tpu.memory_space<vmem>>, vector<1x64xf32>
    %213 = vector.extract_strided_slice %212 {offsets = [0, 0], sizes = [1, 32], strides = [1, 1]} : vector<1x64xf32> to vector<1x32xf32>
    %cst_76 = arith.constant dense<0.000000e+00> : vector<16xf32>
    %214 = vector.multi_reduction <add>, %209, %cst_76 [1] : vector<16x32xf32> to vector<16xf32>
    %215 = vector.shape_cast %214 : vector<16xf32> to vector<16x1xf32>
    %cst_77 = arith.constant 3.200000e+01 : f32
    %216 = vector.broadcast %cst_77 : f32 to vector<16x1xf32>
    %217 = arith.divf %215, %216 : vector<16x1xf32>
    %218 = vector.broadcast %217 : vector<16x1xf32> to vector<16x32xf32>
    %219 = arith.subf %209, %218 : vector<16x32xf32>
    %220 = arith.mulf %219, %219 : vector<16x32xf32>
    %cst_78 = arith.constant dense<0.000000e+00> : vector<16xf32>
    %221 = vector.multi_reduction <add>, %220, %cst_78 [1] : vector<16x32xf32> to vector<16xf32>
    %222 = vector.shape_cast %221 : vector<16xf32> to vector<16x1xf32>
    %cst_79 = arith.constant 3.200000e+01 : f32
    %223 = vector.broadcast %cst_79 : f32 to vector<16x1xf32>
    %224 = arith.divf %222, %223 : vector<16x1xf32>
    %cst_80 = arith.constant 9.99999974E-6 : f32
    %225 = vector.broadcast %cst_80 : f32 to vector<16x1xf32>
    %226 = arith.addf %224, %225 : vector<16x1xf32>
    %227 = math.rsqrt %226 : vector<16x1xf32>
    %228 = vector.broadcast %227 : vector<16x1xf32> to vector<16x32xf32>
    %229 = arith.mulf %219, %228 : vector<16x32xf32>
    %230 = vector.broadcast %211 : vector<1x32xf32> to vector<16x32xf32>
    %231 = arith.mulf %229, %230 : vector<16x32xf32>
    %232 = vector.broadcast %213 : vector<1x32xf32> to vector<16x32xf32>
    %233 = arith.addf %231, %232 : vector<16x32xf32>
    %234 = arith.addf %233, %111 : vector<16x32xf32>
    %c128 = arith.constant 128 : index
    %c0_81 = arith.constant 0 : index
    %235 = vector.load %arg4[%c128, %c0_81] : memref<704x64xf32, #tpu.memory_space<vmem>>, vector<32x64xf32>
    %236 = vector.extract_strided_slice %235 {offsets = [0, 0], sizes = [32, 32], strides = [1, 1]} : vector<32x64xf32> to vector<32x32xf32>
    %cst_82 = arith.constant dense<0.000000e+00> : vector<16x32xf32>
    %237 = tpu.matmul %234, %236, %cst_82 {dimension_numbers = #tpu.dot_dimension_numbers<[1], [0], [0], [1], [0, 0, 1, 1], [], []>} : vector<16x32xf32>, vector<32x32xf32>, vector<16x32xf32> -> vector<16x32xf32>
    %c4 = arith.constant 4 : index
    %c0_83 = arith.constant 0 : index
    %238 = vector.load %arg5[%c4, %c0_83] : memref<40x64xf32, #tpu.memory_space<vmem>>, vector<1x64xf32>
    %239 = vector.extract_strided_slice %238 {offsets = [0, 0], sizes = [1, 32], strides = [1, 1]} : vector<1x64xf32> to vector<1x32xf32>
    %240 = vector.broadcast %239 : vector<1x32xf32> to vector<16x32xf32>
    %241 = arith.addf %237, %240 : vector<16x32xf32>
    %cst_84 = arith.constant 0.353553385 : f32
    %242 = vector.broadcast %cst_84 : f32 to vector<16x32xf32>
    %243 = arith.mulf %241, %242 : vector<16x32xf32>
    %244 = vector.broadcast %8 : vector<1x32xf32> to vector<16x32xf32>
    %245 = arith.mulf %243, %244 : vector<16x32xf32>
    %246 = vector.broadcast %16 : vector<1x32xf32> to vector<16x32xf32>
    %247 = arith.mulf %243, %246 : vector<16x32xf32>
    %248 = vector.broadcast %24 : vector<1x32xf32> to vector<16x32xf32>
    %249 = arith.mulf %243, %248 : vector<16x32xf32>
    %250 = vector.broadcast %32 : vector<1x32xf32> to vector<16x32xf32>
    %251 = arith.mulf %243, %250 : vector<16x32xf32>
    %252 = tpu.concatenate %245, %247, %249, %251 in 0 : vector<16x32xf32>, vector<16x32xf32>, vector<16x32xf32>, vector<16x32xf32> -> vector<64x32xf32>
    %cst_85 = arith.constant dense<0.000000e+00> : vector<64x32xf32>
    %253 = tpu.matmul %252, %120, %cst_85 {dimension_numbers = #tpu.dot_dimension_numbers<[1], [1], [0], [0], [0, 0, 1, 0], [], []>} : vector<64x32xf32>, vector<32x32xf32>, vector<64x32xf32> -> vector<64x32xf32>
    %254 = arith.addf %253, %108 : vector<64x32xf32>
    %cst_86 = arith.constant dense<0xFF800000> : vector<64xf32>
    %255 = vector.multi_reduction <maximumf>, %254, %cst_86 [1] : vector<64x32xf32> to vector<64xf32>
    %256 = vector.shape_cast %255 : vector<64xf32> to vector<64x1xf32>
    %257 = vector.broadcast %256 : vector<64x1xf32> to vector<64x32xf32>
    %258 = arith.subf %254, %257 : vector<64x32xf32>
    %259 = math.exp %258 : vector<64x32xf32>
    %cst_87 = arith.constant dense<0.000000e+00> : vector<64xf32>
    %260 = vector.multi_reduction <add>, %259, %cst_87 [1] : vector<64x32xf32> to vector<64xf32>
    %261 = vector.shape_cast %260 : vector<64xf32> to vector<64x1xf32>
    %262 = vector.broadcast %261 : vector<64x1xf32> to vector<64x32xf32>
    %263 = arith.divf %259, %262 : vector<64x32xf32>
    %cst_88 = arith.constant dense<0.000000e+00> : vector<64x32xf32>
    %264 = tpu.matmul %263, %127, %cst_88 {dimension_numbers = #tpu.dot_dimension_numbers<[1], [0], [0], [1], [0, 0, 1, 1], [], []>} : vector<64x32xf32>, vector<32x32xf32>, vector<64x32xf32> -> vector<64x32xf32>
    %265 = vector.extract_strided_slice %264 {offsets = [0, 0], sizes = [16, 32], strides = [1, 1]} : vector<64x32xf32> to vector<16x32xf32>
    %266 = vector.broadcast %8 : vector<1x32xf32> to vector<16x32xf32>
    %267 = arith.mulf %265, %266 : vector<16x32xf32>
    %268 = vector.extract_strided_slice %264 {offsets = [16, 0], sizes = [16, 32], strides = [1, 1]} : vector<64x32xf32> to vector<16x32xf32>
    %269 = vector.broadcast %16 : vector<1x32xf32> to vector<16x32xf32>
    %270 = arith.mulf %268, %269 : vector<16x32xf32>
    %271 = arith.addf %267, %270 : vector<16x32xf32>
    %272 = vector.extract_strided_slice %264 {offsets = [32, 0], sizes = [16, 32], strides = [1, 1]} : vector<64x32xf32> to vector<16x32xf32>
    %273 = vector.broadcast %24 : vector<1x32xf32> to vector<16x32xf32>
    %274 = arith.mulf %272, %273 : vector<16x32xf32>
    %275 = arith.addf %271, %274 : vector<16x32xf32>
    %276 = vector.extract_strided_slice %264 {offsets = [48, 0], sizes = [16, 32], strides = [1, 1]} : vector<64x32xf32> to vector<16x32xf32>
    %277 = vector.broadcast %32 : vector<1x32xf32> to vector<16x32xf32>
    %278 = arith.mulf %276, %277 : vector<16x32xf32>
    %279 = arith.addf %275, %278 : vector<16x32xf32>
    %c224 = arith.constant 224 : index
    %c0_89 = arith.constant 0 : index
    %280 = vector.load %arg4[%c224, %c0_89] : memref<704x64xf32, #tpu.memory_space<vmem>>, vector<32x64xf32>
    %281 = vector.extract_strided_slice %280 {offsets = [0, 0], sizes = [32, 32], strides = [1, 1]} : vector<32x64xf32> to vector<32x32xf32>
    %cst_90 = arith.constant dense<0.000000e+00> : vector<16x32xf32>
    %282 = tpu.matmul %279, %281, %cst_90 {dimension_numbers = #tpu.dot_dimension_numbers<[1], [0], [0], [1], [0, 0, 1, 1], [], []>} : vector<16x32xf32>, vector<32x32xf32>, vector<16x32xf32> -> vector<16x32xf32>
    %c7 = arith.constant 7 : index
    %c0_91 = arith.constant 0 : index
    %283 = vector.load %arg5[%c7, %c0_91] : memref<40x64xf32, #tpu.memory_space<vmem>>, vector<1x64xf32>
    %284 = vector.extract_strided_slice %283 {offsets = [0, 0], sizes = [1, 32], strides = [1, 1]} : vector<1x64xf32> to vector<1x32xf32>
    %285 = vector.broadcast %284 : vector<1x32xf32> to vector<16x32xf32>
    %286 = arith.addf %282, %285 : vector<16x32xf32>
    %287 = arith.addf %233, %286 : vector<16x32xf32>
    %c12 = arith.constant 12 : index
    %c0_92 = arith.constant 0 : index
    %288 = vector.load %arg5[%c12, %c0_92] : memref<40x64xf32, #tpu.memory_space<vmem>>, vector<1x64xf32>
    %289 = vector.extract_strided_slice %288 {offsets = [0, 0], sizes = [1, 32], strides = [1, 1]} : vector<1x64xf32> to vector<1x32xf32>
    %c13 = arith.constant 13 : index
    %c0_93 = arith.constant 0 : index
    %290 = vector.load %arg5[%c13, %c0_93] : memref<40x64xf32, #tpu.memory_space<vmem>>, vector<1x64xf32>
    %291 = vector.extract_strided_slice %290 {offsets = [0, 0], sizes = [1, 32], strides = [1, 1]} : vector<1x64xf32> to vector<1x32xf32>
    %cst_94 = arith.constant dense<0.000000e+00> : vector<16xf32>
    %292 = vector.multi_reduction <add>, %287, %cst_94 [1] : vector<16x32xf32> to vector<16xf32>
    %293 = vector.shape_cast %292 : vector<16xf32> to vector<16x1xf32>
    %cst_95 = arith.constant 3.200000e+01 : f32
    %294 = vector.broadcast %cst_95 : f32 to vector<16x1xf32>
    %295 = arith.divf %293, %294 : vector<16x1xf32>
    %296 = vector.broadcast %295 : vector<16x1xf32> to vector<16x32xf32>
    %297 = arith.subf %287, %296 : vector<16x32xf32>
    %298 = arith.mulf %297, %297 : vector<16x32xf32>
    %cst_96 = arith.constant dense<0.000000e+00> : vector<16xf32>
    %299 = vector.multi_reduction <add>, %298, %cst_96 [1] : vector<16x32xf32> to vector<16xf32>
    %300 = vector.shape_cast %299 : vector<16xf32> to vector<16x1xf32>
    %cst_97 = arith.constant 3.200000e+01 : f32
    %301 = vector.broadcast %cst_97 : f32 to vector<16x1xf32>
    %302 = arith.divf %300, %301 : vector<16x1xf32>
    %cst_98 = arith.constant 9.99999974E-6 : f32
    %303 = vector.broadcast %cst_98 : f32 to vector<16x1xf32>
    %304 = arith.addf %302, %303 : vector<16x1xf32>
    %305 = math.rsqrt %304 : vector<16x1xf32>
    %306 = vector.broadcast %305 : vector<16x1xf32> to vector<16x32xf32>
    %307 = arith.mulf %297, %306 : vector<16x32xf32>
    %308 = vector.broadcast %289 : vector<1x32xf32> to vector<16x32xf32>
    %309 = arith.mulf %307, %308 : vector<16x32xf32>
    %310 = vector.broadcast %291 : vector<1x32xf32> to vector<16x32xf32>
    %311 = arith.addf %309, %310 : vector<16x32xf32>
    %c256 = arith.constant 256 : index
    %c0_99 = arith.constant 0 : index
    %312 = vector.load %arg4[%c256, %c0_99] : memref<704x64xf32, #tpu.memory_space<vmem>>, vector<32x64xf32>
    %cst_100 = arith.constant dense<0.000000e+00> : vector<16x64xf32>
    %313 = tpu.matmul %311, %312, %cst_100 {dimension_numbers = #tpu.dot_dimension_numbers<[1], [0], [0], [1], [0, 0, 1, 1], [], []>} : vector<16x32xf32>, vector<32x64xf32>, vector<16x64xf32> -> vector<16x64xf32>
    %c8 = arith.constant 8 : index
    %c0_101 = arith.constant 0 : index
    %314 = vector.load %arg5[%c8, %c0_101] : memref<40x64xf32, #tpu.memory_space<vmem>>, vector<1x64xf32>
    %315 = vector.broadcast %314 : vector<1x64xf32> to vector<16x64xf32>
    %316 = arith.addf %313, %315 : vector<16x64xf32>
    %cst_102 = arith.constant 0.000000e+00 : f32
    %317 = vector.broadcast %cst_102 : f32 to vector<16x64xf32>
    %318 = arith.maximumf %316, %317 : vector<16x64xf32>
    %c288 = arith.constant 288 : index
    %c0_103 = arith.constant 0 : index
    %319 = vector.load %arg4[%c288, %c0_103] : memref<704x64xf32, #tpu.memory_space<vmem>>, vector<64x64xf32>
    %320 = vector.extract_strided_slice %319 {offsets = [0, 0], sizes = [64, 32], strides = [1, 1]} : vector<64x64xf32> to vector<64x32xf32>
    %cst_104 = arith.constant dense<0.000000e+00> : vector<16x32xf32>
    %321 = tpu.matmul %318, %320, %cst_104 {dimension_numbers = #tpu.dot_dimension_numbers<[1], [0], [0], [1], [0, 0, 1, 1], [], []>} : vector<16x64xf32>, vector<64x32xf32>, vector<16x32xf32> -> vector<16x32xf32>
    %c9 = arith.constant 9 : index
    %c0_105 = arith.constant 0 : index
    %322 = vector.load %arg5[%c9, %c0_105] : memref<40x64xf32, #tpu.memory_space<vmem>>, vector<1x64xf32>
    %323 = vector.extract_strided_slice %322 {offsets = [0, 0], sizes = [1, 32], strides = [1, 1]} : vector<1x64xf32> to vector<1x32xf32>
    %324 = vector.broadcast %323 : vector<1x32xf32> to vector<16x32xf32>
    %325 = arith.addf %321, %324 : vector<16x32xf32>
    %326 = arith.addf %311, %325 : vector<16x32xf32>
    %c14 = arith.constant 14 : index
    %c0_106 = arith.constant 0 : index
    %327 = vector.load %arg5[%c14, %c0_106] : memref<40x64xf32, #tpu.memory_space<vmem>>, vector<1x64xf32>
    %328 = vector.extract_strided_slice %327 {offsets = [0, 0], sizes = [1, 32], strides = [1, 1]} : vector<1x64xf32> to vector<1x32xf32>
    %c15 = arith.constant 15 : index
    %c0_107 = arith.constant 0 : index
    %329 = vector.load %arg5[%c15, %c0_107] : memref<40x64xf32, #tpu.memory_space<vmem>>, vector<1x64xf32>
    %330 = vector.extract_strided_slice %329 {offsets = [0, 0], sizes = [1, 32], strides = [1, 1]} : vector<1x64xf32> to vector<1x32xf32>
    %cst_108 = arith.constant dense<0.000000e+00> : vector<16xf32>
    %331 = vector.multi_reduction <add>, %326, %cst_108 [1] : vector<16x32xf32> to vector<16xf32>
    %332 = vector.shape_cast %331 : vector<16xf32> to vector<16x1xf32>
    %cst_109 = arith.constant 3.200000e+01 : f32
    %333 = vector.broadcast %cst_109 : f32 to vector<16x1xf32>
    %334 = arith.divf %332, %333 : vector<16x1xf32>
    %335 = vector.broadcast %334 : vector<16x1xf32> to vector<16x32xf32>
    %336 = arith.subf %326, %335 : vector<16x32xf32>
    %337 = arith.mulf %336, %336 : vector<16x32xf32>
    %cst_110 = arith.constant dense<0.000000e+00> : vector<16xf32>
    %338 = vector.multi_reduction <add>, %337, %cst_110 [1] : vector<16x32xf32> to vector<16xf32>
    %339 = vector.shape_cast %338 : vector<16xf32> to vector<16x1xf32>
    %cst_111 = arith.constant 3.200000e+01 : f32
    %340 = vector.broadcast %cst_111 : f32 to vector<16x1xf32>
    %341 = arith.divf %339, %340 : vector<16x1xf32>
    %cst_112 = arith.constant 9.99999974E-6 : f32
    %342 = vector.broadcast %cst_112 : f32 to vector<16x1xf32>
    %343 = arith.addf %341, %342 : vector<16x1xf32>
    %344 = math.rsqrt %343 : vector<16x1xf32>
    %345 = vector.broadcast %344 : vector<16x1xf32> to vector<16x32xf32>
    %346 = arith.mulf %336, %345 : vector<16x32xf32>
    %347 = vector.broadcast %328 : vector<1x32xf32> to vector<16x32xf32>
    %348 = arith.mulf %346, %347 : vector<16x32xf32>
    %349 = vector.broadcast %330 : vector<1x32xf32> to vector<16x32xf32>
    %350 = arith.addf %348, %349 : vector<16x32xf32>
    %351 = arith.addf %350, %111 : vector<16x32xf32>
    %c352 = arith.constant 352 : index
    %c0_113 = arith.constant 0 : index
    %352 = vector.load %arg4[%c352, %c0_113] : memref<704x64xf32, #tpu.memory_space<vmem>>, vector<32x64xf32>
    %353 = vector.extract_strided_slice %352 {offsets = [0, 0], sizes = [32, 32], strides = [1, 1]} : vector<32x64xf32> to vector<32x32xf32>
    %cst_114 = arith.constant dense<0.000000e+00> : vector<16x32xf32>
    %354 = tpu.matmul %351, %353, %cst_114 {dimension_numbers = #tpu.dot_dimension_numbers<[1], [0], [0], [1], [0, 0, 1, 1], [], []>} : vector<16x32xf32>, vector<32x32xf32>, vector<16x32xf32> -> vector<16x32xf32>
    %c16 = arith.constant 16 : index
    %c0_115 = arith.constant 0 : index
    %355 = vector.load %arg5[%c16, %c0_115] : memref<40x64xf32, #tpu.memory_space<vmem>>, vector<1x64xf32>
    %356 = vector.extract_strided_slice %355 {offsets = [0, 0], sizes = [1, 32], strides = [1, 1]} : vector<1x64xf32> to vector<1x32xf32>
    %357 = vector.broadcast %356 : vector<1x32xf32> to vector<16x32xf32>
    %358 = arith.addf %354, %357 : vector<16x32xf32>
    %c384 = arith.constant 384 : index
    %c0_116 = arith.constant 0 : index
    %359 = vector.load %arg4[%c384, %c0_116] : memref<704x64xf32, #tpu.memory_space<vmem>>, vector<32x64xf32>
    %360 = vector.extract_strided_slice %359 {offsets = [0, 0], sizes = [32, 32], strides = [1, 1]} : vector<32x64xf32> to vector<32x32xf32>
    %cst_117 = arith.constant dense<0.000000e+00> : vector<16x32xf32>
    %361 = tpu.matmul %351, %360, %cst_117 {dimension_numbers = #tpu.dot_dimension_numbers<[1], [0], [0], [1], [0, 0, 1, 1], [], []>} : vector<16x32xf32>, vector<32x32xf32>, vector<16x32xf32> -> vector<16x32xf32>
    %c17 = arith.constant 17 : index
    %c0_118 = arith.constant 0 : index
    %362 = vector.load %arg5[%c17, %c0_118] : memref<40x64xf32, #tpu.memory_space<vmem>>, vector<1x64xf32>
    %363 = vector.extract_strided_slice %362 {offsets = [0, 0], sizes = [1, 32], strides = [1, 1]} : vector<1x64xf32> to vector<1x32xf32>
    %364 = vector.broadcast %363 : vector<1x32xf32> to vector<16x32xf32>
    %365 = arith.addf %361, %364 : vector<16x32xf32>
    %c416 = arith.constant 416 : index
    %c0_119 = arith.constant 0 : index
    %366 = vector.load %arg4[%c416, %c0_119] : memref<704x64xf32, #tpu.memory_space<vmem>>, vector<32x64xf32>
    %367 = vector.extract_strided_slice %366 {offsets = [0, 0], sizes = [32, 32], strides = [1, 1]} : vector<32x64xf32> to vector<32x32xf32>
    %cst_120 = arith.constant dense<0.000000e+00> : vector<16x32xf32>
    %368 = tpu.matmul %350, %367, %cst_120 {dimension_numbers = #tpu.dot_dimension_numbers<[1], [0], [0], [1], [0, 0, 1, 1], [], []>} : vector<16x32xf32>, vector<32x32xf32>, vector<16x32xf32> -> vector<16x32xf32>
    %c18 = arith.constant 18 : index
    %c0_121 = arith.constant 0 : index
    %369 = vector.load %arg5[%c18, %c0_121] : memref<40x64xf32, #tpu.memory_space<vmem>>, vector<1x64xf32>
    %370 = vector.extract_strided_slice %369 {offsets = [0, 0], sizes = [1, 32], strides = [1, 1]} : vector<1x64xf32> to vector<1x32xf32>
    %371 = vector.broadcast %370 : vector<1x32xf32> to vector<16x32xf32>
    %372 = arith.addf %368, %371 : vector<16x32xf32>
    %cst_122 = arith.constant 0.353553385 : f32
    %373 = vector.broadcast %cst_122 : f32 to vector<16x32xf32>
    %374 = arith.mulf %358, %373 : vector<16x32xf32>
    %375 = vector.broadcast %8 : vector<1x32xf32> to vector<16x32xf32>
    %376 = arith.mulf %374, %375 : vector<16x32xf32>
    %377 = vector.broadcast %16 : vector<1x32xf32> to vector<16x32xf32>
    %378 = arith.mulf %374, %377 : vector<16x32xf32>
    %379 = vector.broadcast %24 : vector<1x32xf32> to vector<16x32xf32>
    %380 = arith.mulf %374, %379 : vector<16x32xf32>
    %381 = vector.broadcast %32 : vector<1x32xf32> to vector<16x32xf32>
    %382 = arith.mulf %374, %381 : vector<16x32xf32>
    %383 = tpu.concatenate %376, %378, %380, %382 in 0 : vector<16x32xf32>, vector<16x32xf32>, vector<16x32xf32>, vector<16x32xf32> -> vector<64x32xf32>
    %cst_123 = arith.constant dense<0.000000e+00> : vector<64x16xf32>
    %384 = tpu.matmul %383, %365, %cst_123 {dimension_numbers = #tpu.dot_dimension_numbers<[1], [1], [0], [0], [0, 0, 1, 0], [], []>} : vector<64x32xf32>, vector<16x32xf32>, vector<64x16xf32> -> vector<64x16xf32>
    %385 = arith.addf %384, %70 : vector<64x16xf32>
    %cst_124 = arith.constant dense<0xFF800000> : vector<64xf32>
    %386 = vector.multi_reduction <maximumf>, %385, %cst_124 [1] : vector<64x16xf32> to vector<64xf32>
    %387 = vector.shape_cast %386 : vector<64xf32> to vector<64x1xf32>
    %388 = vector.broadcast %387 : vector<64x1xf32> to vector<64x16xf32>
    %389 = arith.subf %385, %388 : vector<64x16xf32>
    %390 = math.exp %389 : vector<64x16xf32>
    %cst_125 = arith.constant dense<0.000000e+00> : vector<64xf32>
    %391 = vector.multi_reduction <add>, %390, %cst_125 [1] : vector<64x16xf32> to vector<64xf32>
    %392 = vector.shape_cast %391 : vector<64xf32> to vector<64x1xf32>
    %393 = vector.broadcast %392 : vector<64x1xf32> to vector<64x16xf32>
    %394 = arith.divf %390, %393 : vector<64x16xf32>
    %cst_126 = arith.constant dense<0.000000e+00> : vector<64x32xf32>
    %395 = tpu.matmul %394, %372, %cst_126 {dimension_numbers = #tpu.dot_dimension_numbers<[1], [0], [0], [1], [0, 0, 1, 1], [], []>} : vector<64x16xf32>, vector<16x32xf32>, vector<64x32xf32> -> vector<64x32xf32>
    %396 = vector.extract_strided_slice %395 {offsets = [0, 0], sizes = [16, 32], strides = [1, 1]} : vector<64x32xf32> to vector<16x32xf32>
    %397 = vector.broadcast %8 : vector<1x32xf32> to vector<16x32xf32>
    %398 = arith.mulf %396, %397 : vector<16x32xf32>
    %399 = vector.extract_strided_slice %395 {offsets = [16, 0], sizes = [16, 32], strides = [1, 1]} : vector<64x32xf32> to vector<16x32xf32>
    %400 = vector.broadcast %16 : vector<1x32xf32> to vector<16x32xf32>
    %401 = arith.mulf %399, %400 : vector<16x32xf32>
    %402 = arith.addf %398, %401 : vector<16x32xf32>
    %403 = vector.extract_strided_slice %395 {offsets = [32, 0], sizes = [16, 32], strides = [1, 1]} : vector<64x32xf32> to vector<16x32xf32>
    %404 = vector.broadcast %24 : vector<1x32xf32> to vector<16x32xf32>
    %405 = arith.mulf %403, %404 : vector<16x32xf32>
    %406 = arith.addf %402, %405 : vector<16x32xf32>
    %407 = vector.extract_strided_slice %395 {offsets = [48, 0], sizes = [16, 32], strides = [1, 1]} : vector<64x32xf32> to vector<16x32xf32>
    %408 = vector.broadcast %32 : vector<1x32xf32> to vector<16x32xf32>
    %409 = arith.mulf %407, %408 : vector<16x32xf32>
    %410 = arith.addf %406, %409 : vector<16x32xf32>
    %c448 = arith.constant 448 : index
    %c0_127 = arith.constant 0 : index
    %411 = vector.load %arg4[%c448, %c0_127] : memref<704x64xf32, #tpu.memory_space<vmem>>, vector<32x64xf32>
    %412 = vector.extract_strided_slice %411 {offsets = [0, 0], sizes = [32, 32], strides = [1, 1]} : vector<32x64xf32> to vector<32x32xf32>
    %cst_128 = arith.constant dense<0.000000e+00> : vector<16x32xf32>
    %413 = tpu.matmul %410, %412, %cst_128 {dimension_numbers = #tpu.dot_dimension_numbers<[1], [0], [0], [1], [0, 0, 1, 1], [], []>} : vector<16x32xf32>, vector<32x32xf32>, vector<16x32xf32> -> vector<16x32xf32>
    %c19 = arith.constant 19 : index
    %c0_129 = arith.constant 0 : index
    %414 = vector.load %arg5[%c19, %c0_129] : memref<40x64xf32, #tpu.memory_space<vmem>>, vector<1x64xf32>
    %415 = vector.extract_strided_slice %414 {offsets = [0, 0], sizes = [1, 32], strides = [1, 1]} : vector<1x64xf32> to vector<1x32xf32>
    %416 = vector.broadcast %415 : vector<1x32xf32> to vector<16x32xf32>
    %417 = arith.addf %413, %416 : vector<16x32xf32>
    %418 = arith.addf %350, %417 : vector<16x32xf32>
    %c26 = arith.constant 26 : index
    %c0_130 = arith.constant 0 : index
    %419 = vector.load %arg5[%c26, %c0_130] : memref<40x64xf32, #tpu.memory_space<vmem>>, vector<1x64xf32>
    %420 = vector.extract_strided_slice %419 {offsets = [0, 0], sizes = [1, 32], strides = [1, 1]} : vector<1x64xf32> to vector<1x32xf32>
    %c27 = arith.constant 27 : index
    %c0_131 = arith.constant 0 : index
    %421 = vector.load %arg5[%c27, %c0_131] : memref<40x64xf32, #tpu.memory_space<vmem>>, vector<1x64xf32>
    %422 = vector.extract_strided_slice %421 {offsets = [0, 0], sizes = [1, 32], strides = [1, 1]} : vector<1x64xf32> to vector<1x32xf32>
    %cst_132 = arith.constant dense<0.000000e+00> : vector<16xf32>
    %423 = vector.multi_reduction <add>, %418, %cst_132 [1] : vector<16x32xf32> to vector<16xf32>
    %424 = vector.shape_cast %423 : vector<16xf32> to vector<16x1xf32>
    %cst_133 = arith.constant 3.200000e+01 : f32
    %425 = vector.broadcast %cst_133 : f32 to vector<16x1xf32>
    %426 = arith.divf %424, %425 : vector<16x1xf32>
    %427 = vector.broadcast %426 : vector<16x1xf32> to vector<16x32xf32>
    %428 = arith.subf %418, %427 : vector<16x32xf32>
    %429 = arith.mulf %428, %428 : vector<16x32xf32>
    %cst_134 = arith.constant dense<0.000000e+00> : vector<16xf32>
    %430 = vector.multi_reduction <add>, %429, %cst_134 [1] : vector<16x32xf32> to vector<16xf32>
    %431 = vector.shape_cast %430 : vector<16xf32> to vector<16x1xf32>
    %cst_135 = arith.constant 3.200000e+01 : f32
    %432 = vector.broadcast %cst_135 : f32 to vector<16x1xf32>
    %433 = arith.divf %431, %432 : vector<16x1xf32>
    %cst_136 = arith.constant 9.99999974E-6 : f32
    %434 = vector.broadcast %cst_136 : f32 to vector<16x1xf32>
    %435 = arith.addf %433, %434 : vector<16x1xf32>
    %436 = math.rsqrt %435 : vector<16x1xf32>
    %437 = vector.broadcast %436 : vector<16x1xf32> to vector<16x32xf32>
    %438 = arith.mulf %428, %437 : vector<16x32xf32>
    %439 = vector.broadcast %420 : vector<1x32xf32> to vector<16x32xf32>
    %440 = arith.mulf %438, %439 : vector<16x32xf32>
    %441 = vector.broadcast %422 : vector<1x32xf32> to vector<16x32xf32>
    %442 = arith.addf %440, %441 : vector<16x32xf32>
    %443 = arith.addf %442, %111 : vector<16x32xf32>
    %c480 = arith.constant 480 : index
    %c0_137 = arith.constant 0 : index
    %444 = vector.load %arg4[%c480, %c0_137] : memref<704x64xf32, #tpu.memory_space<vmem>>, vector<32x64xf32>
    %445 = vector.extract_strided_slice %444 {offsets = [0, 0], sizes = [32, 32], strides = [1, 1]} : vector<32x64xf32> to vector<32x32xf32>
    %cst_138 = arith.constant dense<0.000000e+00> : vector<16x32xf32>
    %446 = tpu.matmul %443, %445, %cst_138 {dimension_numbers = #tpu.dot_dimension_numbers<[1], [0], [0], [1], [0, 0, 1, 1], [], []>} : vector<16x32xf32>, vector<32x32xf32>, vector<16x32xf32> -> vector<16x32xf32>
    %c20 = arith.constant 20 : index
    %c0_139 = arith.constant 0 : index
    %447 = vector.load %arg5[%c20, %c0_139] : memref<40x64xf32, #tpu.memory_space<vmem>>, vector<1x64xf32>
    %448 = vector.extract_strided_slice %447 {offsets = [0, 0], sizes = [1, 32], strides = [1, 1]} : vector<1x64xf32> to vector<1x32xf32>
    %449 = vector.broadcast %448 : vector<1x32xf32> to vector<16x32xf32>
    %450 = arith.addf %446, %449 : vector<16x32xf32>
    %cst_140 = arith.constant 0.353553385 : f32
    %451 = vector.broadcast %cst_140 : f32 to vector<16x32xf32>
    %452 = arith.mulf %450, %451 : vector<16x32xf32>
    %453 = vector.broadcast %8 : vector<1x32xf32> to vector<16x32xf32>
    %454 = arith.mulf %452, %453 : vector<16x32xf32>
    %455 = vector.broadcast %16 : vector<1x32xf32> to vector<16x32xf32>
    %456 = arith.mulf %452, %455 : vector<16x32xf32>
    %457 = vector.broadcast %24 : vector<1x32xf32> to vector<16x32xf32>
    %458 = arith.mulf %452, %457 : vector<16x32xf32>
    %459 = vector.broadcast %32 : vector<1x32xf32> to vector<16x32xf32>
    %460 = arith.mulf %452, %459 : vector<16x32xf32>
    %461 = tpu.concatenate %454, %456, %458, %460 in 0 : vector<16x32xf32>, vector<16x32xf32>, vector<16x32xf32>, vector<16x32xf32> -> vector<64x32xf32>
    %cst_141 = arith.constant dense<0.000000e+00> : vector<64x32xf32>
    %462 = tpu.matmul %461, %134, %cst_141 {dimension_numbers = #tpu.dot_dimension_numbers<[1], [1], [0], [0], [0, 0, 1, 0], [], []>} : vector<64x32xf32>, vector<32x32xf32>, vector<64x32xf32> -> vector<64x32xf32>
    %463 = arith.addf %462, %108 : vector<64x32xf32>
    %cst_142 = arith.constant dense<0xFF800000> : vector<64xf32>
    %464 = vector.multi_reduction <maximumf>, %463, %cst_142 [1] : vector<64x32xf32> to vector<64xf32>
    %465 = vector.shape_cast %464 : vector<64xf32> to vector<64x1xf32>
    %466 = vector.broadcast %465 : vector<64x1xf32> to vector<64x32xf32>
    %467 = arith.subf %463, %466 : vector<64x32xf32>
    %468 = math.exp %467 : vector<64x32xf32>
    %cst_143 = arith.constant dense<0.000000e+00> : vector<64xf32>
    %469 = vector.multi_reduction <add>, %468, %cst_143 [1] : vector<64x32xf32> to vector<64xf32>
    %470 = vector.shape_cast %469 : vector<64xf32> to vector<64x1xf32>
    %471 = vector.broadcast %470 : vector<64x1xf32> to vector<64x32xf32>
    %472 = arith.divf %468, %471 : vector<64x32xf32>
    %cst_144 = arith.constant dense<0.000000e+00> : vector<64x32xf32>
    %473 = tpu.matmul %472, %141, %cst_144 {dimension_numbers = #tpu.dot_dimension_numbers<[1], [0], [0], [1], [0, 0, 1, 1], [], []>} : vector<64x32xf32>, vector<32x32xf32>, vector<64x32xf32> -> vector<64x32xf32>
    %474 = vector.extract_strided_slice %473 {offsets = [0, 0], sizes = [16, 32], strides = [1, 1]} : vector<64x32xf32> to vector<16x32xf32>
    %475 = vector.broadcast %8 : vector<1x32xf32> to vector<16x32xf32>
    %476 = arith.mulf %474, %475 : vector<16x32xf32>
    %477 = vector.extract_strided_slice %473 {offsets = [16, 0], sizes = [16, 32], strides = [1, 1]} : vector<64x32xf32> to vector<16x32xf32>
    %478 = vector.broadcast %16 : vector<1x32xf32> to vector<16x32xf32>
    %479 = arith.mulf %477, %478 : vector<16x32xf32>
    %480 = arith.addf %476, %479 : vector<16x32xf32>
    %481 = vector.extract_strided_slice %473 {offsets = [32, 0], sizes = [16, 32], strides = [1, 1]} : vector<64x32xf32> to vector<16x32xf32>
    %482 = vector.broadcast %24 : vector<1x32xf32> to vector<16x32xf32>
    %483 = arith.mulf %481, %482 : vector<16x32xf32>
    %484 = arith.addf %480, %483 : vector<16x32xf32>
    %485 = vector.extract_strided_slice %473 {offsets = [48, 0], sizes = [16, 32], strides = [1, 1]} : vector<64x32xf32> to vector<16x32xf32>
    %486 = vector.broadcast %32 : vector<1x32xf32> to vector<16x32xf32>
    %487 = arith.mulf %485, %486 : vector<16x32xf32>
    %488 = arith.addf %484, %487 : vector<16x32xf32>
    %c576 = arith.constant 576 : index
    %c0_145 = arith.constant 0 : index
    %489 = vector.load %arg4[%c576, %c0_145] : memref<704x64xf32, #tpu.memory_space<vmem>>, vector<32x64xf32>
    %490 = vector.extract_strided_slice %489 {offsets = [0, 0], sizes = [32, 32], strides = [1, 1]} : vector<32x64xf32> to vector<32x32xf32>
    %cst_146 = arith.constant dense<0.000000e+00> : vector<16x32xf32>
    %491 = tpu.matmul %488, %490, %cst_146 {dimension_numbers = #tpu.dot_dimension_numbers<[1], [0], [0], [1], [0, 0, 1, 1], [], []>} : vector<16x32xf32>, vector<32x32xf32>, vector<16x32xf32> -> vector<16x32xf32>
    %c23 = arith.constant 23 : index
    %c0_147 = arith.constant 0 : index
    %492 = vector.load %arg5[%c23, %c0_147] : memref<40x64xf32, #tpu.memory_space<vmem>>, vector<1x64xf32>
    %493 = vector.extract_strided_slice %492 {offsets = [0, 0], sizes = [1, 32], strides = [1, 1]} : vector<1x64xf32> to vector<1x32xf32>
    %494 = vector.broadcast %493 : vector<1x32xf32> to vector<16x32xf32>
    %495 = arith.addf %491, %494 : vector<16x32xf32>
    %496 = arith.addf %442, %495 : vector<16x32xf32>
    %c28 = arith.constant 28 : index
    %c0_148 = arith.constant 0 : index
    %497 = vector.load %arg5[%c28, %c0_148] : memref<40x64xf32, #tpu.memory_space<vmem>>, vector<1x64xf32>
    %498 = vector.extract_strided_slice %497 {offsets = [0, 0], sizes = [1, 32], strides = [1, 1]} : vector<1x64xf32> to vector<1x32xf32>
    %c29 = arith.constant 29 : index
    %c0_149 = arith.constant 0 : index
    %499 = vector.load %arg5[%c29, %c0_149] : memref<40x64xf32, #tpu.memory_space<vmem>>, vector<1x64xf32>
    %500 = vector.extract_strided_slice %499 {offsets = [0, 0], sizes = [1, 32], strides = [1, 1]} : vector<1x64xf32> to vector<1x32xf32>
    %cst_150 = arith.constant dense<0.000000e+00> : vector<16xf32>
    %501 = vector.multi_reduction <add>, %496, %cst_150 [1] : vector<16x32xf32> to vector<16xf32>
    %502 = vector.shape_cast %501 : vector<16xf32> to vector<16x1xf32>
    %cst_151 = arith.constant 3.200000e+01 : f32
    %503 = vector.broadcast %cst_151 : f32 to vector<16x1xf32>
    %504 = arith.divf %502, %503 : vector<16x1xf32>
    %505 = vector.broadcast %504 : vector<16x1xf32> to vector<16x32xf32>
    %506 = arith.subf %496, %505 : vector<16x32xf32>
    %507 = arith.mulf %506, %506 : vector<16x32xf32>
    %cst_152 = arith.constant dense<0.000000e+00> : vector<16xf32>
    %508 = vector.multi_reduction <add>, %507, %cst_152 [1] : vector<16x32xf32> to vector<16xf32>
    %509 = vector.shape_cast %508 : vector<16xf32> to vector<16x1xf32>
    %cst_153 = arith.constant 3.200000e+01 : f32
    %510 = vector.broadcast %cst_153 : f32 to vector<16x1xf32>
    %511 = arith.divf %509, %510 : vector<16x1xf32>
    %cst_154 = arith.constant 9.99999974E-6 : f32
    %512 = vector.broadcast %cst_154 : f32 to vector<16x1xf32>
    %513 = arith.addf %511, %512 : vector<16x1xf32>
    %514 = math.rsqrt %513 : vector<16x1xf32>
    %515 = vector.broadcast %514 : vector<16x1xf32> to vector<16x32xf32>
    %516 = arith.mulf %506, %515 : vector<16x32xf32>
    %517 = vector.broadcast %498 : vector<1x32xf32> to vector<16x32xf32>
    %518 = arith.mulf %516, %517 : vector<16x32xf32>
    %519 = vector.broadcast %500 : vector<1x32xf32> to vector<16x32xf32>
    %520 = arith.addf %518, %519 : vector<16x32xf32>
    %c608 = arith.constant 608 : index
    %c0_155 = arith.constant 0 : index
    %521 = vector.load %arg4[%c608, %c0_155] : memref<704x64xf32, #tpu.memory_space<vmem>>, vector<32x64xf32>
    %cst_156 = arith.constant dense<0.000000e+00> : vector<16x64xf32>
    %522 = tpu.matmul %520, %521, %cst_156 {dimension_numbers = #tpu.dot_dimension_numbers<[1], [0], [0], [1], [0, 0, 1, 1], [], []>} : vector<16x32xf32>, vector<32x64xf32>, vector<16x64xf32> -> vector<16x64xf32>
    %c24 = arith.constant 24 : index
    %c0_157 = arith.constant 0 : index
    %523 = vector.load %arg5[%c24, %c0_157] : memref<40x64xf32, #tpu.memory_space<vmem>>, vector<1x64xf32>
    %524 = vector.broadcast %523 : vector<1x64xf32> to vector<16x64xf32>
    %525 = arith.addf %522, %524 : vector<16x64xf32>
    %cst_158 = arith.constant 0.000000e+00 : f32
    %526 = vector.broadcast %cst_158 : f32 to vector<16x64xf32>
    %527 = arith.maximumf %525, %526 : vector<16x64xf32>
    %c640 = arith.constant 640 : index
    %c0_159 = arith.constant 0 : index
    %528 = vector.load %arg4[%c640, %c0_159] : memref<704x64xf32, #tpu.memory_space<vmem>>, vector<64x64xf32>
    %529 = vector.extract_strided_slice %528 {offsets = [0, 0], sizes = [64, 32], strides = [1, 1]} : vector<64x64xf32> to vector<64x32xf32>
    %cst_160 = arith.constant dense<0.000000e+00> : vector<16x32xf32>
    %530 = tpu.matmul %527, %529, %cst_160 {dimension_numbers = #tpu.dot_dimension_numbers<[1], [0], [0], [1], [0, 0, 1, 1], [], []>} : vector<16x64xf32>, vector<64x32xf32>, vector<16x32xf32> -> vector<16x32xf32>
    %c25 = arith.constant 25 : index
    %c0_161 = arith.constant 0 : index
    %531 = vector.load %arg5[%c25, %c0_161] : memref<40x64xf32, #tpu.memory_space<vmem>>, vector<1x64xf32>
    %532 = vector.extract_strided_slice %531 {offsets = [0, 0], sizes = [1, 32], strides = [1, 1]} : vector<1x64xf32> to vector<1x32xf32>
    %533 = vector.broadcast %532 : vector<1x32xf32> to vector<16x32xf32>
    %534 = arith.addf %530, %533 : vector<16x32xf32>
    %535 = arith.addf %520, %534 : vector<16x32xf32>
    %c30 = arith.constant 30 : index
    %c0_162 = arith.constant 0 : index
    %536 = vector.load %arg5[%c30, %c0_162] : memref<40x64xf32, #tpu.memory_space<vmem>>, vector<1x64xf32>
    %537 = vector.extract_strided_slice %536 {offsets = [0, 0], sizes = [1, 32], strides = [1, 1]} : vector<1x64xf32> to vector<1x32xf32>
    %c31 = arith.constant 31 : index
    %c0_163 = arith.constant 0 : index
    %538 = vector.load %arg5[%c31, %c0_163] : memref<40x64xf32, #tpu.memory_space<vmem>>, vector<1x64xf32>
    %539 = vector.extract_strided_slice %538 {offsets = [0, 0], sizes = [1, 32], strides = [1, 1]} : vector<1x64xf32> to vector<1x32xf32>
    %cst_164 = arith.constant dense<0.000000e+00> : vector<16xf32>
    %540 = vector.multi_reduction <add>, %535, %cst_164 [1] : vector<16x32xf32> to vector<16xf32>
    %541 = vector.shape_cast %540 : vector<16xf32> to vector<16x1xf32>
    %cst_165 = arith.constant 3.200000e+01 : f32
    %542 = vector.broadcast %cst_165 : f32 to vector<16x1xf32>
    %543 = arith.divf %541, %542 : vector<16x1xf32>
    %544 = vector.broadcast %543 : vector<16x1xf32> to vector<16x32xf32>
    %545 = arith.subf %535, %544 : vector<16x32xf32>
    %546 = arith.mulf %545, %545 : vector<16x32xf32>
    %cst_166 = arith.constant dense<0.000000e+00> : vector<16xf32>
    %547 = vector.multi_reduction <add>, %546, %cst_166 [1] : vector<16x32xf32> to vector<16xf32>
    %548 = vector.shape_cast %547 : vector<16xf32> to vector<16x1xf32>
    %cst_167 = arith.constant 3.200000e+01 : f32
    %549 = vector.broadcast %cst_167 : f32 to vector<16x1xf32>
    %550 = arith.divf %548, %549 : vector<16x1xf32>
    %cst_168 = arith.constant 9.99999974E-6 : f32
    %551 = vector.broadcast %cst_168 : f32 to vector<16x1xf32>
    %552 = arith.addf %550, %551 : vector<16x1xf32>
    %553 = math.rsqrt %552 : vector<16x1xf32>
    %554 = vector.broadcast %553 : vector<16x1xf32> to vector<16x32xf32>
    %555 = arith.mulf %545, %554 : vector<16x32xf32>
    %556 = vector.broadcast %537 : vector<1x32xf32> to vector<16x32xf32>
    %557 = arith.mulf %555, %556 : vector<16x32xf32>
    %558 = vector.broadcast %539 : vector<1x32xf32> to vector<16x32xf32>
    %559 = arith.addf %557, %558 : vector<16x32xf32>
    %c32_169 = arith.constant 32 : index
    %c0_170 = arith.constant 0 : index
    %560 = vector.load %arg5[%c32_169, %c0_170] : memref<40x64xf32, #tpu.memory_space<vmem>>, vector<1x64xf32>
    %561 = vector.extract_strided_slice %560 {offsets = [0, 0], sizes = [1, 32], strides = [1, 1]} : vector<1x64xf32> to vector<1x32xf32>
    %c33 = arith.constant 33 : index
    %c0_171 = arith.constant 0 : index
    %562 = vector.load %arg5[%c33, %c0_171] : memref<40x64xf32, #tpu.memory_space<vmem>>, vector<1x64xf32>
    %563 = vector.extract_strided_slice %562 {offsets = [0, 0], sizes = [1, 32], strides = [1, 1]} : vector<1x64xf32> to vector<1x32xf32>
    %cst_172 = arith.constant dense<0.000000e+00> : vector<16xf32>
    %564 = vector.multi_reduction <add>, %559, %cst_172 [1] : vector<16x32xf32> to vector<16xf32>
    %565 = vector.shape_cast %564 : vector<16xf32> to vector<16x1xf32>
    %cst_173 = arith.constant 3.200000e+01 : f32
    %566 = vector.broadcast %cst_173 : f32 to vector<16x1xf32>
    %567 = arith.divf %565, %566 : vector<16x1xf32>
    %568 = vector.broadcast %567 : vector<16x1xf32> to vector<16x32xf32>
    %569 = arith.subf %559, %568 : vector<16x32xf32>
    %570 = arith.mulf %569, %569 : vector<16x32xf32>
    %cst_174 = arith.constant dense<0.000000e+00> : vector<16xf32>
    %571 = vector.multi_reduction <add>, %570, %cst_174 [1] : vector<16x32xf32> to vector<16xf32>
    %572 = vector.shape_cast %571 : vector<16xf32> to vector<16x1xf32>
    %cst_175 = arith.constant 3.200000e+01 : f32
    %573 = vector.broadcast %cst_175 : f32 to vector<16x1xf32>
    %574 = arith.divf %572, %573 : vector<16x1xf32>
    %cst_176 = arith.constant 9.99999974E-6 : f32
    %575 = vector.broadcast %cst_176 : f32 to vector<16x1xf32>
    %576 = arith.addf %574, %575 : vector<16x1xf32>
    %577 = math.rsqrt %576 : vector<16x1xf32>
    %578 = vector.broadcast %577 : vector<16x1xf32> to vector<16x32xf32>
    %579 = arith.mulf %569, %578 : vector<16x32xf32>
    %580 = vector.broadcast %561 : vector<1x32xf32> to vector<16x32xf32>
    %581 = arith.mulf %579, %580 : vector<16x32xf32>
    %582 = vector.broadcast %563 : vector<1x32xf32> to vector<16x32xf32>
    %583 = arith.addf %581, %582 : vector<16x32xf32>
    %c0_177 = arith.constant 0 : index
    %c0_178 = arith.constant 0 : index
    %584 = vector.load %arg6[%c0_177, %c0_178] : memref<16x32xf32, #tpu.memory_space<vmem>>, vector<16x32xf32>
    tpu.vector_store %arg6[%c0_177, %c0_178], %583 {strides = array<i32>} : memref<16x32xf32, #tpu.memory_space<vmem>>, vector<16x32xf32>,
    return
  }
}

</mosaic_0001>

<llo_original>
// kernel: transformer_decoder.1
$region0: #{transformer_decoder.1}
  #allocation0 [shape = 'u32[]', space=smem, size = 0x4, offset = 0x4, fixed_abs, tag = 'smem constant byte address 0x4 - core index']
  #allocation1 [shape = 'u32[144,128]{1,0:T(1,128)}', space=vmem, size = 0x12000, scoped, tag = 'internal scratch']
  %s0 = inlined_call_operand.vmem [shape: f32[16,32], index: 0, kind: input, shape index: {}]
  %s1 = inlined_call_operand.vmem [shape: f32[32,32], index: 1, kind: input, shape index: {}]
  %s2 = inlined_call_operand.vmem [shape: f32[16,32], index: 2, kind: input, shape index: {}]
  %s3 = inlined_call_operand.vmem [shape: f32[32,32], index: 3, kind: input, shape index: {}]
  %s4 = inlined_call_operand.vmem [shape: f32[704,64], index: 4, kind: input, shape index: {}]
  %s5 = inlined_call_operand.vmem [shape: f32[40,64], index: 5, kind: input, shape index: {}]
  %s6 = inlined_call_operand.hbm [shape: f32[16,32], index: 6, kind: output, shape index: {}]
  %s7 = sld [smem:[#allocation0]]
  $region34: #{transformer_decoder.1} parent=0
    _
  %s9 = ssub.s32 1, %s7
  %s10 = scalar_select 0, %s9, %s7
  $region1: #{transformer_decoder.1} parent=0
    #allocation2 [shape = 'u8[8192]{0}', space=vmem, size = 0x2000, scoped, tag = 'output window, operand 0, single buffered']
    #allocation3 [shape = 's32[1]{0}', space=sflag, size = 0x4, scoped, tag = 'scoped memory for transformer_decoder.1']
    %11 = vsyncpa [#allocation3], 0
    // Predicated region
    $region2: #{transformer_decoder.1} parent=1 // pred_check
      _
    $region3: #{transformer_decoder.1} parent=1 // pred_check_branch
      %13 = sbr.rel (0) target = $region5
    $region4: #{transformer_decoder.1} parent=1 // pred_region
      _
    $region5: #{transformer_decoder.1} parent=1 // pred_fallthru
      _
    // Predicated region
    $region6: #{transformer_decoder.1} parent=1 // pred_check
      _
    $region7: #{transformer_decoder.1} parent=1 // pred_check_branch
      %15 = sbr.rel (0) target = $region9
    $region8: #{transformer_decoder.1} parent=1 // pred_region
      _
    $region9: #{transformer_decoder.1} parent=1 // pred_fallthru
      _
    // Predicated region
    $region10: #{transformer_decoder.1} parent=1 // pred_check
      _
    $region11: #{transformer_decoder.1} parent=1 // pred_check_branch
      %17 = sbr.rel (0) target = $region13
    $region12: #{transformer_decoder.1} parent=1 // pred_region
      _
    $region13: #{transformer_decoder.1} parent=1 // pred_fallthru
      _
    // Predicated region
    $region14: #{transformer_decoder.1} parent=1 // pred_check
      _
    $region15: #{transformer_decoder.1} parent=1 // pred_check_branch
      %19 = sbr.rel (0) target = $region17
    $region16: #{transformer_decoder.1} parent=1 // pred_region
      _
    $region17: #{transformer_decoder.1} parent=1 // pred_fallthru
      _
    // Predicated region
    $region18: #{transformer_decoder.1} parent=1 // pred_check
      _
    $region19: #{transformer_decoder.1} parent=1 // pred_check_branch
      %21 = sbr.rel (0) target = $region21
    $region20: #{transformer_decoder.1} parent=1 // pred_region
      _
    $region21: #{transformer_decoder.1} parent=1 // pred_fallthru
      _
    // Predicated region
    $region22: #{transformer_decoder.1} parent=1 // pred_check
      _
    $region23: #{transformer_decoder.1} parent=1 // pred_check_branch
      %23 = sbr.rel (0) target = $region25
    $region24: #{transformer_decoder.1} parent=1 // pred_region
      _
    $region25: #{transformer_decoder.1} parent=1 // pred_fallthru
      _
    %v24 = vlaneseq
    %v25 = vand.u32 %v24, 127
    %vm26 = vcmp.ge.s32.totalorder %v25, 0
    %vm27 = vcmp.lt.s32.totalorder %v25, 8
    %vm28 = vmand %vm26, %vm27
    %v29 = vsel %vm28, 1.0, 0.0
    %vm30 = vcmp.ge.s32.totalorder %v25, 8
    %vm31 = vcmp.lt.s32.totalorder %v25, 16
    %vm32 = vmand %vm30, %vm31
    %v33 = vsel %vm32, 1.0, 0.0
    %vm34 = vcmp.ge.s32.totalorder %v25, 16
    %vm35 = vcmp.lt.s32.totalorder %v25, 24
    %vm36 = vmand %vm34, %vm35
    %v37 = vsel %vm36, 1.0, 0.0
    %vm38 = vcmp.ge.s32.totalorder %v25, 24
    %vm39 = vcmp.lt.s32.totalorder %v25, 32
    %vm40 = vmand %vm38, %vm39
    %v41 = vsel %vm40, 1.0, 0.0
    %v42 = vlaneseq
    %v43 = vshrl.u32 %v42, 7
    %v44 = vadd.s32 %v43, 8
    %v45 = vadd.s32 %v43, 16
    %v46 = vadd.s32 %v43, 24
    %v47 = vadd.s32 %v43, 32
    %v48 = vadd.s32 %v43, 40
    %v49 = vadd.s32 %v43, 48
    %v50 = vadd.s32 %v43, 56
    %vm51 = vcmp.lt.s32.totalorder %v43, 0
    %v52 = vsub.s32 0, %v43
    %v53 = vsel %vm51, %v52, %v43
    %v54 = vshrl.u32 %v53, 1
    %v55 = vand.u32 %v53, 1
    %v56 = vsub.s32 0, %v55
    %v57 = vsel %vm51, %v56, %v55
    %vm58 = vcmp.lt.s32.totalorder %v44, 0
    %v59 = vsub.s32 0, %v44
    %v60 = vsel %vm58, %v59, %v44
    %v61 = vshrl.u32 %v60, 1
    %v62 = vand.u32 %v60, 1
    %v63 = vsub.s32 0, %v62
    %v64 = vsel %vm58, %v63, %v62
    %vm65 = vcmp.lt.s32.totalorder %v45, 0
    %v66 = vsub.s32 0, %v45
    %v67 = vsel %vm65, %v66, %v45
    %v68 = vshrl.u32 %v67, 1
    %v69 = vand.u32 %v67, 1
    %v70 = vsub.s32 0, %v69
    %v71 = vsel %vm65, %v70, %v69
    %vm72 = vcmp.lt.s32.totalorder %v46, 0
    %v73 = vsub.s32 0, %v46
    %v74 = vsel %vm72, %v73, %v46
    %v75 = vshrl.u32 %v74, 1
    %v76 = vand.u32 %v74, 1
    %v77 = vsub.s32 0, %v76
    %v78 = vsel %vm72, %v77, %v76
    %vm79 = vcmp.lt.s32.totalorder %v47, 0
    %v80 = vsub.s32 0, %v47
    %v81 = vsel %vm79, %v80, %v47
    %v82 = vshrl.u32 %v81, 1
    %v83 = vand.u32 %v81, 1
    %v84 = vsub.s32 0, %v83
    %v85 = vsel %vm79, %v84, %v83
    %vm86 = vcmp.lt.s32.totalorder %v48, 0
    %v87 = vsub.s32 0, %v48
    %v88 = vsel %vm86, %v87, %v48
    %v89 = vshrl.u32 %v88, 1
    %v90 = vand.u32 %v88, 1
    %v91 = vsub.s32 0, %v90
    %v92 = vsel %vm86, %v91, %v90
    %vm93 = vcmp.lt.s32.totalorder %v49, 0
    %v94 = vsub.s32 0, %v49
    %v95 = vsel %vm93, %v94, %v49
    %v96 = vshrl.u32 %v95, 1
    %v97 = vand.u32 %v95, 1
    %v98 = vsub.s32 0, %v97
    %v99 = vsel %vm93, %v98, %v97
    %vm100 = vcmp.lt.s32.totalorder %v50, 0
    %v101 = vsub.s32 0, %v50
    %v102 = vsel %vm100, %v101, %v50
    %v103 = vshrl.u32 %v102, 1
    %v104 = vand.u32 %v102, 1
    %v105 = vsub.s32 0, %v104
    %v106 = vsel %vm100, %v105, %v104
    %vm107 = vcmp.ne.s32.totalorder %v57, 0
    %vm108 = vcmp.ne.s32.totalorder %v64, 0
    %vm109 = vcmp.ne.s32.totalorder %v71, 0
    %vm110 = vcmp.ne.s32.totalorder %v78, 0
    %vm111 = vcmp.ne.s32.totalorder %v85, 0
    %vm112 = vcmp.ne.s32.totalorder %v92, 0
    %vm113 = vcmp.ne.s32.totalorder %v99, 0
    %vm114 = vcmp.ne.s32.totalorder %v106, 0
    %vm115 = vcmp.lt.s32.totalorder %v57, 0
    %vm116 = vcmp.lt.s32.totalorder %v64, 0
    %vm117 = vcmp.lt.s32.totalorder %v71, 0
    %vm118 = vcmp.lt.s32.totalorder %v78, 0
    %vm119 = vcmp.lt.s32.totalorder %v85, 0
    %vm120 = vcmp.lt.s32.totalorder %v92, 0
    %vm121 = vcmp.lt.s32.totalorder %v99, 0
    %vm122 = vcmp.lt.s32.totalorder %v106, 0
    %vm123 = vmand %vm115, %vm107
    %vm124 = vmand %vm116, %vm108
    %vm125 = vmand %vm117, %vm109
    %vm126 = vmand %vm118, %vm110
    %vm127 = vmand %vm119, %vm111
    %vm128 = vmand %vm120, %vm112
    %vm129 = vmand %vm121, %vm113
    %vm130 = vmand %vm122, %vm114
    %v131 = vadd.s32 %v57, 2
    %v132 = vadd.s32 %v64, 2
    %v133 = vadd.s32 %v71, 2
    %v134 = vadd.s32 %v78, 2
    %v135 = vadd.s32 %v85, 2
    %v136 = vadd.s32 %v92, 2
    %v137 = vadd.s32 %v99, 2
    %v138 = vadd.s32 %v106, 2
    %v139 = vsel %vm123, %v131, %v57
    %v140 = vsel %vm124, %v132, %v64
    %v141 = vsel %vm125, %v133, %v71
    %v142 = vsel %vm126, %v134, %v78
    %v143 = vsel %vm127, %v135, %v85
    %v144 = vsel %vm128, %v136, %v92
    %v145 = vsel %vm129, %v137, %v99
    %v146 = vsel %vm130, %v138, %v106
    %vm147 = vcmp.lt.s32.totalorder %v25, 0
    %v148 = vsub.s32 0, %v25
    %v149 = vsel %vm147, %v148, %v25
    %v150 = vshrl.u32 %v149, 1
    %v151 = vand.u32 %v149, 1
    %v152 = vsub.s32 0, %v151
    %v153 = vsel %vm147, %v152, %v151
    %vm154 = vcmp.ne.s32.totalorder %v153, 0
    %vm155 = vcmp.lt.s32.totalorder %v153, 0
    %vm156 = vmand %vm155, %vm154
    %v157 = vadd.s32 %v153, 2
    %v158 = vsel %vm156, %v157, %v153
    %vm159 = vcmp.eq.s32.totalorder %v139, %v158
    %vm160 = vcmp.eq.s32.totalorder %v140, %v158
    %vm161 = vcmp.eq.s32.totalorder %v141, %v158
    %vm162 = vcmp.eq.s32.totalorder %v142, %v158
    %vm163 = vcmp.eq.s32.totalorder %v143, %v158
    %vm164 = vcmp.eq.s32.totalorder %v144, %v158
    %vm165 = vcmp.eq.s32.totalorder %v145, %v158
    %vm166 = vcmp.eq.s32.totalorder %v146, %v158
    %v167 = vsel %vm159, 0.0, -1e+09
    %v168 = vsel %vm160, 0.0, -1e+09
    %v169 = vsel %vm161, 0.0, -1e+09
    %v170 = vsel %vm162, 0.0, -1e+09
    %v171 = vsel %vm163, 0.0, -1e+09
    %v172 = vsel %vm164, 0.0, -1e+09
    %v173 = vsel %vm165, 0.0, -1e+09
    %v174 = vsel %vm166, 0.0, -1e+09
    %v175 = vld [vmem:[%s0] sm:$0xff]
    %v176 = vld [vmem:[%s0 + $0x8] sm:$0xff]
    %v177 = vld [vmem:[%s1] sm:$0xff]
    %v178 = vld [vmem:[%s1 + $0x8] sm:$0xff]
    %v179 = vld [vmem:[%s1 + $0x10] sm:$0xff]
    %v180 = vld [vmem:[%s1 + $0x18] sm:$0xff]
    %v181 = vld [vmem:[%s2] sm:$0xff]
    %v182 = vld [vmem:[%s2 + $0x8] sm:$0xff]
    %v183 = vld [vmem:[%s3] sm:$0xff]
    %v184 = vld [vmem:[%s3 + $0x8] sm:$0xff]
    %v185 = vld [vmem:[%s3 + $0x10] sm:$0xff]
    %v186 = vld [vmem:[%s3 + $0x18] sm:$0xff]
    %v187 = vadd.f32 %v177, %v183
    %v188 = vadd.f32 %v178, %v184
    %v189 = vadd.f32 %v179, %v185
    %v190 = vadd.f32 %v180, %v186
    %v191 = vld [vmem:[%s4 + $0xa0] sm:$0xff]
    %v192 = vld [vmem:[%s4 + $0xa8] sm:$0xff]
    %v193 = vld [vmem:[%s4 + $0xb0] sm:$0xff]
    %v194 = vld [vmem:[%s4 + $0xb8] sm:$0xff]
    %v195 = vld [vmem:[%s5 + $0x5] sm:$0x1]
    %v196 = vlaneseq
    %v197 = vshrl.u32 %v196, 7
    %v198 = vsub.s32 0, %v197
    %v199 = vrot.slane %v195, %v198
    %vm200 = vcmask 261120
    %v202 = vsel %vm200, %v187, 0
    %v205 = vsel %vm200, %v188, 0
    %v208 = vsel %vm200, %v189, 0
    %v211 = vsel %vm200, %v190, 0
    %213 = vmatprep.subr.mxu0 0.0
    %214 = vmatpush1.msra.mxu0 %v191
    %215 = vmatprep.subr.mxu0 0.0
    %216 = vmatpush1.msra.mxu0 %v192
    %217 = vmatprep.subr.mxu0 0.0
    %218 = vmatpush1.msra.mxu0 %v193
    %219 = vmatprep.subr.mxu0 0.0
    %220 = vmatpush1.msra.mxu0 %v194
    %221 = vmatprep.subr.mxu0 0.0
    %222 = vmatpush1.msra.mxu0 0.0
    %223 = vmatprep.subr.mxu0 0.0
    %224 = vmatpush1.msra.mxu0 0.0
    %225 = vmatprep.subr.mxu0 0.0
    %226 = vmatpush1.msra.mxu0 0.0
    %227 = vmatprep.subr.mxu0 0.0
    %228 = vmatpush1.msra.mxu0 0.0
    %229 = vmatprep.subr.mxu0 0.0
    %230 = vmatpush1.msra.mxu0 0.0
    %231 = vmatprep.subr.mxu0 0.0
    %232 = vmatpush1.msra.mxu0 0.0
    %233 = vmatprep.subr.mxu0 0.0
    %234 = vmatpush1.msra.mxu0 0.0
    %235 = vmatprep.subr.mxu0 0.0
    %236 = vmatpush1.msra.mxu0 0.0
    %237 = vmatprep.subr.mxu0 0.0
    %238 = vmatpush1.msra.mxu0 0.0
    %239 = vmatprep.subr.mxu0 0.0
    %240 = vmatpush1.msra.mxu0 0.0
    %241 = vmatprep.subr.mxu0 0.0
    %242 = vmatpush1.msra.mxu0 0.0
    %243 = vmatprep.subr.mxu0 0.0
    %244 = vmatpush1.msra.mxu0 0.0
    %245 = vmatprep.subr.mxu0 0.0
    %246 = vmatpush1.msra.mxu0 0.0
    %247 = vmatprep.subr.mxu0 0.0
    %248 = vmatpush1.msra.mxu0 0.0
    %249 = vmatprep.subr.mxu0 0.0
    %250 = vmatpush1.msra.mxu0 0.0
    %251 = vmatprep.subr.mxu0 0.0
    %252 = vmatpush1.msra.mxu0 0.0
    %253 = vmatprep.subr.mxu0 0.0
    %254 = vmatpush1.msra.mxu0 0.0
    %255 = vmatprep.subr.mxu0 0.0
    %256 = vmatpush1.msra.mxu0 0.0
    %257 = vmatprep.subr.mxu0 0.0
    %258 = vmatpush1.msra.mxu0 0.0
    %259 = vmatprep.subr.mxu0 0.0
    %260 = vmatpush1.msra.mxu0 0.0
    %261 = vmatprep.subr.mxu0 0.0
    %262 = vmatpush1.msra.mxu0 0.0
    %263 = vmatprep.subr.mxu0 0.0
    %264 = vmatpush1.msra.mxu0 0.0
    %265 = vmatprep.subr.mxu0 0.0
    %266 = vmatpush1.msra.mxu0 0.0
    %267 = vmatprep.subr.mxu0 0.0
    %268 = vmatpush1.msra.mxu0 0.0
    %269 = vmatprep.subr.mxu0 0.0
    %270 = vmatpush1.msra.mxu0 0.0
    %271 = vmatprep.subr.mxu0 0.0
    %272 = vmatpush1.msra.mxu0 0.0
    %273 = vmatprep.subr.mxu0 0.0
    %274 = vmatpush1.msra.mxu0 0.0
    %275 = vmatprep.subr.mxu0 0.0
    %276 = vmatpush1.msra.mxu0 0.0
    %277 = vmatprep.mubr.f32.mxu0 0.0
    %278 = vmatmul.mubr.f32.gmra.mrb[0].mxu0 %v202
    %v279 = vpop.f32.mrb[0].mxu0
    %v280 = vadd.f32 %v199, %v279
    %v281 = vpop.f32.mrb[0].mxu0
    %282 = vmatprep.mubr.f32.mxu0 0.0
    %283 = vmatmul.mubr.f32.gmra.mrb[0].mxu0 %v205
    %v284 = vpop.f32.mrb[0].mxu0
    %v285 = vadd.f32 %v199, %v284
    %v286 = vpop.f32.mrb[0].mxu0
    %287 = vmatprep.mubr.f32.mxu0 0.0
    %288 = vmatmul.mubr.f32.gmra.mrb[0].mxu0 %v208
    %v289 = vpop.f32.mrb[0].mxu0
    %v290 = vadd.f32 %v199, %v289
    %v291 = vpop.f32.mrb[0].mxu0
    %292 = vmatprep.mubr.f32.mxu0 0.0
    %293 = vmatmul.mubr.f32.gmra.mrb[0].mxu0 %v211
    %v294 = vpop.f32.mrb[0].mxu0
    %v295 = vadd.f32 %v199, %v294
    %v296 = vpop.f32.mrb[0].mxu0
    %297 = vdwg.mxu0
    %v298 = vld [vmem:[%s4 + $0xc0] sm:$0xff]
    %v299 = vld [vmem:[%s4 + $0xc8] sm:$0xff]
    %v300 = vld [vmem:[%s4 + $0xd0] sm:$0xff]
    %v301 = vld [vmem:[%s4 + $0xd8] sm:$0xff]
    %v302 = vld [vmem:[%s5 + $0x6] sm:$0x1]
    %v303 = vlaneseq
    %v304 = vshrl.u32 %v303, 7
    %v305 = vsub.s32 0, %v304
    %v306 = vrot.slane %v302, %v305
    %v308 = vsel %vm200, %v177, 0
    %v311 = vsel %vm200, %v178, 0
    %v314 = vsel %vm200, %v179, 0
    %v317 = vsel %vm200, %v180, 0
    %319 = vmatprep.subr.mxu0 0.0
    %320 = vmatpush1.msra.mxu0 %v298
    %321 = vmatprep.subr.mxu0 0.0
    %322 = vmatpush1.msra.mxu0 %v299
    %323 = vmatprep.subr.mxu0 0.0
    %324 = vmatpush1.msra.mxu0 %v300
    %325 = vmatprep.subr.mxu0 0.0
    %326 = vmatpush1.msra.mxu0 %v301
    %327 = vmatprep.subr.mxu0 0.0
    %328 = vmatpush1.msra.mxu0 0.0
    %329 = vmatprep.subr.mxu0 0.0
    %330 = vmatpush1.msra.mxu0 0.0
    %331 = vmatprep.subr.mxu0 0.0
    %332 = vmatpush1.msra.mxu0 0.0
    %333 = vmatprep.subr.mxu0 0.0
    %334 = vmatpush1.msra.mxu0 0.0
    %335 = vmatprep.subr.mxu0 0.0
    %336 = vmatpush1.msra.mxu0 0.0
    %337 = vmatprep.subr.mxu0 0.0
    %338 = vmatpush1.msra.mxu0 0.0
    %339 = vmatprep.subr.mxu0 0.0
    %340 = vmatpush1.msra.mxu0 0.0
    %341 = vmatprep.subr.mxu0 0.0
    %342 = vmatpush1.msra.mxu0 0.0
    %343 = vmatprep.subr.mxu0 0.0
    %344 = vmatpush1.msra.mxu0 0.0
    %345 = vmatprep.subr.mxu0 0.0
    %346 = vmatpush1.msra.mxu0 0.0
    %347 = vmatprep.subr.mxu0 0.0
    %348 = vmatpush1.msra.mxu0 0.0
    %349 = vmatprep.subr.mxu0 0.0
    %350 = vmatpush1.msra.mxu0 0.0
    %351 = vmatprep.subr.mxu0 0.0
    %352 = vmatpush1.msra.mxu0 0.0
    %353 = vmatprep.subr.mxu0 0.0
    %354 = vmatpush1.msra.mxu0 0.0
    %355 = vmatprep.subr.mxu0 0.0
    %356 = vmatpush1.msra.mxu0 0.0
    %357 = vmatprep.subr.mxu0 0.0
    %358 = vmatpush1.msra.mxu0 0.0
    %359 = vmatprep.subr.mxu0 0.0
    %360 = vmatpush1.msra.mxu0 0.0
    %361 = vmatprep.subr.mxu0 0.0
    %362 = vmatpush1.msra.mxu0 0.0
    %363 = vmatprep.subr.mxu0 0.0
    %364 = vmatpush1.msra.mxu0 0.0
    %365 = vmatprep.subr.mxu0 0.0
    %366 = vmatpush1.msra.mxu0 0.0
    %367 = vmatprep.subr.mxu0 0.0
    %368 = vmatpush1.msra.mxu0 0.0
    %369 = vmatprep.subr.mxu0 0.0
    %370 = vmatpush1.msra.mxu0 0.0
    %371 = vmatprep.subr.mxu0 0.0
    %372 = vmatpush1.msra.mxu0 0.0
    %373 = vmatprep.subr.mxu0 0.0
    %374 = vmatpush1.msra.mxu0 0.0
    %375 = vmatprep.subr.mxu0 0.0
    %376 = vmatpush1.msra.mxu0 0.0
    %377 = vmatprep.subr.mxu0 0.0
    %378 = vmatpush1.msra.mxu0 0.0
    %379 = vmatprep.subr.mxu0 0.0
    %380 = vmatpush1.msra.mxu0 0.0
    %381 = vmatprep.subr.mxu0 0.0
    %382 = vmatpush1.msra.mxu0 0.0
    %383 = vmatprep.mubr.f32.mxu0 0.0
    %384 = vmatmul.mubr.f32.gmra.mrb[0].mxu0 %v308
    %v385 = vpop.f32.mrb[0].mxu0
    %v386 = vadd.f32 %v306, %v385
    %v387 = vpop.f32.mrb[0].mxu0
    %388 = vmatprep.mubr.f32.mxu0 0.0
    %389 = vmatmul.mubr.f32.gmra.mrb[0].mxu0 %v311
    %v390 = vpop.f32.mrb[0].mxu0
    %v391 = vadd.f32 %v306, %v390
    %v392 = vpop.f32.mrb[0].mxu0
    %393 = vmatprep.mubr.f32.mxu0 0.0
    %394 = vmatmul.mubr.f32.gmra.mrb[0].mxu0 %v314
    %v395 = vpop.f32.mrb[0].mxu0
    %v396 = vadd.f32 %v306, %v395
    %v397 = vpop.f32.mrb[0].mxu0
    %398 = vmatprep.mubr.f32.mxu0 0.0
    %399 = vmatmul.mubr.f32.gmra.mrb[0].mxu0 %v317
    %v400 = vpop.f32.mrb[0].mxu0
    %v401 = vadd.f32 %v306, %v400
    %v402 = vpop.f32.mrb[0].mxu0
    %403 = vdwg.mxu0
    %v404 = vld [vmem:[%s4 + $0x200] sm:$0xff]
    %v405 = vld [vmem:[%s4 + $0x208] sm:$0xff]
    %v406 = vld [vmem:[%s4 + $0x210] sm:$0xff]
    %v407 = vld [vmem:[%s4 + $0x218] sm:$0xff]
    %v408 = vld [vmem:[%s5 + $0x15] sm:$0x1]
    %v409 = vlaneseq
    %v410 = vshrl.u32 %v409, 7
    %v411 = vsub.s32 0, %v410
    %v412 = vrot.slane %v408, %v411
    %413 = vmatprep.subr.mxu0 0.0
    %414 = vmatpush1.msra.mxu0 %v404
    %415 = vmatprep.subr.mxu0 0.0
    %416 = vmatpush1.msra.mxu0 %v405
    %417 = vmatprep.subr.mxu0 0.0
    %418 = vmatpush1.msra.mxu0 %v406
    %419 = vmatprep.subr.mxu0 0.0
    %420 = vmatpush1.msra.mxu0 %v407
    %421 = vmatprep.subr.mxu0 0.0
    %422 = vmatpush1.msra.mxu0 0.0
    %423 = vmatprep.subr.mxu0 0.0
    %424 = vmatpush1.msra.mxu0 0.0
    %425 = vmatprep.subr.mxu0 0.0
    %426 = vmatpush1.msra.mxu0 0.0
    %427 = vmatprep.subr.mxu0 0.0
    %428 = vmatpush1.msra.mxu0 0.0
    %429 = vmatprep.subr.mxu0 0.0
    %430 = vmatpush1.msra.mxu0 0.0
    %431 = vmatprep.subr.mxu0 0.0
    %432 = vmatpush1.msra.mxu0 0.0
    %433 = vmatprep.subr.mxu0 0.0
    %434 = vmatpush1.msra.mxu0 0.0
    %435 = vmatprep.subr.mxu0 0.0
    %436 = vmatpush1.msra.mxu0 0.0
    %437 = vmatprep.subr.mxu0 0.0
    %438 = vmatpush1.msra.mxu0 0.0
    %439 = vmatprep.subr.mxu0 0.0
    %440 = vmatpush1.msra.mxu0 0.0
    %441 = vmatprep.subr.mxu0 0.0
    %442 = vmatpush1.msra.mxu0 0.0
    %443 = vmatprep.subr.mxu0 0.0
    %444 = vmatpush1.msra.mxu0 0.0
    %445 = vmatprep.subr.mxu0 0.0
    %446 = vmatpush1.msra.mxu0 0.0
    %447 = vmatprep.subr.mxu0 0.0
    %448 = vmatpush1.msra.mxu0 0.0
    %449 = vmatprep.subr.mxu0 0.0
    %450 = vmatpush1.msra.mxu0 0.0
    %451 = vmatprep.subr.mxu0 0.0
    %452 = vmatpush1.msra.mxu0 0.0
    %453 = vmatprep.subr.mxu0 0.0
    %454 = vmatpush1.msra.mxu0 0.0
    %455 = vmatprep.subr.mxu0 0.0
    %456 = vmatpush1.msra.mxu0 0.0
    %457 = vmatprep.subr.mxu0 0.0
    %458 = vmatpush1.msra.mxu0 0.0
    %459 = vmatprep.subr.mxu0 0.0
    %460 = vmatpush1.msra.mxu0 0.0
    %461 = vmatprep.subr.mxu0 0.0
    %462 = vmatpush1.msra.mxu0 0.0
    %463 = vmatprep.subr.mxu0 0.0
    %464 = vmatpush1.msra.mxu0 0.0
    %465 = vmatprep.subr.mxu0 0.0
    %466 = vmatpush1.msra.mxu0 0.0
    %467 = vmatprep.subr.mxu0 0.0
    %468 = vmatpush1.msra.mxu0 0.0
    %469 = vmatprep.subr.mxu0 0.0
    %470 = vmatpush1.msra.mxu0 0.0
    %471 = vmatprep.subr.mxu0 0.0
    %472 = vmatpush1.msra.mxu0 0.0
    %473 = vmatprep.subr.mxu0 0.0
    %474 = vmatpush1.msra.mxu0 0.0
    %475 = vmatprep.subr.mxu0 0.0
    %476 = vmatpush1.msra.mxu0 0.0
    %477 = vmatprep.mubr.f32.mxu0 0.0
    %478 = vmatmul.mubr.f32.gmra.mrb[0].mxu0 %v202
    %v479 = vpop.f32.mrb[0].mxu0
    %v480 = vadd.f32 %v412, %v479
    %v481 = vpop.f32.mrb[0].mxu0
    %482 = vmatprep.mubr.f32.mxu0 0.0
    %483 = vmatmul.mubr.f32.gmra.mrb[0].mxu0 %v205
    %v484 = vpop.f32.mrb[0].mxu0
    %v485 = vadd.f32 %v412, %v484
    %v486 = vpop.f32.mrb[0].mxu0
    %487 = vmatprep.mubr.f32.mxu0 0.0
    %488 = vmatmul.mubr.f32.gmra.mrb[0].mxu0 %v208
    %v489 = vpop.f32.mrb[0].mxu0
    %v490 = vadd.f32 %v412, %v489
    %v491 = vpop.f32.mrb[0].mxu0
    %492 = vmatprep.mubr.f32.mxu0 0.0
    %493 = vmatmul.mubr.f32.gmra.mrb[0].mxu0 %v211
    %v494 = vpop.f32.mrb[0].mxu0
    %v495 = vadd.f32 %v412, %v494
    %v496 = vpop.f32.mrb[0].mxu0
    %497 = vdwg.mxu0
    %v498 = vld [vmem:[%s4 + $0x220] sm:$0xff]
    %v499 = vld [vmem:[%s4 + $0x228] sm:$0xff]
    %v500 = vld [vmem:[%s4 + $0x230] sm:$0xff]
    %v501 = vld [vmem:[%s4 + $0x238] sm:$0xff]
    %v502 = vld [vmem:[%s5 + $0x16] sm:$0x1]
    %v503 = vlaneseq
    %v504 = vshrl.u32 %v503, 7
    %v505 = vsub.s32 0, %v504
    %v506 = vrot.slane %v502, %v505
    %507 = vmatprep.subr.mxu0 0.0
    %508 = vmatpush1.msra.mxu0 %v498
    %509 = vmatprep.subr.mxu0 0.0
    %510 = vmatpush1.msra.mxu0 %v499
    %511 = vmatprep.subr.mxu0 0.0
    %512 = vmatpush1.msra.mxu0 %v500
    %513 = vmatprep.subr.mxu0 0.0
    %514 = vmatpush1.msra.mxu0 %v501
    %515 = vmatprep.subr.mxu0 0.0
    %516 = vmatpush1.msra.mxu0 0.0
    %517 = vmatprep.subr.mxu0 0.0
    %518 = vmatpush1.msra.mxu0 0.0
    %519 = vmatprep.subr.mxu0 0.0
    %520 = vmatpush1.msra.mxu0 0.0
    %521 = vmatprep.subr.mxu0 0.0
    %522 = vmatpush1.msra.mxu0 0.0
    %523 = vmatprep.subr.mxu0 0.0
    %524 = vmatpush1.msra.mxu0 0.0
    %525 = vmatprep.subr.mxu0 0.0
    %526 = vmatpush1.msra.mxu0 0.0
    %527 = vmatprep.subr.mxu0 0.0
    %528 = vmatpush1.msra.mxu0 0.0
    %529 = vmatprep.subr.mxu0 0.0
    %530 = vmatpush1.msra.mxu0 0.0
    %531 = vmatprep.subr.mxu0 0.0
    %532 = vmatpush1.msra.mxu0 0.0
    %533 = vmatprep.subr.mxu0 0.0
    %534 = vmatpush1.msra.mxu0 0.0
    %535 = vmatprep.subr.mxu0 0.0
    %536 = vmatpush1.msra.mxu0 0.0
    %537 = vmatprep.subr.mxu0 0.0
    %538 = vmatpush1.msra.mxu0 0.0
    %539 = vmatprep.subr.mxu0 0.0
    %540 = vmatpush1.msra.mxu0 0.0
    %541 = vmatprep.subr.mxu0 0.0
    %542 = vmatpush1.msra.mxu0 0.0
    %543 = vmatprep.subr.mxu0 0.0
    %544 = vmatpush1.msra.mxu0 0.0
    %545 = vmatprep.subr.mxu0 0.0
    %546 = vmatpush1.msra.mxu0 0.0
    %547 = vmatprep.subr.mxu0 0.0
    %548 = vmatpush1.msra.mxu0 0.0
    %549 = vmatprep.subr.mxu0 0.0
    %550 = vmatpush1.msra.mxu0 0.0
    %551 = vmatprep.subr.mxu0 0.0
    %552 = vmatpush1.msra.mxu0 0.0
    %553 = vmatprep.subr.mxu0 0.0
    %554 = vmatpush1.msra.mxu0 0.0
    %555 = vmatprep.subr.mxu0 0.0
    %556 = vmatpush1.msra.mxu0 0.0
    %557 = vmatprep.subr.mxu0 0.0
    %558 = vmatpush1.msra.mxu0 0.0
    %559 = vmatprep.subr.mxu0 0.0
    %560 = vmatpush1.msra.mxu0 0.0
    %561 = vmatprep.subr.mxu0 0.0
    %562 = vmatpush1.msra.mxu0 0.0
    %563 = vmatprep.subr.mxu0 0.0
    %564 = vmatpush1.msra.mxu0 0.0
    %565 = vmatprep.subr.mxu0 0.0
    %566 = vmatpush1.msra.mxu0 0.0
    %567 = vmatprep.subr.mxu0 0.0
    %568 = vmatpush1.msra.mxu0 0.0
    %569 = vmatprep.subr.mxu0 0.0
    %570 = vmatpush1.msra.mxu0 0.0
    %571 = vmatprep.mubr.f32.mxu0 0.0
    %572 = vmatmul.mubr.f32.gmra.mrb[0].mxu0 %v308
    %v573 = vpop.f32.mrb[0].mxu0
    %v574 = vadd.f32 %v506, %v573
    %v575 = vpop.f32.mrb[0].mxu0
    %576 = vmatprep.mubr.f32.mxu0 0.0
    %577 = vmatmul.mubr.f32.gmra.mrb[0].mxu0 %v311
    %v578 = vpop.f32.mrb[0].mxu0
    %v579 = vadd.f32 %v506, %v578
    %v580 = vpop.f32.mrb[0].mxu0
    %581 = vmatprep.mubr.f32.mxu0 0.0
    %582 = vmatmul.mubr.f32.gmra.mrb[0].mxu0 %v314
    %v583 = vpop.f32.mrb[0].mxu0
    %v584 = vadd.f32 %v506, %v583
    %v585 = vpop.f32.mrb[0].mxu0
    %586 = vmatprep.mubr.f32.mxu0 0.0
    %587 = vmatmul.mubr.f32.gmra.mrb[0].mxu0 %v317
    %v588 = vpop.f32.mrb[0].mxu0
    %v589 = vadd.f32 %v506, %v588
    %v590 = vpop.f32.mrb[0].mxu0
    %591 = vdwg.mxu0
    %v592 = vadd.f32 %v175, %v181
    %v593 = vadd.f32 %v176, %v182
    %v594 = vld [vmem:[%s4] sm:$0xff]
    %v595 = vld [vmem:[%s4 + $0x8] sm:$0xff]
    %v596 = vld [vmem:[%s4 + $0x10] sm:$0xff]
    %v597 = vld [vmem:[%s4 + $0x18] sm:$0xff]
    %v598 = vld [vmem:[%s5] sm:$0x1]
    %v599 = vlaneseq
    %v600 = vshrl.u32 %v599, 7
    %v601 = vsub.s32 0, %v600
    %v602 = vrot.slane %v598, %v601
    %v604 = vsel %vm200, %v592, 0
    %v607 = vsel %vm200, %v593, 0
    %609 = vmatprep.subr.mxu0 0.0
    %610 = vmatpush1.msra.mxu0 %v594
    %611 = vmatprep.subr.mxu0 0.0
    %612 = vmatpush1.msra.mxu0 %v595
    %613 = vmatprep.subr.mxu0 0.0
    %614 = vmatpush1.msra.mxu0 %v596
    %615 = vmatprep.subr.mxu0 0.0
    %616 = vmatpush1.msra.mxu0 %v597
    %617 = vmatprep.subr.mxu0 0.0
    %618 = vmatpush1.msra.mxu0 0.0
    %619 = vmatprep.subr.mxu0 0.0
    %620 = vmatpush1.msra.mxu0 0.0
    %621 = vmatprep.subr.mxu0 0.0
    %622 = vmatpush1.msra.mxu0 0.0
    %623 = vmatprep.subr.mxu0 0.0
    %624 = vmatpush1.msra.mxu0 0.0
    %625 = vmatprep.subr.mxu0 0.0
    %626 = vmatpush1.msra.mxu0 0.0
    %627 = vmatprep.subr.mxu0 0.0
    %628 = vmatpush1.msra.mxu0 0.0
    %629 = vmatprep.subr.mxu0 0.0
    %630 = vmatpush1.msra.mxu0 0.0
    %631 = vmatprep.subr.mxu0 0.0
    %632 = vmatpush1.msra.mxu0 0.0
    %633 = vmatprep.subr.mxu0 0.0
    %634 = vmatpush1.msra.mxu0 0.0
    %635 = vmatprep.subr.mxu0 0.0
    %636 = vmatpush1.msra.mxu0 0.0
    %637 = vmatprep.subr.mxu0 0.0
    %638 = vmatpush1.msra.mxu0 0.0
    %639 = vmatprep.subr.mxu0 0.0
    %640 = vmatpush1.msra.mxu0 0.0
    %641 = vmatprep.subr.mxu0 0.0
    %642 = vmatpush1.msra.mxu0 0.0
    %643 = vmatprep.subr.mxu0 0.0
    %644 = vmatpush1.msra.mxu0 0.0
    %645 = vmatprep.subr.mxu0 0.0
    %646 = vmatpush1.msra.mxu0 0.0
    %647 = vmatprep.subr.mxu0 0.0
    %648 = vmatpush1.msra.mxu0 0.0
    %649 = vmatprep.subr.mxu0 0.0
    %650 = vmatpush1.msra.mxu0 0.0
    %651 = vmatprep.subr.mxu0 0.0
    %652 = vmatpush1.msra.mxu0 0.0
    %653 = vmatprep.subr.mxu0 0.0
    %654 = vmatpush1.msra.mxu0 0.0
    %655 = vmatprep.subr.mxu0 0.0
    %656 = vmatpush1.msra.mxu0 0.0
    %657 = vmatprep.subr.mxu0 0.0
    %658 = vmatpush1.msra.mxu0 0.0
    %659 = vmatprep.subr.mxu0 0.0
    %660 = vmatpush1.msra.mxu0 0.0
    %661 = vmatprep.subr.mxu0 0.0
    %662 = vmatpush1.msra.mxu0 0.0
    %663 = vmatprep.subr.mxu0 0.0
    %664 = vmatpush1.msra.mxu0 0.0
    %665 = vmatprep.subr.mxu0 0.0
    %666 = vmatpush1.msra.mxu0 0.0
    %667 = vmatprep.subr.mxu0 0.0
    %668 = vmatpush1.msra.mxu0 0.0
    %669 = vmatprep.subr.mxu0 0.0
    %670 = vmatpush1.msra.mxu0 0.0
    %671 = vmatprep.subr.mxu0 0.0
    %672 = vmatpush1.msra.mxu0 0.0
    %673 = vmatprep.mubr.f32.mxu0 0.0
    %674 = vmatmul.mubr.f32.gmra.mrb[0].mxu0 %v604
    %v675 = vpop.f32.mrb[0].mxu0
    %v676 = vadd.f32 %v602, %v675
    %v677 = vpop.f32.mrb[0].mxu0
    %678 = vmatprep.mubr.f32.mxu0 0.0
    %679 = vmatmul.mubr.f32.gmra.mrb[0].mxu0 %v607
    %v680 = vpop.f32.mrb[0].mxu0
    %v681 = vadd.f32 %v602, %v680
    %v682 = vpop.f32.mrb[0].mxu0
    %683 = vdwg.mxu0
    %v684 = vld [vmem:[%s4 + $0x20] sm:$0xff]
    %v685 = vld [vmem:[%s4 + $0x28] sm:$0xff]
    %v686 = vld [vmem:[%s4 + $0x30] sm:$0xff]
    %v687 = vld [vmem:[%s4 + $0x38] sm:$0xff]
    %v688 = vld [vmem:[%s5 + $0x1] sm:$0x1]
    %v689 = vlaneseq
    %v690 = vshrl.u32 %v689, 7
    %v691 = vsub.s32 0, %v690
    %v692 = vrot.slane %v688, %v691
    %693 = vmatprep.subr.mxu0 0.0
    %694 = vmatpush1.msra.mxu0 %v684
    %695 = vmatprep.subr.mxu0 0.0
    %696 = vmatpush1.msra.mxu0 %v685
    %697 = vmatprep.subr.mxu0 0.0
    %698 = vmatpush1.msra.mxu0 %v686
    %699 = vmatprep.subr.mxu0 0.0
    %700 = vmatpush1.msra.mxu0 %v687
    %701 = vmatprep.subr.mxu0 0.0
    %702 = vmatpush1.msra.mxu0 0.0
    %703 = vmatprep.subr.mxu0 0.0
    %704 = vmatpush1.msra.mxu0 0.0
    %705 = vmatprep.subr.mxu0 0.0
    %706 = vmatpush1.msra.mxu0 0.0
    %707 = vmatprep.subr.mxu0 0.0
    %708 = vmatpush1.msra.mxu0 0.0
    %709 = vmatprep.subr.mxu0 0.0
    %710 = vmatpush1.msra.mxu0 0.0
    %711 = vmatprep.subr.mxu0 0.0
    %712 = vmatpush1.msra.mxu0 0.0
    %713 = vmatprep.subr.mxu0 0.0
    %714 = vmatpush1.msra.mxu0 0.0
    %715 = vmatprep.subr.mxu0 0.0
    %716 = vmatpush1.msra.mxu0 0.0
    %717 = vmatprep.subr.mxu0 0.0
    %718 = vmatpush1.msra.mxu0 0.0
    %719 = vmatprep.subr.mxu0 0.0
    %720 = vmatpush1.msra.mxu0 0.0
    %721 = vmatprep.subr.mxu0 0.0
    %722 = vmatpush1.msra.mxu0 0.0
    %723 = vmatprep.subr.mxu0 0.0
    %724 = vmatpush1.msra.mxu0 0.0
    %725 = vmatprep.subr.mxu0 0.0
    %726 = vmatpush1.msra.mxu0 0.0
    %727 = vmatprep.subr.mxu0 0.0
    %728 = vmatpush1.msra.mxu0 0.0
    %729 = vmatprep.subr.mxu0 0.0
    %730 = vmatpush1.msra.mxu0 0.0
    %731 = vmatprep.subr.mxu0 0.0
    %732 = vmatpush1.msra.mxu0 0.0
    %733 = vmatprep.subr.mxu0 0.0
    %734 = vmatpush1.msra.mxu0 0.0
    %735 = vmatprep.subr.mxu0 0.0
    %736 = vmatpush1.msra.mxu0 0.0
    %737 = vmatprep.subr.mxu0 0.0
    %738 = vmatpush1.msra.mxu0 0.0
    %739 = vmatprep.subr.mxu0 0.0
    %740 = vmatpush1.msra.mxu0 0.0
    %741 = vmatprep.subr.mxu0 0.0
    %742 = vmatpush1.msra.mxu0 0.0
    %743 = vmatprep.subr.mxu0 0.0
    %744 = vmatpush1.msra.mxu0 0.0
    %745 = vmatprep.subr.mxu0 0.0
    %746 = vmatpush1.msra.mxu0 0.0
    %747 = vmatprep.subr.mxu0 0.0
    %748 = vmatpush1.msra.mxu0 0.0
    %749 = vmatprep.subr.mxu0 0.0
    %750 = vmatpush1.msra.mxu0 0.0
    %751 = vmatprep.subr.mxu0 0.0
    %752 = vmatpush1.msra.mxu0 0.0
    %753 = vmatprep.subr.mxu0 0.0
    %754 = vmatpush1.msra.mxu0 0.0
    %755 = vmatprep.subr.mxu0 0.0
    %756 = vmatpush1.msra.mxu0 0.0
    %757 = vmatprep.mubr.f32.mxu0 0.0
    %758 = vmatmul.mubr.f32.gmra.mrb[0].mxu0 %v604
    %v759 = vpop.f32.mrb[0].mxu0
    %v760 = vadd.f32 %v692, %v759
    %v761 = vpop.f32.mrb[0].mxu0
    %762 = vmatprep.mubr.f32.mxu0 0.0
    %763 = vmatmul.mubr.f32.gmra.mrb[0].mxu0 %v607
    %v764 = vpop.f32.mrb[0].mxu0
    %v765 = vadd.f32 %v692, %v764
    %v766 = vpop.f32.mrb[0].mxu0
    %767 = vdwg.mxu0
    %v768 = vld [vmem:[%s4 + $0x40] sm:$0xff]
    %v769 = vld [vmem:[%s4 + $0x48] sm:$0xff]
    %v770 = vld [vmem:[%s4 + $0x50] sm:$0xff]
    %v771 = vld [vmem:[%s4 + $0x58] sm:$0xff]
    %v772 = vld [vmem:[%s5 + $0x2] sm:$0x1]
    %v773 = vlaneseq
    %v774 = vshrl.u32 %v773, 7
    %v775 = vsub.s32 0, %v774
    %v776 = vrot.slane %v772, %v775
    %v778 = vsel %vm200, %v175, 0
    %v781 = vsel %vm200, %v176, 0
    %783 = vmatprep.subr.mxu0 0.0
    %784 = vmatpush1.msra.mxu0 %v768
    %785 = vmatprep.subr.mxu0 0.0
    %786 = vmatpush1.msra.mxu0 %v769
    %787 = vmatprep.subr.mxu0 0.0
    %788 = vmatpush1.msra.mxu0 %v770
    %789 = vmatprep.subr.mxu0 0.0
    %790 = vmatpush1.msra.mxu0 %v771
    %791 = vmatprep.subr.mxu0 0.0
    %792 = vmatpush1.msra.mxu0 0.0
    %793 = vmatprep.subr.mxu0 0.0
    %794 = vmatpush1.msra.mxu0 0.0
    %795 = vmatprep.subr.mxu0 0.0
    %796 = vmatpush1.msra.mxu0 0.0
    %797 = vmatprep.subr.mxu0 0.0
    %798 = vmatpush1.msra.mxu0 0.0
    %799 = vmatprep.subr.mxu0 0.0
    %800 = vmatpush1.msra.mxu0 0.0
    %801 = vmatprep.subr.mxu0 0.0
    %802 = vmatpush1.msra.mxu0 0.0
    %803 = vmatprep.subr.mxu0 0.0
    %804 = vmatpush1.msra.mxu0 0.0
    %805 = vmatprep.subr.mxu0 0.0
    %806 = vmatpush1.msra.mxu0 0.0
    %807 = vmatprep.subr.mxu0 0.0
    %808 = vmatpush1.msra.mxu0 0.0
    %809 = vmatprep.subr.mxu0 0.0
    %810 = vmatpush1.msra.mxu0 0.0
    %811 = vmatprep.subr.mxu0 0.0
    %812 = vmatpush1.msra.mxu0 0.0
    %813 = vmatprep.subr.mxu0 0.0
    %814 = vmatpush1.msra.mxu0 0.0
    %815 = vmatprep.subr.mxu0 0.0
    %816 = vmatpush1.msra.mxu0 0.0
    %817 = vmatprep.subr.mxu0 0.0
    %818 = vmatpush1.msra.mxu0 0.0
    %819 = vmatprep.subr.mxu0 0.0
    %820 = vmatpush1.msra.mxu0 0.0
    %821 = vmatprep.subr.mxu0 0.0
    %822 = vmatpush1.msra.mxu0 0.0
    %823 = vmatprep.subr.mxu0 0.0
    %824 = vmatpush1.msra.mxu0 0.0
    %825 = vmatprep.subr.mxu0 0.0
    %826 = vmatpush1.msra.mxu0 0.0
    %827 = vmatprep.subr.mxu0 0.0
    %828 = vmatpush1.msra.mxu0 0.0
    %829 = vmatprep.subr.mxu0 0.0
    %830 = vmatpush1.msra.mxu0 0.0
    %831 = vmatprep.subr.mxu0 0.0
    %832 = vmatpush1.msra.mxu0 0.0
    %833 = vmatprep.subr.mxu0 0.0
    %834 = vmatpush1.msra.mxu0 0.0
    %835 = vmatprep.subr.mxu0 0.0
    %836 = vmatpush1.msra.mxu0 0.0
    %837 = vmatprep.subr.mxu0 0.0
    %838 = vmatpush1.msra.mxu0 0.0
    %839 = vmatprep.subr.mxu0 0.0
    %840 = vmatpush1.msra.mxu0 0.0
    %841 = vmatprep.subr.mxu0 0.0
    %842 = vmatpush1.msra.mxu0 0.0
    %843 = vmatprep.subr.mxu0 0.0
    %844 = vmatpush1.msra.mxu0 0.0
    %845 = vmatprep.subr.mxu0 0.0
    %846 = vmatpush1.msra.mxu0 0.0
    %847 = vmatprep.mubr.f32.mxu0 0.0
    %848 = vmatmul.mubr.f32.gmra.mrb[0].mxu0 %v778
    %v849 = vpop.f32.mrb[0].mxu0
    %v850 = vadd.f32 %v776, %v849
    %v851 = vpop.f32.mrb[0].mxu0
    %852 = vmatprep.mubr.f32.mxu0 0.0
    %853 = vmatmul.mubr.f32.gmra.mrb[0].mxu0 %v781
    %v854 = vpop.f32.mrb[0].mxu0
    %v855 = vadd.f32 %v776, %v854
    %v856 = vpop.f32.mrb[0].mxu0
    %857 = vdwg.mxu0
    %v858 = vmul.f32 %v676, 0.35355338
    %v859 = vmul.f32 %v681, 0.35355338
    %v860 = vmul.f32 %v858, %v29
    %v861 = vmul.f32 %v859, %v29
    %v862 = vmul.f32 %v858, %v33
    %v863 = vmul.f32 %v859, %v33
    %v864 = vmul.f32 %v858, %v37
    %v865 = vmul.f32 %v859, %v37
    %v866 = vmul.f32 %v858, %v41
    %v867 = vmul.f32 %v859, %v41
    %v869 = vsel %vm200, %v860, 0
    %v872 = vsel %vm200, %v861, 0
    %v875 = vsel %vm200, %v862, 0
    %v878 = vsel %vm200, %v863, 0
    %v881 = vsel %vm200, %v864, 0
    %v884 = vsel %vm200, %v865, 0
    %v887 = vsel %vm200, %v866, 0
    %v890 = vsel %vm200, %v867, 0
    %v893 = vsel %vm200, %v760, 0
    %v896 = vsel %vm200, %v765, 0
    %898 = vmatprep.subr.mxu0 0.0
    %899 = vmatpush1.xpose.msra.mxu0 %v893
    %900 = vmatprep.subr.mxu0 0.0
    %901 = vmatpush1.xpose.msra.mxu0 %v896
    %902 = vmatprep.subr.mxu0 0.0
    %903 = vmatpush1.xpose.msra.mxu0 0.0
    %904 = vmatprep.subr.mxu0 0.0
    %905 = vmatpush1.xpose.msra.mxu0 0.0
    %906 = vmatprep.subr.mxu0 0.0
    %907 = vmatpush1.xpose.msra.mxu0 0.0
    %908 = vmatprep.subr.mxu0 0.0
    %909 = vmatpush1.xpose.msra.mxu0 0.0
    %910 = vmatprep.subr.mxu0 0.0
    %911 = vmatpush1.xpose.msra.mxu0 0.0
    %912 = vmatprep.subr.mxu0 0.0
    %913 = vmatpush1.xpose.msra.mxu0 0.0
    %914 = vmatprep.subr.mxu0 0.0
    %915 = vmatpush1.xpose.msra.mxu0 0.0
    %916 = vmatprep.subr.mxu0 0.0
    %917 = vmatpush1.xpose.msra.mxu0 0.0
    %918 = vmatprep.subr.mxu0 0.0
    %919 = vmatpush1.xpose.msra.mxu0 0.0
    %920 = vmatprep.subr.mxu0 0.0
    %921 = vmatpush1.xpose.msra.mxu0 0.0
    %922 = vmatprep.subr.mxu0 0.0
    %923 = vmatpush1.xpose.msra.mxu0 0.0
    %924 = vmatprep.subr.mxu0 0.0
    %925 = vmatpush1.xpose.msra.mxu0 0.0
    %926 = vmatprep.subr.mxu0 0.0
    %927 = vmatpush1.xpose.msra.mxu0 0.0
    %928 = vmatprep.subr.mxu0 0.0
    %929 = vmatpush1.xpose.msra.mxu0 0.0
    %930 = vmatprep.subr.mxu0 0.0
    %931 = vmatpush1.xpose.msra.mxu0 0.0
    %932 = vmatprep.subr.mxu0 0.0
    %933 = vmatpush1.xpose.msra.mxu0 0.0
    %934 = vmatprep.subr.mxu0 0.0
    %935 = vmatpush1.xpose.msra.mxu0 0.0
    %936 = vmatprep.subr.mxu0 0.0
    %937 = vmatpush1.xpose.msra.mxu0 0.0
    %938 = vmatprep.subr.mxu0 0.0
    %939 = vmatpush1.xpose.msra.mxu0 0.0
    %940 = vmatprep.subr.mxu0 0.0
    %941 = vmatpush1.xpose.msra.mxu0 0.0
    %942 = vmatprep.subr.mxu0 0.0
    %943 = vmatpush1.xpose.msra.mxu0 0.0
    %944 = vmatprep.subr.mxu0 0.0
    %945 = vmatpush1.xpose.msra.mxu0 0.0
    %946 = vmatprep.subr.mxu0 0.0
    %947 = vmatpush1.xpose.msra.mxu0 0.0
    %948 = vmatprep.subr.mxu0 0.0
    %949 = vmatpush1.xpose.msra.mxu0 0.0
    %950 = vmatprep.subr.mxu0 0.0
    %951 = vmatpush1.xpose.msra.mxu0 0.0
    %952 = vmatprep.subr.mxu0 0.0
    %953 = vmatpush1.xpose.msra.mxu0 0.0
    %954 = vmatprep.subr.mxu0 0.0
    %955 = vmatpush1.xpose.msra.mxu0 0.0
    %956 = vmatprep.subr.mxu0 0.0
    %957 = vmatpush1.xpose.msra.mxu0 0.0
    %958 = vmatprep.subr.mxu0 0.0
    %959 = vmatpush1.xpose.msra.mxu0 0.0
    %960 = vmatprep.subr.mxu0 0.0
    %961 = vmatpush1.xpose.msra.mxu0 0.0
    %962 = vmatprep.mubr.f32.mxu0 0.0
    %963 = vmatmul.mubr.f32.gmra.mrb[0].mxu0 %v869
    %v964 = vpop.f32.mrb[0].mxu0
    %v965 = vadd.f32 %v167, %v964
    %v966 = vpop.f32.mrb[0].mxu0
    %967 = vmatprep.mubr.f32.mxu0 0.0
    %968 = vmatmul.mubr.f32.gmra.mrb[0].mxu0 %v872
    %v969 = vpop.f32.mrb[0].mxu0
    %v970 = vadd.f32 %v168, %v969
    %v971 = vpop.f32.mrb[0].mxu0
    %972 = vmatprep.mubr.f32.mxu0 0.0
    %973 = vmatmul.mubr.f32.gmra.mrb[0].mxu0 %v875
    %v974 = vpop.f32.mrb[0].mxu0
    %v975 = vadd.f32 %v169, %v974
    %v976 = vpop.f32.mrb[0].mxu0
    %977 = vmatprep.mubr.f32.mxu0 0.0
    %978 = vmatmul.mubr.f32.gmra.mrb[0].mxu0 %v878
    %v979 = vpop.f32.mrb[0].mxu0
    %v980 = vadd.f32 %v170, %v979
    %v981 = vpop.f32.mrb[0].mxu0
    %982 = vmatprep.mubr.f32.mxu0 0.0
    %983 = vmatmul.mubr.f32.gmra.mrb[0].mxu0 %v881
    %v984 = vpop.f32.mrb[0].mxu0
    %v985 = vadd.f32 %v171, %v984
    %v986 = vpop.f32.mrb[0].mxu0
    %987 = vmatprep.mubr.f32.mxu0 0.0
    %988 = vmatmul.mubr.f32.gmra.mrb[0].mxu0 %v884
    %v989 = vpop.f32.mrb[0].mxu0
    %v990 = vadd.f32 %v172, %v989
    %v991 = vpop.f32.mrb[0].mxu0
    %992 = vmatprep.mubr.f32.mxu0 0.0
    %993 = vmatmul.mubr.f32.gmra.mrb[0].mxu0 %v887
    %v994 = vpop.f32.mrb[0].mxu0
    %v995 = vadd.f32 %v173, %v994
    %v996 = vpop.f32.mrb[0].mxu0
    %997 = vmatprep.mubr.f32.mxu0 0.0
    %998 = vmatmul.mubr.f32.gmra.mrb[0].mxu0 %v890
    %v999 = vpop.f32.mrb[0].mxu0
    %v1000 = vadd.f32 %v174, %v999
    %v1001 = vpop.f32.mrb[0].mxu0
    %1002 = vdwg.mxu0
    %vm1003 = vcmask 130048
    %v1004 = vsel %vm1003, %v965, -inf
    %1005 = vmax.xlane.f32.xlu0 %v1004
    %v1006 = vpop.xlane.xlu0 %1005
    %v1007 = vsel %vm1003, %v970, -inf
    %1008 = vmax.xlane.f32.xlu0 %v1007
    %v1009 = vpop.xlane.xlu0 %1008
    %v1010 = vsel %vm1003, %v975, -inf
    %1011 = vmax.xlane.f32.xlu0 %v1010
    %v1012 = vpop.xlane.xlu0 %1011
    %v1013 = vsel %vm1003, %v980, -inf
    %1014 = vmax.xlane.f32.xlu0 %v1013
    %v1015 = vpop.xlane.xlu0 %1014
    %v1016 = vsel %vm1003, %v985, -inf
    %1017 = vmax.xlane.f32.xlu0 %v1016
    %v1018 = vpop.xlane.xlu0 %1017
    %v1019 = vsel %vm1003, %v990, -inf
    %1020 = vmax.xlane.f32.xlu0 %v1019
    %v1021 = vpop.xlane.xlu0 %1020
    %v1022 = vsel %vm1003, %v995, -inf
    %1023 = vmax.xlane.f32.xlu0 %v1022
    %v1024 = vpop.xlane.xlu0 %1023
    %v1025 = vsel %vm1003, %v1000, -inf
    %1026 = vmax.xlane.f32.xlu0 %v1025
    %v1027 = vpop.xlane.xlu0 %1026
    %v1028 = vsub.f32 %v965, %v1006
    %v1029 = vsub.f32 %v970, %v1009
    %v1030 = vsub.f32 %v975, %v1012
    %v1031 = vsub.f32 %v980, %v1015
    %v1032 = vsub.f32 %v985, %v1018
    %v1033 = vsub.f32 %v990, %v1021
    %v1034 = vsub.f32 %v995, %v1024
    %v1035 = vsub.f32 %v1000, %v1027
    %v1036 = vmul.f32 %v1028, 1.442695
    %v1037 = vpow.pop %v1036
    %v1038 = vmul.f32 %v1029, 1.442695
    %v1039 = vpow.pop %v1038
    %v1040 = vmul.f32 %v1030, 1.442695
    %v1041 = vpow.pop %v1040
    %v1042 = vmul.f32 %v1031, 1.442695
    %v1043 = vpow.pop %v1042
    %v1044 = vmul.f32 %v1032, 1.442695
    %v1045 = vpow.pop %v1044
    %v1046 = vmul.f32 %v1033, 1.442695
    %v1047 = vpow.pop %v1046
    %v1048 = vmul.f32 %v1034, 1.442695
    %v1049 = vpow.pop %v1048
    %v1050 = vmul.f32 %v1035, 1.442695
    %v1051 = vpow.pop %v1050
    %v1052 = vsel %vm1003, %v1037, 0.0
    %1053 = vadd.xlane.f32.xlu0 %v1052
    %v1054 = vpop.xlane.xlu0 %1053
    %v1055 = vsel %vm1003, %v1039, 0.0
    %1056 = vadd.xlane.f32.xlu0 %v1055
    %v1057 = vpop.xlane.xlu0 %1056
    %v1058 = vsel %vm1003, %v1041, 0.0
    %1059 = vadd.xlane.f32.xlu0 %v1058
    %v1060 = vpop.xlane.xlu0 %1059
    %v1061 = vsel %vm1003, %v1043, 0.0
    %1062 = vadd.xlane.f32.xlu0 %v1061
    %v1063 = vpop.xlane.xlu0 %1062
    %v1064 = vsel %vm1003, %v1045, 0.0
    %1065 = vadd.xlane.f32.xlu0 %v1064
    %v1066 = vpop.xlane.xlu0 %1065
    %v1067 = vsel %vm1003, %v1047, 0.0
    %1068 = vadd.xlane.f32.xlu0 %v1067
    %v1069 = vpop.xlane.xlu0 %1068
    %v1070 = vsel %vm1003, %v1049, 0.0
    %1071 = vadd.xlane.f32.xlu0 %v1070
    %v1072 = vpop.xlane.xlu0 %1071
    %v1073 = vsel %vm1003, %v1051, 0.0
    %1074 = vadd.xlane.f32.xlu0 %v1073
    %v1075 = vpop.xlane.xlu0 %1074
    %v1076 = vrcp.pop %v1054
    %v1077 = vmul.f32 %v1037, %v1076
    %v1078 = vrcp.pop %v1057
    %v1079 = vmul.f32 %v1039, %v1078
    %v1080 = vrcp.pop %v1060
    %v1081 = vmul.f32 %v1041, %v1080
    %v1082 = vrcp.pop %v1063
    %v1083 = vmul.f32 %v1043, %v1082
    %v1084 = vrcp.pop %v1066
    %v1085 = vmul.f32 %v1045, %v1084
    %v1086 = vrcp.pop %v1069
    %v1087 = vmul.f32 %v1047, %v1086
    %v1088 = vrcp.pop %v1072
    %v1089 = vmul.f32 %v1049, %v1088
    %v1090 = vrcp.pop %v1075
    %v1091 = vmul.f32 %v1051, %v1090
    %v1093 = vsel %vm1003, %v1077, 0
    %v1096 = vsel %vm1003, %v1079, 0
    %v1099 = vsel %vm1003, %v1081, 0
    %v1102 = vsel %vm1003, %v1083, 0
    %v1105 = vsel %vm1003, %v1085, 0
    %v1108 = vsel %vm1003, %v1087, 0
    %v1111 = vsel %vm1003, %v1089, 0
    %v1114 = vsel %vm1003, %v1091, 0
    %1116 = vmatprep.subr.mxu0 0.0
    %1117 = vmatpush1.msra.mxu0 %v850
    %1118 = vmatprep.subr.mxu0 0.0
    %1119 = vmatpush1.msra.mxu0 %v855
    %1120 = vmatprep.subr.mxu0 0.0
    %1121 = vmatpush1.msra.mxu0 0.0
    %1122 = vmatprep.subr.mxu0 0.0
    %1123 = vmatpush1.msra.mxu0 0.0
    %1124 = vmatprep.subr.mxu0 0.0
    %1125 = vmatpush1.msra.mxu0 0.0
    %1126 = vmatprep.subr.mxu0 0.0
    %1127 = vmatpush1.msra.mxu0 0.0
    %1128 = vmatprep.subr.mxu0 0.0
    %1129 = vmatpush1.msra.mxu0 0.0
    %1130 = vmatprep.subr.mxu0 0.0
    %1131 = vmatpush1.msra.mxu0 0.0
    %1132 = vmatprep.subr.mxu0 0.0
    %1133 = vmatpush1.msra.mxu0 0.0
    %1134 = vmatprep.subr.mxu0 0.0
    %1135 = vmatpush1.msra.mxu0 0.0
    %1136 = vmatprep.subr.mxu0 0.0
    %1137 = vmatpush1.msra.mxu0 0.0
    %1138 = vmatprep.subr.mxu0 0.0
    %1139 = vmatpush1.msra.mxu0 0.0
    %1140 = vmatprep.subr.mxu0 0.0
    %1141 = vmatpush1.msra.mxu0 0.0
    %1142 = vmatprep.subr.mxu0 0.0
    %1143 = vmatpush1.msra.mxu0 0.0
    %1144 = vmatprep.subr.mxu0 0.0
    %1145 = vmatpush1.msra.mxu0 0.0
    %1146 = vmatprep.subr.mxu0 0.0
    %1147 = vmatpush1.msra.mxu0 0.0
    %1148 = vmatprep.subr.mxu0 0.0
    %1149 = vmatpush1.msra.mxu0 0.0
    %1150 = vmatprep.subr.mxu0 0.0
    %1151 = vmatpush1.msra.mxu0 0.0
    %1152 = vmatprep.subr.mxu0 0.0
    %1153 = vmatpush1.msra.mxu0 0.0
    %1154 = vmatprep.subr.mxu0 0.0
    %1155 = vmatpush1.msra.mxu0 0.0
    %1156 = vmatprep.subr.mxu0 0.0
    %1157 = vmatpush1.msra.mxu0 0.0
    %1158 = vmatprep.subr.mxu0 0.0
    %1159 = vmatpush1.msra.mxu0 0.0
    %1160 = vmatprep.subr.mxu0 0.0
    %1161 = vmatpush1.msra.mxu0 0.0
    %1162 = vmatprep.subr.mxu0 0.0
    %1163 = vmatpush1.msra.mxu0 0.0
    %1164 = vmatprep.subr.mxu0 0.0
    %1165 = vmatpush1.msra.mxu0 0.0
    %1166 = vmatprep.subr.mxu0 0.0
    %1167 = vmatpush1.msra.mxu0 0.0
    %1168 = vmatprep.subr.mxu0 0.0
    %1169 = vmatpush1.msra.mxu0 0.0
    %1170 = vmatprep.subr.mxu0 0.0
    %1171 = vmatpush1.msra.mxu0 0.0
    %1172 = vmatprep.subr.mxu0 0.0
    %1173 = vmatpush1.msra.mxu0 0.0
    %1174 = vmatprep.subr.mxu0 0.0
    %1175 = vmatpush1.msra.mxu0 0.0
    %1176 = vmatprep.subr.mxu0 0.0
    %1177 = vmatpush1.msra.mxu0 0.0
    %1178 = vmatprep.subr.mxu0 0.0
    %1179 = vmatpush1.msra.mxu0 0.0
    %1180 = vmatprep.mubr.f32.mxu0 0.0
    %1181 = vmatmul.mubr.f32.gmra.mrb[0].mxu0 %v1093
    %v1182 = vpop.f32.mrb[0].mxu0
    %v1183 = vadd.f32 0.0, %v1182
    %v1184 = vpop.f32.mrb[0].mxu0
    %1185 = vmatprep.mubr.f32.mxu0 0.0
    %1186 = vmatmul.mubr.f32.gmra.mrb[0].mxu0 %v1096
    %v1187 = vpop.f32.mrb[0].mxu0
    %v1188 = vadd.f32 0.0, %v1187
    %v1189 = vpop.f32.mrb[0].mxu0
    %1190 = vmatprep.mubr.f32.mxu0 0.0
    %1191 = vmatmul.mubr.f32.gmra.mrb[0].mxu0 %v1099
    %v1192 = vpop.f32.mrb[0].mxu0
    %v1193 = vadd.f32 0.0, %v1192
    %v1194 = vpop.f32.mrb[0].mxu0
    %1195 = vmatprep.mubr.f32.mxu0 0.0
    %1196 = vmatmul.mubr.f32.gmra.mrb[0].mxu0 %v1102
    %v1197 = vpop.f32.mrb[0].mxu0
    %v1198 = vadd.f32 0.0, %v1197
    %v1199 = vpop.f32.mrb[0].mxu0
    %1200 = vmatprep.mubr.f32.mxu0 0.0
    %1201 = vmatmul.mubr.f32.gmra.mrb[0].mxu0 %v1105
    %v1202 = vpop.f32.mrb[0].mxu0
    %v1203 = vadd.f32 0.0, %v1202
    %v1204 = vpop.f32.mrb[0].mxu0
    %1205 = vmatprep.mubr.f32.mxu0 0.0
    %1206 = vmatmul.mubr.f32.gmra.mrb[0].mxu0 %v1108
    %v1207 = vpop.f32.mrb[0].mxu0
    %v1208 = vadd.f32 0.0, %v1207
    %v1209 = vpop.f32.mrb[0].mxu0
    %1210 = vmatprep.mubr.f32.mxu0 0.0
    %1211 = vmatmul.mubr.f32.gmra.mrb[0].mxu0 %v1111
    %v1212 = vpop.f32.mrb[0].mxu0
    %v1213 = vadd.f32 0.0, %v1212
    %v1214 = vpop.f32.mrb[0].mxu0
    %1215 = vmatprep.mubr.f32.mxu0 0.0
    %1216 = vmatmul.mubr.f32.gmra.mrb[0].mxu0 %v1114
    %v1217 = vpop.f32.mrb[0].mxu0
    %v1218 = vadd.f32 0.0, %v1217
    %v1219 = vpop.f32.mrb[0].mxu0
    %1220 = vdwg.mxu0
    %v1221 = vmul.f32 %v1183, %v29
    %v1222 = vmul.f32 %v1188, %v29
    %v1223 = vmul.f32 %v1193, %v33
    %v1224 = vmul.f32 %v1198, %v33
    %v1225 = vadd.f32 %v1221, %v1223
    %v1226 = vadd.f32 %v1222, %v1224
    %v1227 = vmul.f32 %v1203, %v37
    %v1228 = vmul.f32 %v1208, %v37
    %v1229 = vadd.f32 %v1225, %v1227
    %v1230 = vadd.f32 %v1226, %v1228
    %v1231 = vmul.f32 %v1213, %v41
    %v1232 = vmul.f32 %v1218, %v41
    %v1233 = vadd.f32 %v1229, %v1231
    %v1234 = vadd.f32 %v1230, %v1232
    %v1235 = vld [vmem:[%s4 + $0x60] sm:$0xff]
    %v1236 = vld [vmem:[%s4 + $0x68] sm:$0xff]
    %v1237 = vld [vmem:[%s4 + $0x70] sm:$0xff]
    %v1238 = vld [vmem:[%s4 + $0x78] sm:$0xff]
    %v1239 = vld [vmem:[%s5 + $0x3] sm:$0x1]
    %v1240 = vlaneseq
    %v1241 = vshrl.u32 %v1240, 7
    %v1242 = vsub.s32 0, %v1241
    %v1243 = vrot.slane %v1239, %v1242
    %v1245 = vsel %vm200, %v1233, 0
    %v1248 = vsel %vm200, %v1234, 0
    %1250 = vmatprep.subr.mxu0 0.0
    %1251 = vmatpush1.msra.mxu0 %v1235
    %1252 = vmatprep.subr.mxu0 0.0
    %1253 = vmatpush1.msra.mxu0 %v1236
    %1254 = vmatprep.subr.mxu0 0.0
    %1255 = vmatpush1.msra.mxu0 %v1237
    %1256 = vmatprep.subr.mxu0 0.0
    %1257 = vmatpush1.msra.mxu0 %v1238
    %1258 = vmatprep.subr.mxu0 0.0
    %1259 = vmatpush1.msra.mxu0 0.0
    %1260 = vmatprep.subr.mxu0 0.0
    %1261 = vmatpush1.msra.mxu0 0.0
    %1262 = vmatprep.subr.mxu0 0.0
    %1263 = vmatpush1.msra.mxu0 0.0
    %1264 = vmatprep.subr.mxu0 0.0
    %1265 = vmatpush1.msra.mxu0 0.0
    %1266 = vmatprep.subr.mxu0 0.0
    %1267 = vmatpush1.msra.mxu0 0.0
    %1268 = vmatprep.subr.mxu0 0.0
    %1269 = vmatpush1.msra.mxu0 0.0
    %1270 = vmatprep.subr.mxu0 0.0
    %1271 = vmatpush1.msra.mxu0 0.0
    %1272 = vmatprep.subr.mxu0 0.0
    %1273 = vmatpush1.msra.mxu0 0.0
    %1274 = vmatprep.subr.mxu0 0.0
    %1275 = vmatpush1.msra.mxu0 0.0
    %1276 = vmatprep.subr.mxu0 0.0
    %1277 = vmatpush1.msra.mxu0 0.0
    %1278 = vmatprep.subr.mxu0 0.0
    %1279 = vmatpush1.msra.mxu0 0.0
    %1280 = vmatprep.subr.mxu0 0.0
    %1281 = vmatpush1.msra.mxu0 0.0
    %1282 = vmatprep.subr.mxu0 0.0
    %1283 = vmatpush1.msra.mxu0 0.0
    %1284 = vmatprep.subr.mxu0 0.0
    %1285 = vmatpush1.msra.mxu0 0.0
    %1286 = vmatprep.subr.mxu0 0.0
    %1287 = vmatpush1.msra.mxu0 0.0
    %1288 = vmatprep.subr.mxu0 0.0
    %1289 = vmatpush1.msra.mxu0 0.0
    %1290 = vmatprep.subr.mxu0 0.0
    %1291 = vmatpush1.msra.mxu0 0.0
    %1292 = vmatprep.subr.mxu0 0.0
    %1293 = vmatpush1.msra.mxu0 0.0
    %1294 = vmatprep.subr.mxu0 0.0
    %1295 = vmatpush1.msra.mxu0 0.0
    %1296 = vmatprep.subr.mxu0 0.0
    %1297 = vmatpush1.msra.mxu0 0.0
    %1298 = vmatprep.subr.mxu0 0.0
    %1299 = vmatpush1.msra.mxu0 0.0
    %1300 = vmatprep.subr.mxu0 0.0
    %1301 = vmatpush1.msra.mxu0 0.0
    %1302 = vmatprep.subr.mxu0 0.0
    %1303 = vmatpush1.msra.mxu0 0.0
    %1304 = vmatprep.subr.mxu0 0.0
    %1305 = vmatpush1.msra.mxu0 0.0
    %1306 = vmatprep.subr.mxu0 0.0
    %1307 = vmatpush1.msra.mxu0 0.0
    %1308 = vmatprep.subr.mxu0 0.0
    %1309 = vmatpush1.msra.mxu0 0.0
    %1310 = vmatprep.subr.mxu0 0.0
    %1311 = vmatpush1.msra.mxu0 0.0
    %1312 = vmatprep.subr.mxu0 0.0
    %1313 = vmatpush1.msra.mxu0 0.0
    %1314 = vmatprep.mubr.f32.mxu0 0.0
    %1315 = vmatmul.mubr.f32.gmra.mrb[0].mxu0 %v1245
    %v1316 = vpop.f32.mrb[0].mxu0
    %v1317 = vadd.f32 %v1243, %v1316
    %v1318 = vpop.f32.mrb[0].mxu0
    %1319 = vmatprep.mubr.f32.mxu0 0.0
    %1320 = vmatmul.mubr.f32.gmra.mrb[0].mxu0 %v1248
    %v1321 = vpop.f32.mrb[0].mxu0
    %v1322 = vadd.f32 %v1243, %v1321
    %v1323 = vpop.f32.mrb[0].mxu0
    %1324 = vdwg.mxu0
    %v1325 = vadd.f32 %v175, %v1317
    %v1326 = vadd.f32 %v176, %v1322
    %v1327 = vld [vmem:[%s5 + $0xa] sm:$0x1]
    %v1328 = vld [vmem:[%s5 + $0xb] sm:$0x1]
    %v1329 = vsel %vm200, %v1325, 0.0
    %1330 = vadd.xlane.f32.xlu0 %v1329
    %v1331 = vpop.xlane.xlu0 %1330
    %v1332 = vsel %vm200, %v1326, 0.0
    %1333 = vadd.xlane.f32.xlu0 %v1332
    %v1334 = vpop.xlane.xlu0 %1333
    %v1335 = vrcp.pop 32.0
    %v1336 = vmul.f32 %v1331, %v1335
    %v1337 = vmul.f32 %v1334, %v1335
    %v1338 = vsub.f32 %v1325, %v1336
    %v1339 = vsub.f32 %v1326, %v1337
    %v1340 = vmul.f32 %v1338, %v1338
    %v1341 = vmul.f32 %v1339, %v1339
    %v1342 = vsel %vm200, %v1340, 0.0
    %1343 = vadd.xlane.f32.xlu0 %v1342
    %v1344 = vpop.xlane.xlu0 %1343
    %v1345 = vsel %vm200, %v1341, 0.0
    %1346 = vadd.xlane.f32.xlu0 %v1345
    %v1347 = vpop.xlane.xlu0 %1346
    %v1348 = vmul.f32 %v1344, %v1335
    %v1349 = vmul.f32 %v1347, %v1335
    %v1350 = vadd.f32 %v1348, 1e-05
    %v1351 = vadd.f32 %v1349, 1e-05
    %v1352 = vrsqrt.pop %v1350
    %v1353 = vrsqrt.pop %v1351
    %v1354 = vmul.f32 %v1338, %v1352
    %v1355 = vmul.f32 %v1339, %v1353
    %v1356 = vlaneseq
    %v1357 = vshrl.u32 %v1356, 7
    %v1358 = vsub.s32 0, %v1357
    %v1359 = vrot.slane %v1327, %v1358
    %v1360 = vmul.f32 %v1354, %v1359
    %v1361 = vmul.f32 %v1355, %v1359
    %v1362 = vlaneseq
    %v1363 = vshrl.u32 %v1362, 7
    %v1364 = vsub.s32 0, %v1363
    %v1365 = vrot.slane %v1328, %v1364
    %v1366 = vadd.f32 %v1360, %v1365
    %v1367 = vadd.f32 %v1361, %v1365
    %v1368 = vadd.f32 %v1366, %v181
    %v1369 = vadd.f32 %v1367, %v182
    %v1370 = vld [vmem:[%s4 + $0x80] sm:$0xff]
    %v1371 = vld [vmem:[%s4 + $0x88] sm:$0xff]
    %v1372 = vld [vmem:[%s4 + $0x90] sm:$0xff]
    %v1373 = vld [vmem:[%s4 + $0x98] sm:$0xff]
    %v1374 = vld [vmem:[%s5 + $0x4] sm:$0x1]
    %v1375 = vlaneseq
    %v1376 = vshrl.u32 %v1375, 7
    %v1377 = vsub.s32 0, %v1376
    %v1378 = vrot.slane %v1374, %v1377
    %v1380 = vsel %vm200, %v1368, 0
    %v1383 = vsel %vm200, %v1369, 0
    %1385 = vmatprep.subr.mxu0 0.0
    %1386 = vmatpush1.msra.mxu0 %v1370
    %1387 = vmatprep.subr.mxu0 0.0
    %1388 = vmatpush1.msra.mxu0 %v1371
    %1389 = vmatprep.subr.mxu0 0.0
    %1390 = vmatpush1.msra.mxu0 %v1372
    %1391 = vmatprep.subr.mxu0 0.0
    %1392 = vmatpush1.msra.mxu0 %v1373
    %1393 = vmatprep.subr.mxu0 0.0
    %1394 = vmatpush1.msra.mxu0 0.0
    %1395 = vmatprep.subr.mxu0 0.0
    %1396 = vmatpush1.msra.mxu0 0.0
    %1397 = vmatprep.subr.mxu0 0.0
    %1398 = vmatpush1.msra.mxu0 0.0
    %1399 = vmatprep.subr.mxu0 0.0
    %1400 = vmatpush1.msra.mxu0 0.0
    %1401 = vmatprep.subr.mxu0 0.0
    %1402 = vmatpush1.msra.mxu0 0.0
    %1403 = vmatprep.subr.mxu0 0.0
    %1404 = vmatpush1.msra.mxu0 0.0
    %1405 = vmatprep.subr.mxu0 0.0
    %1406 = vmatpush1.msra.mxu0 0.0
    %1407 = vmatprep.subr.mxu0 0.0
    %1408 = vmatpush1.msra.mxu0 0.0
    %1409 = vmatprep.subr.mxu0 0.0
    %1410 = vmatpush1.msra.mxu0 0.0
    %1411 = vmatprep.subr.mxu0 0.0
    %1412 = vmatpush1.msra.mxu0 0.0
    %1413 = vmatprep.subr.mxu0 0.0
    %1414 = vmatpush1.msra.mxu0 0.0
    %1415 = vmatprep.subr.mxu0 0.0
    %1416 = vmatpush1.msra.mxu0 0.0
    %1417 = vmatprep.subr.mxu0 0.0
    %1418 = vmatpush1.msra.mxu0 0.0
    %1419 = vmatprep.subr.mxu0 0.0
    %1420 = vmatpush1.msra.mxu0 0.0
    %1421 = vmatprep.subr.mxu0 0.0
    %1422 = vmatpush1.msra.mxu0 0.0
    %1423 = vmatprep.subr.mxu0 0.0
    %1424 = vmatpush1.msra.mxu0 0.0
    %1425 = vmatprep.subr.mxu0 0.0
    %1426 = vmatpush1.msra.mxu0 0.0
    %1427 = vmatprep.subr.mxu0 0.0
    %1428 = vmatpush1.msra.mxu0 0.0
    %1429 = vmatprep.subr.mxu0 0.0
    %1430 = vmatpush1.msra.mxu0 0.0
    %1431 = vmatprep.subr.mxu0 0.0
    %1432 = vmatpush1.msra.mxu0 0.0
    %1433 = vmatprep.subr.mxu0 0.0
    %1434 = vmatpush1.msra.mxu0 0.0
    %1435 = vmatprep.subr.mxu0 0.0
    %1436 = vmatpush1.msra.mxu0 0.0
    %1437 = vmatprep.subr.mxu0 0.0
    %1438 = vmatpush1.msra.mxu0 0.0
    %1439 = vmatprep.subr.mxu0 0.0
    %1440 = vmatpush1.msra.mxu0 0.0
    %1441 = vmatprep.subr.mxu0 0.0
    %1442 = vmatpush1.msra.mxu0 0.0
    %1443 = vmatprep.subr.mxu0 0.0
    %1444 = vmatpush1.msra.mxu0 0.0
    %1445 = vmatprep.subr.mxu0 0.0
    %1446 = vmatpush1.msra.mxu0 0.0
    %1447 = vmatprep.subr.mxu0 0.0
    %1448 = vmatpush1.msra.mxu0 0.0
    %1449 = vmatprep.mubr.f32.mxu0 0.0
    %1450 = vmatmul.mubr.f32.gmra.mrb[0].mxu0 %v1380
    %v1451 = vpop.f32.mrb[0].mxu0
    %v1452 = vadd.f32 %v1378, %v1451
    %v1453 = vpop.f32.mrb[0].mxu0
    %1454 = vmatprep.mubr.f32.mxu0 0.0
    %1455 = vmatmul.mubr.f32.gmra.mrb[0].mxu0 %v1383
    %v1456 = vpop.f32.mrb[0].mxu0
    %v1457 = vadd.f32 %v1378, %v1456
    %v1458 = vpop.f32.mrb[0].mxu0
    %1459 = vdwg.mxu0
    %v1460 = vmul.f32 %v1452, 0.35355338
    %v1461 = vmul.f32 %v1457, 0.35355338
    %v1462 = vmul.f32 %v1460, %v29
    %v1463 = vmul.f32 %v1461, %v29
    %v1464 = vmul.f32 %v1460, %v33
    %v1465 = vmul.f32 %v1461, %v33
    %v1466 = vmul.f32 %v1460, %v37
    %v1467 = vmul.f32 %v1461, %v37
    %v1468 = vmul.f32 %v1460, %v41
    %v1469 = vmul.f32 %v1461, %v41
    %v1471 = vsel %vm200, %v1462, 0
    %v1474 = vsel %vm200, %v1463, 0
    %v1477 = vsel %vm200, %v1464, 0
    %v1480 = vsel %vm200, %v1465, 0
    %v1483 = vsel %vm200, %v1466, 0
    %v1486 = vsel %vm200, %v1467, 0
    %v1489 = vsel %vm200, %v1468, 0
    %v1492 = vsel %vm200, %v1469, 0
    %v1495 = vsel %vm200, %v280, 0
    %v1498 = vsel %vm200, %v285, 0
    %v1501 = vsel %vm200, %v290, 0
    %v1504 = vsel %vm200, %v295, 0
    %1506 = vmatprep.subr.mxu0 0.0
    %1507 = vmatpush1.xpose.msra.mxu0 %v1495
    %1508 = vmatprep.subr.mxu0 0.0
    %1509 = vmatpush1.xpose.msra.mxu0 %v1498
    %1510 = vmatprep.subr.mxu0 0.0
    %1511 = vmatpush1.xpose.msra.mxu0 %v1501
    %1512 = vmatprep.subr.mxu0 0.0
    %1513 = vmatpush1.xpose.msra.mxu0 %v1504
    %1514 = vmatprep.subr.mxu0 0.0
    %1515 = vmatpush1.xpose.msra.mxu0 0.0
    %1516 = vmatprep.subr.mxu0 0.0
    %1517 = vmatpush1.xpose.msra.mxu0 0.0
    %1518 = vmatprep.subr.mxu0 0.0
    %1519 = vmatpush1.xpose.msra.mxu0 0.0
    %1520 = vmatprep.subr.mxu0 0.0
    %1521 = vmatpush1.xpose.msra.mxu0 0.0
    %1522 = vmatprep.subr.mxu0 0.0
    %1523 = vmatpush1.xpose.msra.mxu0 0.0
    %1524 = vmatprep.subr.mxu0 0.0
    %1525 = vmatpush1.xpose.msra.mxu0 0.0
    %1526 = vmatprep.subr.mxu0 0.0
    %1527 = vmatpush1.xpose.msra.mxu0 0.0
    %1528 = vmatprep.subr.mxu0 0.0
    %1529 = vmatpush1.xpose.msra.mxu0 0.0
    %1530 = vmatprep.subr.mxu0 0.0
    %1531 = vmatpush1.xpose.msra.mxu0 0.0
    %1532 = vmatprep.subr.mxu0 0.0
    %1533 = vmatpush1.xpose.msra.mxu0 0.0
    %1534 = vmatprep.subr.mxu0 0.0
    %1535 = vmatpush1.xpose.msra.mxu0 0.0
    %1536 = vmatprep.subr.mxu0 0.0
    %1537 = vmatpush1.xpose.msra.mxu0 0.0
    %1538 = vmatprep.subr.mxu0 0.0
    %1539 = vmatpush1.xpose.msra.mxu0 0.0
    %1540 = vmatprep.subr.mxu0 0.0
    %1541 = vmatpush1.xpose.msra.mxu0 0.0
    %1542 = vmatprep.subr.mxu0 0.0
    %1543 = vmatpush1.xpose.msra.mxu0 0.0
    %1544 = vmatprep.subr.mxu0 0.0
    %1545 = vmatpush1.xpose.msra.mxu0 0.0
    %1546 = vmatprep.subr.mxu0 0.0
    %1547 = vmatpush1.xpose.msra.mxu0 0.0
    %1548 = vmatprep.subr.mxu0 0.0
    %1549 = vmatpush1.xpose.msra.mxu0 0.0
    %1550 = vmatprep.subr.mxu0 0.0
    %1551 = vmatpush1.xpose.msra.mxu0 0.0
    %1552 = vmatprep.subr.mxu0 0.0
    %1553 = vmatpush1.xpose.msra.mxu0 0.0
    %1554 = vmatprep.subr.mxu0 0.0
    %1555 = vmatpush1.xpose.msra.mxu0 0.0
    %1556 = vmatprep.subr.mxu0 0.0
    %1557 = vmatpush1.xpose.msra.mxu0 0.0
    %1558 = vmatprep.subr.mxu0 0.0
    %1559 = vmatpush1.xpose.msra.mxu0 0.0
    %1560 = vmatprep.subr.mxu0 0.0
    %1561 = vmatpush1.xpose.msra.mxu0 0.0
    %1562 = vmatprep.subr.mxu0 0.0
    %1563 = vmatpush1.xpose.msra.mxu0 0.0
    %1564 = vmatprep.subr.mxu0 0.0
    %1565 = vmatpush1.xpose.msra.mxu0 0.0
    %1566 = vmatprep.subr.mxu0 0.0
    %1567 = vmatpush1.xpose.msra.mxu0 0.0
    %1568 = vmatprep.subr.mxu0 0.0
    %1569 = vmatpush1.xpose.msra.mxu0 0.0
    %1570 = vmatprep.mubr.f32.mxu0 0.0
    %1571 = vmatmul.mubr.f32.gmra.mrb[0].mxu0 %v1471
    %v1572 = vpop.f32.mrb[0].mxu0
    %v1573 = vadd.f32 %v167, %v1572
    %v1574 = vpop.f32.mrb[0].mxu0
    %1575 = vmatprep.mubr.f32.mxu0 0.0
    %1576 = vmatmul.mubr.f32.gmra.mrb[0].mxu0 %v1474
    %v1577 = vpop.f32.mrb[0].mxu0
    %v1578 = vadd.f32 %v168, %v1577
    %v1579 = vpop.f32.mrb[0].mxu0
    %1580 = vmatprep.mubr.f32.mxu0 0.0
    %1581 = vmatmul.mubr.f32.gmra.mrb[0].mxu0 %v1477
    %v1582 = vpop.f32.mrb[0].mxu0
    %v1583 = vadd.f32 %v169, %v1582
    %v1584 = vpop.f32.mrb[0].mxu0
    %1585 = vmatprep.mubr.f32.mxu0 0.0
    %1586 = vmatmul.mubr.f32.gmra.mrb[0].mxu0 %v1480
    %v1587 = vpop.f32.mrb[0].mxu0
    %v1588 = vadd.f32 %v170, %v1587
    %v1589 = vpop.f32.mrb[0].mxu0
    %1590 = vmatprep.mubr.f32.mxu0 0.0
    %1591 = vmatmul.mubr.f32.gmra.mrb[0].mxu0 %v1483
    %v1592 = vpop.f32.mrb[0].mxu0
    %v1593 = vadd.f32 %v171, %v1592
    %v1594 = vpop.f32.mrb[0].mxu0
    %1595 = vmatprep.mubr.f32.mxu0 0.0
    %1596 = vmatmul.mubr.f32.gmra.mrb[0].mxu0 %v1486
    %v1597 = vpop.f32.mrb[0].mxu0
    %v1598 = vadd.f32 %v172, %v1597
    %v1599 = vpop.f32.mrb[0].mxu0
    %1600 = vmatprep.mubr.f32.mxu0 0.0
    %1601 = vmatmul.mubr.f32.gmra.mrb[0].mxu0 %v1489
    %v1602 = vpop.f32.mrb[0].mxu0
    %v1603 = vadd.f32 %v173, %v1602
    %v1604 = vpop.f32.mrb[0].mxu0
    %1605 = vmatprep.mubr.f32.mxu0 0.0
    %1606 = vmatmul.mubr.f32.gmra.mrb[0].mxu0 %v1492
    %v1607 = vpop.f32.mrb[0].mxu0
    %v1608 = vadd.f32 %v174, %v1607
    %v1609 = vpop.f32.mrb[0].mxu0
    %1610 = vdwg.mxu0
    %v1611 = vsel %vm200, %v1573, -inf
    %1612 = vmax.xlane.f32.xlu0 %v1611
    %v1613 = vpop.xlane.xlu0 %1612
    %v1614 = vsel %vm200, %v1578, -inf
    %1615 = vmax.xlane.f32.xlu0 %v1614
    %v1616 = vpop.xlane.xlu0 %1615
    %v1617 = vsel %vm200, %v1583, -inf
    %1618 = vmax.xlane.f32.xlu0 %v1617
    %v1619 = vpop.xlane.xlu0 %1618
    %v1620 = vsel %vm200, %v1588, -inf
    %1621 = vmax.xlane.f32.xlu0 %v1620
    %v1622 = vpop.xlane.xlu0 %1621
    %v1623 = vsel %vm200, %v1593, -inf
    %1624 = vmax.xlane.f32.xlu0 %v1623
    %v1625 = vpop.xlane.xlu0 %1624
    %v1626 = vsel %vm200, %v1598, -inf
    %1627 = vmax.xlane.f32.xlu0 %v1626
    %v1628 = vpop.xlane.xlu0 %1627
    %v1629 = vsel %vm200, %v1603, -inf
    %1630 = vmax.xlane.f32.xlu0 %v1629
    %v1631 = vpop.xlane.xlu0 %1630
    %v1632 = vsel %vm200, %v1608, -inf
    %1633 = vmax.xlane.f32.xlu0 %v1632
    %v1634 = vpop.xlane.xlu0 %1633
    %v1635 = vsub.f32 %v1573, %v1613
    %v1636 = vsub.f32 %v1578, %v1616
    %v1637 = vsub.f32 %v1583, %v1619
    %v1638 = vsub.f32 %v1588, %v1622
    %v1639 = vsub.f32 %v1593, %v1625
    %v1640 = vsub.f32 %v1598, %v1628
    %v1641 = vsub.f32 %v1603, %v1631
    %v1642 = vsub.f32 %v1608, %v1634
    %v1643 = vmul.f32 %v1635, 1.442695
    %v1644 = vpow.pop %v1643
    %v1645 = vmul.f32 %v1636, 1.442695
    %v1646 = vpow.pop %v1645
    %v1647 = vmul.f32 %v1637, 1.442695
    %v1648 = vpow.pop %v1647
    %v1649 = vmul.f32 %v1638, 1.442695
    %v1650 = vpow.pop %v1649
    %v1651 = vmul.f32 %v1639, 1.442695
    %v1652 = vpow.pop %v1651
    %v1653 = vmul.f32 %v1640, 1.442695
    %v1654 = vpow.pop %v1653
    %v1655 = vmul.f32 %v1641, 1.442695
    %v1656 = vpow.pop %v1655
    %v1657 = vmul.f32 %v1642, 1.442695
    %v1658 = vpow.pop %v1657
    %v1659 = vsel %vm200, %v1644, 0.0
    %1660 = vadd.xlane.f32.xlu0 %v1659
    %v1661 = vpop.xlane.xlu0 %1660
    %v1662 = vsel %vm200, %v1646, 0.0
    %1663 = vadd.xlane.f32.xlu0 %v1662
    %v1664 = vpop.xlane.xlu0 %1663
    %v1665 = vsel %vm200, %v1648, 0.0
    %1666 = vadd.xlane.f32.xlu0 %v1665
    %v1667 = vpop.xlane.xlu0 %1666
    %v1668 = vsel %vm200, %v1650, 0.0
    %1669 = vadd.xlane.f32.xlu0 %v1668
    %v1670 = vpop.xlane.xlu0 %1669
    %v1671 = vsel %vm200, %v1652, 0.0
    %1672 = vadd.xlane.f32.xlu0 %v1671
    %v1673 = vpop.xlane.xlu0 %1672
    %v1674 = vsel %vm200, %v1654, 0.0
    %1675 = vadd.xlane.f32.xlu0 %v1674
    %v1676 = vpop.xlane.xlu0 %1675
    %v1677 = vsel %vm200, %v1656, 0.0
    %1678 = vadd.xlane.f32.xlu0 %v1677
    %v1679 = vpop.xlane.xlu0 %1678
    %v1680 = vsel %vm200, %v1658, 0.0
    %1681 = vadd.xlane.f32.xlu0 %v1680
    %v1682 = vpop.xlane.xlu0 %1681
    %v1683 = vrcp.pop %v1661
    %v1684 = vmul.f32 %v1644, %v1683
    %v1685 = vrcp.pop %v1664
    %v1686 = vmul.f32 %v1646, %v1685
    %v1687 = vrcp.pop %v1667
    %v1688 = vmul.f32 %v1648, %v1687
    %v1689 = vrcp.pop %v1670
    %v1690 = vmul.f32 %v1650, %v1689
    %v1691 = vrcp.pop %v1673
    %v1692 = vmul.f32 %v1652, %v1691
    %v1693 = vrcp.pop %v1676
    %v1694 = vmul.f32 %v1654, %v1693
    %v1695 = vrcp.pop %v1679
    %v1696 = vmul.f32 %v1656, %v1695
    %v1697 = vrcp.pop %v1682
    %v1698 = vmul.f32 %v1658, %v1697
    %v1700 = vsel %vm200, %v1684, 0
    %v1703 = vsel %vm200, %v1686, 0
    %v1706 = vsel %vm200, %v1688, 0
    %v1709 = vsel %vm200, %v1690, 0
    %v1712 = vsel %vm200, %v1692, 0
    %v1715 = vsel %vm200, %v1694, 0
    %v1718 = vsel %vm200, %v1696, 0
    %v1721 = vsel %vm200, %v1698, 0
    %1723 = vmatprep.subr.mxu0 0.0
    %1724 = vmatpush1.msra.mxu0 %v386
    %1725 = vmatprep.subr.mxu0 0.0
    %1726 = vmatpush1.msra.mxu0 %v391
    %1727 = vmatprep.subr.mxu0 0.0
    %1728 = vmatpush1.msra.mxu0 %v396
    %1729 = vmatprep.subr.mxu0 0.0
    %1730 = vmatpush1.msra.mxu0 %v401
    %1731 = vmatprep.subr.mxu0 0.0
    %1732 = vmatpush1.msra.mxu0 0.0
    %1733 = vmatprep.subr.mxu0 0.0
    %1734 = vmatpush1.msra.mxu0 0.0
    %1735 = vmatprep.subr.mxu0 0.0
    %1736 = vmatpush1.msra.mxu0 0.0
    %1737 = vmatprep.subr.mxu0 0.0
    %1738 = vmatpush1.msra.mxu0 0.0
    %1739 = vmatprep.subr.mxu0 0.0
    %1740 = vmatpush1.msra.mxu0 0.0
    %1741 = vmatprep.subr.mxu0 0.0
    %1742 = vmatpush1.msra.mxu0 0.0
    %1743 = vmatprep.subr.mxu0 0.0
    %1744 = vmatpush1.msra.mxu0 0.0
    %1745 = vmatprep.subr.mxu0 0.0
    %1746 = vmatpush1.msra.mxu0 0.0
    %1747 = vmatprep.subr.mxu0 0.0
    %1748 = vmatpush1.msra.mxu0 0.0
    %1749 = vmatprep.subr.mxu0 0.0
    %1750 = vmatpush1.msra.mxu0 0.0
    %1751 = vmatprep.subr.mxu0 0.0
    %1752 = vmatpush1.msra.mxu0 0.0
    %1753 = vmatprep.subr.mxu0 0.0
    %1754 = vmatpush1.msra.mxu0 0.0
    %1755 = vmatprep.subr.mxu0 0.0
    %1756 = vmatpush1.msra.mxu0 0.0
    %1757 = vmatprep.subr.mxu0 0.0
    %1758 = vmatpush1.msra.mxu0 0.0
    %1759 = vmatprep.subr.mxu0 0.0
    %1760 = vmatpush1.msra.mxu0 0.0
    %1761 = vmatprep.subr.mxu0 0.0
    %1762 = vmatpush1.msra.mxu0 0.0
    %1763 = vmatprep.subr.mxu0 0.0
    %1764 = vmatpush1.msra.mxu0 0.0
    %1765 = vmatprep.subr.mxu0 0.0
    %1766 = vmatpush1.msra.mxu0 0.0
    %1767 = vmatprep.subr.mxu0 0.0
    %1768 = vmatpush1.msra.mxu0 0.0
    %1769 = vmatprep.subr.mxu0 0.0
    %1770 = vmatpush1.msra.mxu0 0.0
    %1771 = vmatprep.subr.mxu0 0.0
    %1772 = vmatpush1.msra.mxu0 0.0
    %1773 = vmatprep.subr.mxu0 0.0
    %1774 = vmatpush1.msra.mxu0 0.0
    %1775 = vmatprep.subr.mxu0 0.0
    %1776 = vmatpush1.msra.mxu0 0.0
    %1777 = vmatprep.subr.mxu0 0.0
    %1778 = vmatpush1.msra.mxu0 0.0
    %1779 = vmatprep.subr.mxu0 0.0
    %1780 = vmatpush1.msra.mxu0 0.0
    %1781 = vmatprep.subr.mxu0 0.0
    %1782 = vmatpush1.msra.mxu0 0.0
    %1783 = vmatprep.subr.mxu0 0.0
    %1784 = vmatpush1.msra.mxu0 0.0
    %1785 = vmatprep.subr.mxu0 0.0
    %1786 = vmatpush1.msra.mxu0 0.0
    %1787 = vmatprep.mubr.f32.mxu0 0.0
    %1788 = vmatmul.mubr.f32.gmra.mrb[0].mxu0 %v1700
    %v1789 = vpop.f32.mrb[0].mxu0
    %v1790 = vadd.f32 0.0, %v1789
    %v1791 = vpop.f32.mrb[0].mxu0
    %1792 = vmatprep.mubr.f32.mxu0 0.0
    %1793 = vmatmul.mubr.f32.gmra.mrb[0].mxu0 %v1703
    %v1794 = vpop.f32.mrb[0].mxu0
    %v1795 = vadd.f32 0.0, %v1794
    %v1796 = vpop.f32.mrb[0].mxu0
    %1797 = vmatprep.mubr.f32.mxu0 0.0
    %1798 = vmatmul.mubr.f32.gmra.mrb[0].mxu0 %v1706
    %v1799 = vpop.f32.mrb[0].mxu0
    %v1800 = vadd.f32 0.0, %v1799
    %v1801 = vpop.f32.mrb[0].mxu0
    %1802 = vmatprep.mubr.f32.mxu0 0.0
    %1803 = vmatmul.mubr.f32.gmra.mrb[0].mxu0 %v1709
    %v1804 = vpop.f32.mrb[0].mxu0
    %v1805 = vadd.f32 0.0, %v1804
    %v1806 = vpop.f32.mrb[0].mxu0
    %1807 = vmatprep.mubr.f32.mxu0 0.0
    %1808 = vmatmul.mubr.f32.gmra.mrb[0].mxu0 %v1712
    %v1809 = vpop.f32.mrb[0].mxu0
    %v1810 = vadd.f32 0.0, %v1809
    %v1811 = vpop.f32.mrb[0].mxu0
    %1812 = vmatprep.mubr.f32.mxu0 0.0
    %1813 = vmatmul.mubr.f32.gmra.mrb[0].mxu0 %v1715
    %v1814 = vpop.f32.mrb[0].mxu0
    %v1815 = vadd.f32 0.0, %v1814
    %v1816 = vpop.f32.mrb[0].mxu0
    %1817 = vmatprep.mubr.f32.mxu0 0.0
    %1818 = vmatmul.mubr.f32.gmra.mrb[0].mxu0 %v1718
    %v1819 = vpop.f32.mrb[0].mxu0
    %v1820 = vadd.f32 0.0, %v1819
    %v1821 = vpop.f32.mrb[0].mxu0
    %1822 = vmatprep.mubr.f32.mxu0 0.0
    %1823 = vmatmul.mubr.f32.gmra.mrb[0].mxu0 %v1721
    %v1824 = vpop.f32.mrb[0].mxu0
    %v1825 = vadd.f32 0.0, %v1824
    %v1826 = vpop.f32.mrb[0].mxu0
    %1827 = vdwg.mxu0
    %v1828 = vmul.f32 %v1790, %v29
    %v1829 = vmul.f32 %v1795, %v29
    %v1830 = vmul.f32 %v1800, %v33
    %v1831 = vmul.f32 %v1805, %v33
    %v1832 = vadd.f32 %v1828, %v1830
    %v1833 = vadd.f32 %v1829, %v1831
    %v1834 = vmul.f32 %v1810, %v37
    %v1835 = vmul.f32 %v1815, %v37
    %v1836 = vadd.f32 %v1832, %v1834
    %v1837 = vadd.f32 %v1833, %v1835
    %v1838 = vmul.f32 %v1820, %v41
    %v1839 = vmul.f32 %v1825, %v41
    %v1840 = vadd.f32 %v1836, %v1838
    %v1841 = vadd.f32 %v1837, %v1839
    %v1842 = vld [vmem:[%s4 + $0xe0] sm:$0xff]
    %v1843 = vld [vmem:[%s4 + $0xe8] sm:$0xff]
    %v1844 = vld [vmem:[%s4 + $0xf0] sm:$0xff]
    %v1845 = vld [vmem:[%s4 + $0xf8] sm:$0xff]
    %v1846 = vld [vmem:[%s5 + $0x7] sm:$0x1]
    %v1847 = vlaneseq
    %v1848 = vshrl.u32 %v1847, 7
    %v1849 = vsub.s32 0, %v1848
    %v1850 = vrot.slane %v1846, %v1849
    %v1852 = vsel %vm200, %v1840, 0
    %v1855 = vsel %vm200, %v1841, 0
    %1857 = vmatprep.subr.mxu0 0.0
    %1858 = vmatpush1.msra.mxu0 %v1842
    %1859 = vmatprep.subr.mxu0 0.0
    %1860 = vmatpush1.msra.mxu0 %v1843
    %1861 = vmatprep.subr.mxu0 0.0
    %1862 = vmatpush1.msra.mxu0 %v1844
    %1863 = vmatprep.subr.mxu0 0.0
    %1864 = vmatpush1.msra.mxu0 %v1845
    %1865 = vmatprep.subr.mxu0 0.0
    %1866 = vmatpush1.msra.mxu0 0.0
    %1867 = vmatprep.subr.mxu0 0.0
    %1868 = vmatpush1.msra.mxu0 0.0
    %1869 = vmatprep.subr.mxu0 0.0
    %1870 = vmatpush1.msra.mxu0 0.0
    %1871 = vmatprep.subr.mxu0 0.0
    %1872 = vmatpush1.msra.mxu0 0.0
    %1873 = vmatprep.subr.mxu0 0.0
    %1874 = vmatpush1.msra.mxu0 0.0
    %1875 = vmatprep.subr.mxu0 0.0
    %1876 = vmatpush1.msra.mxu0 0.0
    %1877 = vmatprep.subr.mxu0 0.0
    %1878 = vmatpush1.msra.mxu0 0.0
    %1879 = vmatprep.subr.mxu0 0.0
    %1880 = vmatpush1.msra.mxu0 0.0
    %1881 = vmatprep.subr.mxu0 0.0
    %1882 = vmatpush1.msra.mxu0 0.0
    %1883 = vmatprep.subr.mxu0 0.0
    %1884 = vmatpush1.msra.mxu0 0.0
    %1885 = vmatprep.subr.mxu0 0.0
    %1886 = vmatpush1.msra.mxu0 0.0
    %1887 = vmatprep.subr.mxu0 0.0
    %1888 = vmatpush1.msra.mxu0 0.0
    %1889 = vmatprep.subr.mxu0 0.0
    %1890 = vmatpush1.msra.mxu0 0.0
    %1891 = vmatprep.subr.mxu0 0.0
    %1892 = vmatpush1.msra.mxu0 0.0
    %1893 = vmatprep.subr.mxu0 0.0
    %1894 = vmatpush1.msra.mxu0 0.0
    %1895 = vmatprep.subr.mxu0 0.0
    %1896 = vmatpush1.msra.mxu0 0.0
    %1897 = vmatprep.subr.mxu0 0.0
    %1898 = vmatpush1.msra.mxu0 0.0
    %1899 = vmatprep.subr.mxu0 0.0
    %1900 = vmatpush1.msra.mxu0 0.0
    %1901 = vmatprep.subr.mxu0 0.0
    %1902 = vmatpush1.msra.mxu0 0.0
    %1903 = vmatprep.subr.mxu0 0.0
    %1904 = vmatpush1.msra.mxu0 0.0
    %1905 = vmatprep.subr.mxu0 0.0
    %1906 = vmatpush1.msra.mxu0 0.0
    %1907 = vmatprep.subr.mxu0 0.0
    %1908 = vmatpush1.msra.mxu0 0.0
    %1909 = vmatprep.subr.mxu0 0.0
    %1910 = vmatpush1.msra.mxu0 0.0
    %1911 = vmatprep.subr.mxu0 0.0
    %1912 = vmatpush1.msra.mxu0 0.0
    %1913 = vmatprep.subr.mxu0 0.0
    %1914 = vmatpush1.msra.mxu0 0.0
    %1915 = vmatprep.subr.mxu0 0.0
    %1916 = vmatpush1.msra.mxu0 0.0
    %1917 = vmatprep.subr.mxu0 0.0
    %1918 = vmatpush1.msra.mxu0 0.0
    %1919 = vmatprep.subr.mxu0 0.0
    %1920 = vmatpush1.msra.mxu0 0.0
    %1921 = vmatprep.mubr.f32.mxu0 0.0
    %1922 = vmatmul.mubr.f32.gmra.mrb[0].mxu0 %v1852
    %v1923 = vpop.f32.mrb[0].mxu0
    %v1924 = vadd.f32 %v1850, %v1923
    %v1925 = vpop.f32.mrb[0].mxu0
    %1926 = vmatprep.mubr.f32.mxu0 0.0
    %1927 = vmatmul.mubr.f32.gmra.mrb[0].mxu0 %v1855
    %v1928 = vpop.f32.mrb[0].mxu0
    %v1929 = vadd.f32 %v1850, %v1928
    %v1930 = vpop.f32.mrb[0].mxu0
    %1931 = vdwg.mxu0
    %v1932 = vadd.f32 %v1366, %v1924
    %v1933 = vadd.f32 %v1367, %v1929
    %v1934 = vld [vmem:[%s5 + $0xc] sm:$0x1]
    %v1935 = vld [vmem:[%s5 + $0xd] sm:$0x1]
    %v1936 = vsel %vm200, %v1932, 0.0
    %1937 = vadd.xlane.f32.xlu0 %v1936
    %v1938 = vpop.xlane.xlu0 %1937
    %v1939 = vsel %vm200, %v1933, 0.0
    %1940 = vadd.xlane.f32.xlu0 %v1939
    %v1941 = vpop.xlane.xlu0 %1940
    %v1942 = vmul.f32 %v1938, %v1335
    %v1943 = vmul.f32 %v1941, %v1335
    %v1944 = vsub.f32 %v1932, %v1942
    %v1945 = vsub.f32 %v1933, %v1943
    %v1946 = vmul.f32 %v1944, %v1944
    %v1947 = vmul.f32 %v1945, %v1945
    %v1948 = vsel %vm200, %v1946, 0.0
    %1949 = vadd.xlane.f32.xlu0 %v1948
    %v1950 = vpop.xlane.xlu0 %1949
    %v1951 = vsel %vm200, %v1947, 0.0
    %1952 = vadd.xlane.f32.xlu0 %v1951
    %v1953 = vpop.xlane.xlu0 %1952
    %v1954 = vmul.f32 %v1950, %v1335
    %v1955 = vmul.f32 %v1953, %v1335
    %v1956 = vadd.f32 %v1954, 1e-05
    %v1957 = vadd.f32 %v1955, 1e-05
    %v1958 = vrsqrt.pop %v1956
    %v1959 = vrsqrt.pop %v1957
    %v1960 = vmul.f32 %v1944, %v1958
    %v1961 = vmul.f32 %v1945, %v1959
    %v1962 = vlaneseq
    %v1963 = vshrl.u32 %v1962, 7
    %v1964 = vsub.s32 0, %v1963
    %v1965 = vrot.slane %v1934, %v1964
    %v1966 = vmul.f32 %v1960, %v1965
    %v1967 = vmul.f32 %v1961, %v1965
    %v1968 = vlaneseq
    %v1969 = vshrl.u32 %v1968, 7
    %v1970 = vsub.s32 0, %v1969
    %v1971 = vrot.slane %v1935, %v1970
    %v1972 = vadd.f32 %v1966, %v1971
    %v1973 = vadd.f32 %v1967, %v1971
    %v1974 = vld [vmem:[%s4 + $0x100] sm:$0xff]
    %v1975 = vld [vmem:[%s4 + $0x108] sm:$0xff]
    %v1976 = vld [vmem:[%s4 + $0x110] sm:$0xff]
    %v1977 = vld [vmem:[%s4 + $0x118] sm:$0xff]
    %v1978 = vld [vmem:[%s5 + $0x8] sm:$0x1]
    %v1979 = vlaneseq
    %v1980 = vshrl.u32 %v1979, 7
    %v1981 = vsub.s32 0, %v1980
    %v1982 = vrot.slane %v1978, %v1981
    %v1984 = vsel %vm200, %v1972, 0
    %v1987 = vsel %vm200, %v1973, 0
    %1989 = vmatprep.subr.mxu0 0.0
    %1990 = vmatpush1.msra.mxu0 %v1974
    %1991 = vmatprep.subr.mxu0 0.0
    %1992 = vmatpush1.msra.mxu0 %v1975
    %1993 = vmatprep.subr.mxu0 0.0
    %1994 = vmatpush1.msra.mxu0 %v1976
    %1995 = vmatprep.subr.mxu0 0.0
    %1996 = vmatpush1.msra.mxu0 %v1977
    %1997 = vmatprep.subr.mxu0 0.0
    %1998 = vmatpush1.msra.mxu0 0.0
    %1999 = vmatprep.subr.mxu0 0.0
    %2000 = vmatpush1.msra.mxu0 0.0
    %2001 = vmatprep.subr.mxu0 0.0
    %2002 = vmatpush1.msra.mxu0 0.0
    %2003 = vmatprep.subr.mxu0 0.0
    %2004 = vmatpush1.msra.mxu0 0.0
    %2005 = vmatprep.subr.mxu0 0.0
    %2006 = vmatpush1.msra.mxu0 0.0
    %2007 = vmatprep.subr.mxu0 0.0
    %2008 = vmatpush1.msra.mxu0 0.0
    %2009 = vmatprep.subr.mxu0 0.0
    %2010 = vmatpush1.msra.mxu0 0.0
    %2011 = vmatprep.subr.mxu0 0.0
    %2012 = vmatpush1.msra.mxu0 0.0
    %2013 = vmatprep.subr.mxu0 0.0
    %2014 = vmatpush1.msra.mxu0 0.0
    %2015 = vmatprep.subr.mxu0 0.0
    %2016 = vmatpush1.msra.mxu0 0.0
    %2017 = vmatprep.subr.mxu0 0.0
    %2018 = vmatpush1.msra.mxu0 0.0
    %2019 = vmatprep.subr.mxu0 0.0
    %2020 = vmatpush1.msra.mxu0 0.0
    %2021 = vmatprep.subr.mxu0 0.0
    %2022 = vmatpush1.msra.mxu0 0.0
    %2023 = vmatprep.subr.mxu0 0.0
    %2024 = vmatpush1.msra.mxu0 0.0
    %2025 = vmatprep.subr.mxu0 0.0
    %2026 = vmatpush1.msra.mxu0 0.0
    %2027 = vmatprep.subr.mxu0 0.0
    %2028 = vmatpush1.msra.mxu0 0.0
    %2029 = vmatprep.subr.mxu0 0.0
    %2030 = vmatpush1.msra.mxu0 0.0
    %2031 = vmatprep.subr.mxu0 0.0
    %2032 = vmatpush1.msra.mxu0 0.0
    %2033 = vmatprep.subr.mxu0 0.0
    %2034 = vmatpush1.msra.mxu0 0.0
    %2035 = vmatprep.subr.mxu0 0.0
    %2036 = vmatpush1.msra.mxu0 0.0
    %2037 = vmatprep.subr.mxu0 0.0
    %2038 = vmatpush1.msra.mxu0 0.0
    %2039 = vmatprep.subr.mxu0 0.0
    %2040 = vmatpush1.msra.mxu0 0.0
    %2041 = vmatprep.subr.mxu0 0.0
    %2042 = vmatpush1.msra.mxu0 0.0
    %2043 = vmatprep.subr.mxu0 0.0
    %2044 = vmatpush1.msra.mxu0 0.0
    %2045 = vmatprep.subr.mxu0 0.0
    %2046 = vmatpush1.msra.mxu0 0.0
    %2047 = vmatprep.subr.mxu0 0.0
    %2048 = vmatpush1.msra.mxu0 0.0
    %2049 = vmatprep.subr.mxu0 0.0
    %2050 = vmatpush1.msra.mxu0 0.0
    %2051 = vmatprep.subr.mxu0 0.0
    %2052 = vmatpush1.msra.mxu0 0.0
    %2053 = vmatprep.mubr.f32.mxu0 0.0
    %2054 = vmatmul.mubr.f32.gmra.mrb[0].mxu0 %v1984
    %v2055 = vpop.f32.mrb[0].mxu0
    %v2056 = vadd.f32 %v1982, %v2055
    %v2057 = vpop.f32.mrb[0].mxu0
    %2058 = vmatprep.mubr.f32.mxu0 0.0
    %2059 = vmatmul.mubr.f32.gmra.mrb[0].mxu0 %v1987
    %v2060 = vpop.f32.mrb[0].mxu0
    %v2061 = vadd.f32 %v1982, %v2060
    %v2062 = vpop.f32.mrb[0].mxu0
    %2063 = vdwg.mxu0
    %v2064 = vmax.f32 %v2056, 0.0
    %v2065 = vmax.f32 %v2061, 0.0
    %v2066 = vld [vmem:[%s4 + $0x120] sm:$0xff]
    %v2067 = vld [vmem:[%s4 + $0x128] sm:$0xff]
    %v2068 = vld [vmem:[%s4 + $0x130] sm:$0xff]
    %v2069 = vld [vmem:[%s4 + $0x138] sm:$0xff]
    %v2070 = vld [vmem:[%s4 + $0x140] sm:$0xff]
    %v2071 = vld [vmem:[%s4 + $0x148] sm:$0xff]
    %v2072 = vld [vmem:[%s4 + $0x150] sm:$0xff]
    %v2073 = vld [vmem:[%s4 + $0x158] sm:$0xff]
    %v2074 = vld [vmem:[%s5 + $0x9] sm:$0x1]
    %v2075 = vlaneseq
    %v2076 = vshrl.u32 %v2075, 7
    %v2077 = vsub.s32 0, %v2076
    %v2078 = vrot.slane %v2074, %v2077
    %vm2079 = vcmask 523264
    %v2081 = vsel %vm2079, %v2064, 0
    %v2084 = vsel %vm2079, %v2065, 0
    %2086 = vmatprep.subr.mxu0 0.0
    %2087 = vmatpush1.msra.mxu0 %v2066
    %2088 = vmatprep.subr.mxu0 0.0
    %2089 = vmatpush1.msra.mxu0 %v2067
    %2090 = vmatprep.subr.mxu0 0.0
    %2091 = vmatpush1.msra.mxu0 %v2068
    %2092 = vmatprep.subr.mxu0 0.0
    %2093 = vmatpush1.msra.mxu0 %v2069
    %2094 = vmatprep.subr.mxu0 0.0
    %2095 = vmatpush1.msra.mxu0 %v2070
    %2096 = vmatprep.subr.mxu0 0.0
    %2097 = vmatpush1.msra.mxu0 %v2071
    %2098 = vmatprep.subr.mxu0 0.0
    %2099 = vmatpush1.msra.mxu0 %v2072
    %2100 = vmatprep.subr.mxu0 0.0
    %2101 = vmatpush1.msra.mxu0 %v2073
    %2102 = vmatprep.subr.mxu0 0.0
    %2103 = vmatpush1.msra.mxu0 0.0
    %2104 = vmatprep.subr.mxu0 0.0
    %2105 = vmatpush1.msra.mxu0 0.0
    %2106 = vmatprep.subr.mxu0 0.0
    %2107 = vmatpush1.msra.mxu0 0.0
    %2108 = vmatprep.subr.mxu0 0.0
    %2109 = vmatpush1.msra.mxu0 0.0
    %2110 = vmatprep.subr.mxu0 0.0
    %2111 = vmatpush1.msra.mxu0 0.0
    %2112 = vmatprep.subr.mxu0 0.0
    %2113 = vmatpush1.msra.mxu0 0.0
    %2114 = vmatprep.subr.mxu0 0.0
    %2115 = vmatpush1.msra.mxu0 0.0
    %2116 = vmatprep.subr.mxu0 0.0
    %2117 = vmatpush1.msra.mxu0 0.0
    %2118 = vmatprep.subr.mxu0 0.0
    %2119 = vmatpush1.msra.mxu0 0.0
    %2120 = vmatprep.subr.mxu0 0.0
    %2121 = vmatpush1.msra.mxu0 0.0
    %2122 = vmatprep.subr.mxu0 0.0
    %2123 = vmatpush1.msra.mxu0 0.0
    %2124 = vmatprep.subr.mxu0 0.0
    %2125 = vmatpush1.msra.mxu0 0.0
    %2126 = vmatprep.subr.mxu0 0.0
    %2127 = vmatpush1.msra.mxu0 0.0
    %2128 = vmatprep.subr.mxu0 0.0
    %2129 = vmatpush1.msra.mxu0 0.0
    %2130 = vmatprep.subr.mxu0 0.0
    %2131 = vmatpush1.msra.mxu0 0.0
    %2132 = vmatprep.subr.mxu0 0.0
    %2133 = vmatpush1.msra.mxu0 0.0
    %2134 = vmatprep.subr.mxu0 0.0
    %2135 = vmatpush1.msra.mxu0 0.0
    %2136 = vmatprep.subr.mxu0 0.0
    %2137 = vmatpush1.msra.mxu0 0.0
    %2138 = vmatprep.subr.mxu0 0.0
    %2139 = vmatpush1.msra.mxu0 0.0
    %2140 = vmatprep.subr.mxu0 0.0
    %2141 = vmatpush1.msra.mxu0 0.0
    %2142 = vmatprep.subr.mxu0 0.0
    %2143 = vmatpush1.msra.mxu0 0.0
    %2144 = vmatprep.subr.mxu0 0.0
    %2145 = vmatpush1.msra.mxu0 0.0
    %2146 = vmatprep.subr.mxu0 0.0
    %2147 = vmatpush1.msra.mxu0 0.0
    %2148 = vmatprep.subr.mxu0 0.0
    %2149 = vmatpush1.msra.mxu0 0.0
    %2150 = vmatprep.mubr.f32.mxu0 0.0
    %2151 = vmatmul.mubr.f32.gmra.mrb[0].mxu0 %v2081
    %v2152 = vpop.f32.mrb[0].mxu0
    %v2153 = vadd.f32 %v2078, %v2152
    %v2154 = vpop.f32.mrb[0].mxu0
    %2155 = vmatprep.mubr.f32.mxu0 0.0
    %2156 = vmatmul.mubr.f32.gmra.mrb[0].mxu0 %v2084
    %v2157 = vpop.f32.mrb[0].mxu0
    %v2158 = vadd.f32 %v2078, %v2157
    %v2159 = vpop.f32.mrb[0].mxu0
    %2160 = vdwg.mxu0
    %v2161 = vadd.f32 %v1972, %v2153
    %v2162 = vadd.f32 %v1973, %v2158
    %v2163 = vld [vmem:[%s5 + $0xe] sm:$0x1]
    %v2164 = vld [vmem:[%s5 + $0xf] sm:$0x1]
    %v2165 = vsel %vm200, %v2161, 0.0
    %2166 = vadd.xlane.f32.xlu0 %v2165
    %v2167 = vpop.xlane.xlu0 %2166
    %v2168 = vsel %vm200, %v2162, 0.0
    %2169 = vadd.xlane.f32.xlu0 %v2168
    %v2170 = vpop.xlane.xlu0 %2169
    %v2171 = vmul.f32 %v2167, %v1335
    %v2172 = vmul.f32 %v2170, %v1335
    %v2173 = vsub.f32 %v2161, %v2171
    %v2174 = vsub.f32 %v2162, %v2172
    %v2175 = vmul.f32 %v2173, %v2173
    %v2176 = vmul.f32 %v2174, %v2174
    %v2177 = vsel %vm200, %v2175, 0.0
    %2178 = vadd.xlane.f32.xlu0 %v2177
    %v2179 = vpop.xlane.xlu0 %2178
    %v2180 = vsel %vm200, %v2176, 0.0
    %2181 = vadd.xlane.f32.xlu0 %v2180
    %v2182 = vpop.xlane.xlu0 %2181
    %v2183 = vmul.f32 %v2179, %v1335
    %v2184 = vmul.f32 %v2182, %v1335
    %v2185 = vadd.f32 %v2183, 1e-05
    %v2186 = vadd.f32 %v2184, 1e-05
    %v2187 = vrsqrt.pop %v2185
    %v2188 = vrsqrt.pop %v2186
    %v2189 = vmul.f32 %v2173, %v2187
    %v2190 = vmul.f32 %v2174, %v2188
    %v2191 = vlaneseq
    %v2192 = vshrl.u32 %v2191, 7
    %v2193 = vsub.s32 0, %v2192
    %v2194 = vrot.slane %v2163, %v2193
    %v2195 = vmul.f32 %v2189, %v2194
    %v2196 = vmul.f32 %v2190, %v2194
    %v2197 = vlaneseq
    %v2198 = vshrl.u32 %v2197, 7
    %v2199 = vsub.s32 0, %v2198
    %v2200 = vrot.slane %v2164, %v2199
    %v2201 = vadd.f32 %v2195, %v2200
    %v2202 = vadd.f32 %v2196, %v2200
    %v2203 = vadd.f32 %v2201, %v181
    %v2204 = vadd.f32 %v2202, %v182
    %v2205 = vld [vmem:[%s4 + $0x160] sm:$0xff]
    %v2206 = vld [vmem:[%s4 + $0x168] sm:$0xff]
    %v2207 = vld [vmem:[%s4 + $0x170] sm:$0xff]
    %v2208 = vld [vmem:[%s4 + $0x178] sm:$0xff]
    %v2209 = vld [vmem:[%s5 + $0x10] sm:$0x1]
    %v2210 = vlaneseq
    %v2211 = vshrl.u32 %v2210, 7
    %v2212 = vsub.s32 0, %v2211
    %v2213 = vrot.slane %v2209, %v2212
    %v2215 = vsel %vm200, %v2203, 0
    %v2218 = vsel %vm200, %v2204, 0
    %2220 = vmatprep.subr.mxu0 0.0
    %2221 = vmatpush1.msra.mxu0 %v2205
    %2222 = vmatprep.subr.mxu0 0.0
    %2223 = vmatpush1.msra.mxu0 %v2206
    %2224 = vmatprep.subr.mxu0 0.0
    %2225 = vmatpush1.msra.mxu0 %v2207
    %2226 = vmatprep.subr.mxu0 0.0
    %2227 = vmatpush1.msra.mxu0 %v2208
    %2228 = vmatprep.subr.mxu0 0.0
    %2229 = vmatpush1.msra.mxu0 0.0
    %2230 = vmatprep.subr.mxu0 0.0
    %2231 = vmatpush1.msra.mxu0 0.0
    %2232 = vmatprep.subr.mxu0 0.0
    %2233 = vmatpush1.msra.mxu0 0.0
    %2234 = vmatprep.subr.mxu0 0.0
    %2235 = vmatpush1.msra.mxu0 0.0
    %2236 = vmatprep.subr.mxu0 0.0
    %2237 = vmatpush1.msra.mxu0 0.0
    %2238 = vmatprep.subr.mxu0 0.0
    %2239 = vmatpush1.msra.mxu0 0.0
    %2240 = vmatprep.subr.mxu0 0.0
    %2241 = vmatpush1.msra.mxu0 0.0
    %2242 = vmatprep.subr.mxu0 0.0
    %2243 = vmatpush1.msra.mxu0 0.0
    %2244 = vmatprep.subr.mxu0 0.0
    %2245 = vmatpush1.msra.mxu0 0.0
    %2246 = vmatprep.subr.mxu0 0.0
    %2247 = vmatpush1.msra.mxu0 0.0
    %2248 = vmatprep.subr.mxu0 0.0
    %2249 = vmatpush1.msra.mxu0 0.0
    %2250 = vmatprep.subr.mxu0 0.0
    %2251 = vmatpush1.msra.mxu0 0.0
    %2252 = vmatprep.subr.mxu0 0.0
    %2253 = vmatpush1.msra.mxu0 0.0
    %2254 = vmatprep.subr.mxu0 0.0
    %2255 = vmatpush1.msra.mxu0 0.0
    %2256 = vmatprep.subr.mxu0 0.0
    %2257 = vmatpush1.msra.mxu0 0.0
    %2258 = vmatprep.subr.mxu0 0.0
    %2259 = vmatpush1.msra.mxu0 0.0
    %2260 = vmatprep.subr.mxu0 0.0
    %2261 = vmatpush1.msra.mxu0 0.0
    %2262 = vmatprep.subr.mxu0 0.0
    %2263 = vmatpush1.msra.mxu0 0.0
    %2264 = vmatprep.subr.mxu0 0.0
    %2265 = vmatpush1.msra.mxu0 0.0
    %2266 = vmatprep.subr.mxu0 0.0
    %2267 = vmatpush1.msra.mxu0 0.0
    %2268 = vmatprep.subr.mxu0 0.0
    %2269 = vmatpush1.msra.mxu0 0.0
    %2270 = vmatprep.subr.mxu0 0.0
    %2271 = vmatpush1.msra.mxu0 0.0
    %2272 = vmatprep.subr.mxu0 0.0
    %2273 = vmatpush1.msra.mxu0 0.0
    %2274 = vmatprep.subr.mxu0 0.0
    %2275 = vmatpush1.msra.mxu0 0.0
    %2276 = vmatprep.subr.mxu0 0.0
    %2277 = vmatpush1.msra.mxu0 0.0
    %2278 = vmatprep.subr.mxu0 0.0
    %2279 = vmatpush1.msra.mxu0 0.0
    %2280 = vmatprep.subr.mxu0 0.0
    %2281 = vmatpush1.msra.mxu0 0.0
    %2282 = vmatprep.subr.mxu0 0.0
    %2283 = vmatpush1.msra.mxu0 0.0
    %2284 = vmatprep.mubr.f32.mxu0 0.0
    %2285 = vmatmul.mubr.f32.gmra.mrb[0].mxu0 %v2215
    %v2286 = vpop.f32.mrb[0].mxu0
    %v2287 = vadd.f32 %v2213, %v2286
    %v2288 = vpop.f32.mrb[0].mxu0
    %2289 = vmatprep.mubr.f32.mxu0 0.0
    %2290 = vmatmul.mubr.f32.gmra.mrb[0].mxu0 %v2218
    %v2291 = vpop.f32.mrb[0].mxu0
    %v2292 = vadd.f32 %v2213, %v2291
    %v2293 = vpop.f32.mrb[0].mxu0
    %2294 = vdwg.mxu0
    %v2295 = vld [vmem:[%s4 + $0x180] sm:$0xff]
    %v2296 = vld [vmem:[%s4 + $0x188] sm:$0xff]
    %v2297 = vld [vmem:[%s4 + $0x190] sm:$0xff]
    %v2298 = vld [vmem:[%s4 + $0x198] sm:$0xff]
    %v2299 = vld [vmem:[%s5 + $0x11] sm:$0x1]
    %v2300 = vlaneseq
    %v2301 = vshrl.u32 %v2300, 7
    %v2302 = vsub.s32 0, %v2301
    %v2303 = vrot.slane %v2299, %v2302
    %2304 = vmatprep.subr.mxu0 0.0
    %2305 = vmatpush1.msra.mxu0 %v2295
    %2306 = vmatprep.subr.mxu0 0.0
    %2307 = vmatpush1.msra.mxu0 %v2296
    %2308 = vmatprep.subr.mxu0 0.0
    %2309 = vmatpush1.msra.mxu0 %v2297
    %2310 = vmatprep.subr.mxu0 0.0
    %2311 = vmatpush1.msra.mxu0 %v2298
    %2312 = vmatprep.subr.mxu0 0.0
    %2313 = vmatpush1.msra.mxu0 0.0
    %2314 = vmatprep.subr.mxu0 0.0
    %2315 = vmatpush1.msra.mxu0 0.0
    %2316 = vmatprep.subr.mxu0 0.0
    %2317 = vmatpush1.msra.mxu0 0.0
    %2318 = vmatprep.subr.mxu0 0.0
    %2319 = vmatpush1.msra.mxu0 0.0
    %2320 = vmatprep.subr.mxu0 0.0
    %2321 = vmatpush1.msra.mxu0 0.0
    %2322 = vmatprep.subr.mxu0 0.0
    %2323 = vmatpush1.msra.mxu0 0.0
    %2324 = vmatprep.subr.mxu0 0.0
    %2325 = vmatpush1.msra.mxu0 0.0
    %2326 = vmatprep.subr.mxu0 0.0
    %2327 = vmatpush1.msra.mxu0 0.0
    %2328 = vmatprep.subr.mxu0 0.0
    %2329 = vmatpush1.msra.mxu0 0.0
    %2330 = vmatprep.subr.mxu0 0.0
    %2331 = vmatpush1.msra.mxu0 0.0
    %2332 = vmatprep.subr.mxu0 0.0
    %2333 = vmatpush1.msra.mxu0 0.0
    %2334 = vmatprep.subr.mxu0 0.0
    %2335 = vmatpush1.msra.mxu0 0.0
    %2336 = vmatprep.subr.mxu0 0.0
    %2337 = vmatpush1.msra.mxu0 0.0
    %2338 = vmatprep.subr.mxu0 0.0
    %2339 = vmatpush1.msra.mxu0 0.0
    %2340 = vmatprep.subr.mxu0 0.0
    %2341 = vmatpush1.msra.mxu0 0.0
    %2342 = vmatprep.subr.mxu0 0.0
    %2343 = vmatpush1.msra.mxu0 0.0
    %2344 = vmatprep.subr.mxu0 0.0
    %2345 = vmatpush1.msra.mxu0 0.0
    %2346 = vmatprep.subr.mxu0 0.0
    %2347 = vmatpush1.msra.mxu0 0.0
    %2348 = vmatprep.subr.mxu0 0.0
    %2349 = vmatpush1.msra.mxu0 0.0
    %2350 = vmatprep.subr.mxu0 0.0
    %2351 = vmatpush1.msra.mxu0 0.0
    %2352 = vmatprep.subr.mxu0 0.0
    %2353 = vmatpush1.msra.mxu0 0.0
    %2354 = vmatprep.subr.mxu0 0.0
    %2355 = vmatpush1.msra.mxu0 0.0
    %2356 = vmatprep.subr.mxu0 0.0
    %2357 = vmatpush1.msra.mxu0 0.0
    %2358 = vmatprep.subr.mxu0 0.0
    %2359 = vmatpush1.msra.mxu0 0.0
    %2360 = vmatprep.subr.mxu0 0.0
    %2361 = vmatpush1.msra.mxu0 0.0
    %2362 = vmatprep.subr.mxu0 0.0
    %2363 = vmatpush1.msra.mxu0 0.0
    %2364 = vmatprep.subr.mxu0 0.0
    %2365 = vmatpush1.msra.mxu0 0.0
    %2366 = vmatprep.subr.mxu0 0.0
    %2367 = vmatpush1.msra.mxu0 0.0
    %2368 = vmatprep.mubr.f32.mxu0 0.0
    %2369 = vmatmul.mubr.f32.gmra.mrb[0].mxu0 %v2215
    %v2370 = vpop.f32.mrb[0].mxu0
    %v2371 = vadd.f32 %v2303, %v2370
    %v2372 = vpop.f32.mrb[0].mxu0
    %2373 = vmatprep.mubr.f32.mxu0 0.0
    %2374 = vmatmul.mubr.f32.gmra.mrb[0].mxu0 %v2218
    %v2375 = vpop.f32.mrb[0].mxu0
    %v2376 = vadd.f32 %v2303, %v2375
    %v2377 = vpop.f32.mrb[0].mxu0
    %2378 = vdwg.mxu0
    %v2379 = vld [vmem:[%s4 + $0x1a0] sm:$0xff]
    %v2380 = vld [vmem:[%s4 + $0x1a8] sm:$0xff]
    %v2381 = vld [vmem:[%s4 + $0x1b0] sm:$0xff]
    %v2382 = vld [vmem:[%s4 + $0x1b8] sm:$0xff]
    %v2383 = vld [vmem:[%s5 + $0x12] sm:$0x1]
    %v2384 = vlaneseq
    %v2385 = vshrl.u32 %v2384, 7
    %v2386 = vsub.s32 0, %v2385
    %v2387 = vrot.slane %v2383, %v2386
    %v2389 = vsel %vm200, %v2201, 0
    %v2392 = vsel %vm200, %v2202, 0
    %2394 = vmatprep.subr.mxu0 0.0
    %2395 = vmatpush1.msra.mxu0 %v2379
    %2396 = vmatprep.subr.mxu0 0.0
    %2397 = vmatpush1.msra.mxu0 %v2380
    %2398 = vmatprep.subr.mxu0 0.0
    %2399 = vmatpush1.msra.mxu0 %v2381
    %2400 = vmatprep.subr.mxu0 0.0
    %2401 = vmatpush1.msra.mxu0 %v2382
    %2402 = vmatprep.subr.mxu0 0.0
    %2403 = vmatpush1.msra.mxu0 0.0
    %2404 = vmatprep.subr.mxu0 0.0
    %2405 = vmatpush1.msra.mxu0 0.0
    %2406 = vmatprep.subr.mxu0 0.0
    %2407 = vmatpush1.msra.mxu0 0.0
    %2408 = vmatprep.subr.mxu0 0.0
    %2409 = vmatpush1.msra.mxu0 0.0
    %2410 = vmatprep.subr.mxu0 0.0
    %2411 = vmatpush1.msra.mxu0 0.0
    %2412 = vmatprep.subr.mxu0 0.0
    %2413 = vmatpush1.msra.mxu0 0.0
    %2414 = vmatprep.subr.mxu0 0.0
    %2415 = vmatpush1.msra.mxu0 0.0
    %2416 = vmatprep.subr.mxu0 0.0
    %2417 = vmatpush1.msra.mxu0 0.0
    %2418 = vmatprep.subr.mxu0 0.0
    %2419 = vmatpush1.msra.mxu0 0.0
    %2420 = vmatprep.subr.mxu0 0.0
    %2421 = vmatpush1.msra.mxu0 0.0
    %2422 = vmatprep.subr.mxu0 0.0
    %2423 = vmatpush1.msra.mxu0 0.0
    %2424 = vmatprep.subr.mxu0 0.0
    %2425 = vmatpush1.msra.mxu0 0.0
    %2426 = vmatprep.subr.mxu0 0.0
    %2427 = vmatpush1.msra.mxu0 0.0
    %2428 = vmatprep.subr.mxu0 0.0
    %2429 = vmatpush1.msra.mxu0 0.0
    %2430 = vmatprep.subr.mxu0 0.0
    %2431 = vmatpush1.msra.mxu0 0.0
    %2432 = vmatprep.subr.mxu0 0.0
    %2433 = vmatpush1.msra.mxu0 0.0
    %2434 = vmatprep.subr.mxu0 0.0
    %2435 = vmatpush1.msra.mxu0 0.0
    %2436 = vmatprep.subr.mxu0 0.0
    %2437 = vmatpush1.msra.mxu0 0.0
    %2438 = vmatprep.subr.mxu0 0.0
    %2439 = vmatpush1.msra.mxu0 0.0
    %2440 = vmatprep.subr.mxu0 0.0
    %2441 = vmatpush1.msra.mxu0 0.0
    %2442 = vmatprep.subr.mxu0 0.0
    %2443 = vmatpush1.msra.mxu0 0.0
    %2444 = vmatprep.subr.mxu0 0.0
    %2445 = vmatpush1.msra.mxu0 0.0
    %2446 = vmatprep.subr.mxu0 0.0
    %2447 = vmatpush1.msra.mxu0 0.0
    %2448 = vmatprep.subr.mxu0 0.0
    %2449 = vmatpush1.msra.mxu0 0.0
    %2450 = vmatprep.subr.mxu0 0.0
    %2451 = vmatpush1.msra.mxu0 0.0
    %2452 = vmatprep.subr.mxu0 0.0
    %2453 = vmatpush1.msra.mxu0 0.0
    %2454 = vmatprep.subr.mxu0 0.0
    %2455 = vmatpush1.msra.mxu0 0.0
    %2456 = vmatprep.subr.mxu0 0.0
    %2457 = vmatpush1.msra.mxu0 0.0
    %2458 = vmatprep.mubr.f32.mxu0 0.0
    %2459 = vmatmul.mubr.f32.gmra.mrb[0].mxu0 %v2389
    %v2460 = vpop.f32.mrb[0].mxu0
    %v2461 = vadd.f32 %v2387, %v2460
    %v2462 = vpop.f32.mrb[0].mxu0
    %2463 = vmatprep.mubr.f32.mxu0 0.0
    %2464 = vmatmul.mubr.f32.gmra.mrb[0].mxu0 %v2392
    %v2465 = vpop.f32.mrb[0].mxu0
    %v2466 = vadd.f32 %v2387, %v2465
    %v2467 = vpop.f32.mrb[0].mxu0
    %2468 = vdwg.mxu0
    %v2469 = vmul.f32 %v2287, 0.35355338
    %v2470 = vmul.f32 %v2292, 0.35355338
    %v2471 = vmul.f32 %v2469, %v29
    %v2472 = vmul.f32 %v2470, %v29
    %v2473 = vmul.f32 %v2469, %v33
    %v2474 = vmul.f32 %v2470, %v33
    %v2475 = vmul.f32 %v2469, %v37
    %v2476 = vmul.f32 %v2470, %v37
    %v2477 = vmul.f32 %v2469, %v41
    %v2478 = vmul.f32 %v2470, %v41
    %v2480 = vsel %vm200, %v2471, 0
    %v2483 = vsel %vm200, %v2472, 0
    %v2486 = vsel %vm200, %v2473, 0
    %v2489 = vsel %vm200, %v2474, 0
    %v2492 = vsel %vm200, %v2475, 0
    %v2495 = vsel %vm200, %v2476, 0
    %v2498 = vsel %vm200, %v2477, 0
    %v2501 = vsel %vm200, %v2478, 0
    %v2504 = vsel %vm200, %v2371, 0
    %v2507 = vsel %vm200, %v2376, 0
    %2509 = vmatprep.subr.mxu0 0.0
    %2510 = vmatpush1.xpose.msra.mxu0 %v2504
    %2511 = vmatprep.subr.mxu0 0.0
    %2512 = vmatpush1.xpose.msra.mxu0 %v2507
    %2513 = vmatprep.subr.mxu0 0.0
    %2514 = vmatpush1.xpose.msra.mxu0 0.0
    %2515 = vmatprep.subr.mxu0 0.0
    %2516 = vmatpush1.xpose.msra.mxu0 0.0
    %2517 = vmatprep.subr.mxu0 0.0
    %2518 = vmatpush1.xpose.msra.mxu0 0.0
    %2519 = vmatprep.subr.mxu0 0.0
    %2520 = vmatpush1.xpose.msra.mxu0 0.0
    %2521 = vmatprep.subr.mxu0 0.0
    %2522 = vmatpush1.xpose.msra.mxu0 0.0
    %2523 = vmatprep.subr.mxu0 0.0
    %2524 = vmatpush1.xpose.msra.mxu0 0.0
    %2525 = vmatprep.subr.mxu0 0.0
    %2526 = vmatpush1.xpose.msra.mxu0 0.0
    %2527 = vmatprep.subr.mxu0 0.0
    %2528 = vmatpush1.xpose.msra.mxu0 0.0
    %2529 = vmatprep.subr.mxu0 0.0
    %2530 = vmatpush1.xpose.msra.mxu0 0.0
    %2531 = vmatprep.subr.mxu0 0.0
    %2532 = vmatpush1.xpose.msra.mxu0 0.0
    %2533 = vmatprep.subr.mxu0 0.0
    %2534 = vmatpush1.xpose.msra.mxu0 0.0
    %2535 = vmatprep.subr.mxu0 0.0
    %2536 = vmatpush1.xpose.msra.mxu0 0.0
    %2537 = vmatprep.subr.mxu0 0.0
    %2538 = vmatpush1.xpose.msra.mxu0 0.0
    %2539 = vmatprep.subr.mxu0 0.0
    %2540 = vmatpush1.xpose.msra.mxu0 0.0
    %2541 = vmatprep.subr.mxu0 0.0
    %2542 = vmatpush1.xpose.msra.mxu0 0.0
    %2543 = vmatprep.subr.mxu0 0.0
    %2544 = vmatpush1.xpose.msra.mxu0 0.0
    %2545 = vmatprep.subr.mxu0 0.0
    %2546 = vmatpush1.xpose.msra.mxu0 0.0
    %2547 = vmatprep.subr.mxu0 0.0
    %2548 = vmatpush1.xpose.msra.mxu0 0.0
    %2549 = vmatprep.subr.mxu0 0.0
    %2550 = vmatpush1.xpose.msra.mxu0 0.0
    %2551 = vmatprep.subr.mxu0 0.0
    %2552 = vmatpush1.xpose.msra.mxu0 0.0
    %2553 = vmatprep.subr.mxu0 0.0
    %2554 = vmatpush1.xpose.msra.mxu0 0.0
    %2555 = vmatprep.subr.mxu0 0.0
    %2556 = vmatpush1.xpose.msra.mxu0 0.0
    %2557 = vmatprep.subr.mxu0 0.0
    %2558 = vmatpush1.xpose.msra.mxu0 0.0
    %2559 = vmatprep.subr.mxu0 0.0
    %2560 = vmatpush1.xpose.msra.mxu0 0.0
    %2561 = vmatprep.subr.mxu0 0.0
    %2562 = vmatpush1.xpose.msra.mxu0 0.0
    %2563 = vmatprep.subr.mxu0 0.0
    %2564 = vmatpush1.xpose.msra.mxu0 0.0
    %2565 = vmatprep.subr.mxu0 0.0
    %2566 = vmatpush1.xpose.msra.mxu0 0.0
    %2567 = vmatprep.subr.mxu0 0.0
    %2568 = vmatpush1.xpose.msra.mxu0 0.0
    %2569 = vmatprep.subr.mxu0 0.0
    %2570 = vmatpush1.xpose.msra.mxu0 0.0
    %2571 = vmatprep.subr.mxu0 0.0
    %2572 = vmatpush1.xpose.msra.mxu0 0.0
    %2573 = vmatprep.mubr.f32.mxu0 0.0
    %2574 = vmatmul.mubr.f32.gmra.mrb[0].mxu0 %v2480
    %v2575 = vpop.f32.mrb[0].mxu0
    %v2576 = vadd.f32 %v167, %v2575
    %v2577 = vpop.f32.mrb[0].mxu0
    %2578 = vmatprep.mubr.f32.mxu0 0.0
    %2579 = vmatmul.mubr.f32.gmra.mrb[0].mxu0 %v2483
    %v2580 = vpop.f32.mrb[0].mxu0
    %v2581 = vadd.f32 %v168, %v2580
    %v2582 = vpop.f32.mrb[0].mxu0
    %2583 = vmatprep.mubr.f32.mxu0 0.0
    %2584 = vmatmul.mubr.f32.gmra.mrb[0].mxu0 %v2486
    %v2585 = vpop.f32.mrb[0].mxu0
    %v2586 = vadd.f32 %v169, %v2585
    %v2587 = vpop.f32.mrb[0].mxu0
    %2588 = vmatprep.mubr.f32.mxu0 0.0
    %2589 = vmatmul.mubr.f32.gmra.mrb[0].mxu0 %v2489
    %v2590 = vpop.f32.mrb[0].mxu0
    %v2591 = vadd.f32 %v170, %v2590
    %v2592 = vpop.f32.mrb[0].mxu0
    %2593 = vmatprep.mubr.f32.mxu0 0.0
    %2594 = vmatmul.mubr.f32.gmra.mrb[0].mxu0 %v2492
    %v2595 = vpop.f32.mrb[0].mxu0
    %v2596 = vadd.f32 %v171, %v2595
    %v2597 = vpop.f32.mrb[0].mxu0
    %2598 = vmatprep.mubr.f32.mxu0 0.0
    %2599 = vmatmul.mubr.f32.gmra.mrb[0].mxu0 %v2495
    %v2600 = vpop.f32.mrb[0].mxu0
    %v2601 = vadd.f32 %v172, %v2600
    %v2602 = vpop.f32.mrb[0].mxu0
    %2603 = vmatprep.mubr.f32.mxu0 0.0
    %2604 = vmatmul.mubr.f32.gmra.mrb[0].mxu0 %v2498
    %v2605 = vpop.f32.mrb[0].mxu0
    %v2606 = vadd.f32 %v173, %v2605
    %v2607 = vpop.f32.mrb[0].mxu0
    %2608 = vmatprep.mubr.f32.mxu0 0.0
    %2609 = vmatmul.mubr.f32.gmra.mrb[0].mxu0 %v2501
    %v2610 = vpop.f32.mrb[0].mxu0
    %v2611 = vadd.f32 %v174, %v2610
    %v2612 = vpop.f32.mrb[0].mxu0
    %2613 = vdwg.mxu0
    %v2614 = vsel %vm1003, %v2576, -inf
    %2615 = vmax.xlane.f32.xlu0 %v2614
    %v2616 = vpop.xlane.xlu0 %2615
    %v2617 = vsel %vm1003, %v2581, -inf
    %2618 = vmax.xlane.f32.xlu0 %v2617
    %v2619 = vpop.xlane.xlu0 %2618
    %v2620 = vsel %vm1003, %v2586, -inf
    %2621 = vmax.xlane.f32.xlu0 %v2620
    %v2622 = vpop.xlane.xlu0 %2621
    %v2623 = vsel %vm1003, %v2591, -inf
    %2624 = vmax.xlane.f32.xlu0 %v2623
    %v2625 = vpop.xlane.xlu0 %2624
    %v2626 = vsel %vm1003, %v2596, -inf
    %2627 = vmax.xlane.f32.xlu0 %v2626
    %v2628 = vpop.xlane.xlu0 %2627
    %v2629 = vsel %vm1003, %v2601, -inf
    %2630 = vmax.xlane.f32.xlu0 %v2629
    %v2631 = vpop.xlane.xlu0 %2630
    %v2632 = vsel %vm1003, %v2606, -inf
    %2633 = vmax.xlane.f32.xlu0 %v2632
    %v2634 = vpop.xlane.xlu0 %2633
    %v2635 = vsel %vm1003, %v2611, -inf
    %2636 = vmax.xlane.f32.xlu0 %v2635
    %v2637 = vpop.xlane.xlu0 %2636
    %v2638 = vsub.f32 %v2576, %v2616
    %v2639 = vsub.f32 %v2581, %v2619
    %v2640 = vsub.f32 %v2586, %v2622
    %v2641 = vsub.f32 %v2591, %v2625
    %v2642 = vsub.f32 %v2596, %v2628
    %v2643 = vsub.f32 %v2601, %v2631
    %v2644 = vsub.f32 %v2606, %v2634
    %v2645 = vsub.f32 %v2611, %v2637
    %v2646 = vmul.f32 %v2638, 1.442695
    %v2647 = vpow.pop %v2646
    %v2648 = vmul.f32 %v2639, 1.442695
    %v2649 = vpow.pop %v2648
    %v2650 = vmul.f32 %v2640, 1.442695
    %v2651 = vpow.pop %v2650
    %v2652 = vmul.f32 %v2641, 1.442695
    %v2653 = vpow.pop %v2652
    %v2654 = vmul.f32 %v2642, 1.442695
    %v2655 = vpow.pop %v2654
    %v2656 = vmul.f32 %v2643, 1.442695
    %v2657 = vpow.pop %v2656
    %v2658 = vmul.f32 %v2644, 1.442695
    %v2659 = vpow.pop %v2658
    %v2660 = vmul.f32 %v2645, 1.442695
    %v2661 = vpow.pop %v2660
    %v2662 = vsel %vm1003, %v2647, 0.0
    %2663 = vadd.xlane.f32.xlu0 %v2662
    %v2664 = vpop.xlane.xlu0 %2663
    %v2665 = vsel %vm1003, %v2649, 0.0
    %2666 = vadd.xlane.f32.xlu0 %v2665
    %v2667 = vpop.xlane.xlu0 %2666
    %v2668 = vsel %vm1003, %v2651, 0.0
    %2669 = vadd.xlane.f32.xlu0 %v2668
    %v2670 = vpop.xlane.xlu0 %2669
    %v2671 = vsel %vm1003, %v2653, 0.0
    %2672 = vadd.xlane.f32.xlu0 %v2671
    %v2673 = vpop.xlane.xlu0 %2672
    %v2674 = vsel %vm1003, %v2655, 0.0
    %2675 = vadd.xlane.f32.xlu0 %v2674
    %v2676 = vpop.xlane.xlu0 %2675
    %v2677 = vsel %vm1003, %v2657, 0.0
    %2678 = vadd.xlane.f32.xlu0 %v2677
    %v2679 = vpop.xlane.xlu0 %2678
    %v2680 = vsel %vm1003, %v2659, 0.0
    %2681 = vadd.xlane.f32.xlu0 %v2680
    %v2682 = vpop.xlane.xlu0 %2681
    %v2683 = vsel %vm1003, %v2661, 0.0
    %2684 = vadd.xlane.f32.xlu0 %v2683
    %v2685 = vpop.xlane.xlu0 %2684
    %v2686 = vrcp.pop %v2664
    %v2687 = vmul.f32 %v2647, %v2686
    %v2688 = vrcp.pop %v2667
    %v2689 = vmul.f32 %v2649, %v2688
    %v2690 = vrcp.pop %v2670
    %v2691 = vmul.f32 %v2651, %v2690
    %v2692 = vrcp.pop %v2673
    %v2693 = vmul.f32 %v2653, %v2692
    %v2694 = vrcp.pop %v2676
    %v2695 = vmul.f32 %v2655, %v2694
    %v2696 = vrcp.pop %v2679
    %v2697 = vmul.f32 %v2657, %v2696
    %v2698 = vrcp.pop %v2682
    %v2699 = vmul.f32 %v2659, %v2698
    %v2700 = vrcp.pop %v2685
    %v2701 = vmul.f32 %v2661, %v2700
    %v2703 = vsel %vm1003, %v2687, 0
    %v2706 = vsel %vm1003, %v2689, 0
    %v2709 = vsel %vm1003, %v2691, 0
    %v2712 = vsel %vm1003, %v2693, 0
    %v2715 = vsel %vm1003, %v2695, 0
    %v2718 = vsel %vm1003, %v2697, 0
    %v2721 = vsel %vm1003, %v2699, 0
    %v2724 = vsel %vm1003, %v2701, 0
    %2726 = vmatprep.subr.mxu0 0.0
    %2727 = vmatpush1.msra.mxu0 %v2461
    %2728 = vmatprep.subr.mxu0 0.0
    %2729 = vmatpush1.msra.mxu0 %v2466
    %2730 = vmatprep.subr.mxu0 0.0
    %2731 = vmatpush1.msra.mxu0 0.0
    %2732 = vmatprep.subr.mxu0 0.0
    %2733 = vmatpush1.msra.mxu0 0.0
    %2734 = vmatprep.subr.mxu0 0.0
    %2735 = vmatpush1.msra.mxu0 0.0
    %2736 = vmatprep.subr.mxu0 0.0
    %2737 = vmatpush1.msra.mxu0 0.0
    %2738 = vmatprep.subr.mxu0 0.0
    %2739 = vmatpush1.msra.mxu0 0.0
    %2740 = vmatprep.subr.mxu0 0.0
    %2741 = vmatpush1.msra.mxu0 0.0
    %2742 = vmatprep.subr.mxu0 0.0
    %2743 = vmatpush1.msra.mxu0 0.0
    %2744 = vmatprep.subr.mxu0 0.0
    %2745 = vmatpush1.msra.mxu0 0.0
    %2746 = vmatprep.subr.mxu0 0.0
    %2747 = vmatpush1.msra.mxu0 0.0
    %2748 = vmatprep.subr.mxu0 0.0
    %2749 = vmatpush1.msra.mxu0 0.0
    %2750 = vmatprep.subr.mxu0 0.0
    %2751 = vmatpush1.msra.mxu0 0.0
    %2752 = vmatprep.subr.mxu0 0.0
    %2753 = vmatpush1.msra.mxu0 0.0
    %2754 = vmatprep.subr.mxu0 0.0
    %2755 = vmatpush1.msra.mxu0 0.0
    %2756 = vmatprep.subr.mxu0 0.0
    %2757 = vmatpush1.msra.mxu0 0.0
    %2758 = vmatprep.subr.mxu0 0.0
    %2759 = vmatpush1.msra.mxu0 0.0
    %2760 = vmatprep.subr.mxu0 0.0
    %2761 = vmatpush1.msra.mxu0 0.0
    %2762 = vmatprep.subr.mxu0 0.0
    %2763 = vmatpush1.msra.mxu0 0.0
    %2764 = vmatprep.subr.mxu0 0.0
    %2765 = vmatpush1.msra.mxu0 0.0
    %2766 = vmatprep.subr.mxu0 0.0
    %2767 = vmatpush1.msra.mxu0 0.0
    %2768 = vmatprep.subr.mxu0 0.0
    %2769 = vmatpush1.msra.mxu0 0.0
    %2770 = vmatprep.subr.mxu0 0.0
    %2771 = vmatpush1.msra.mxu0 0.0
    %2772 = vmatprep.subr.mxu0 0.0
    %2773 = vmatpush1.msra.mxu0 0.0
    %2774 = vmatprep.subr.mxu0 0.0
    %2775 = vmatpush1.msra.mxu0 0.0
    %2776 = vmatprep.subr.mxu0 0.0
    %2777 = vmatpush1.msra.mxu0 0.0
    %2778 = vmatprep.subr.mxu0 0.0
    %2779 = vmatpush1.msra.mxu0 0.0
    %2780 = vmatprep.subr.mxu0 0.0
    %2781 = vmatpush1.msra.mxu0 0.0
    %2782 = vmatprep.subr.mxu0 0.0
    %2783 = vmatpush1.msra.mxu0 0.0
    %2784 = vmatprep.subr.mxu0 0.0
    %2785 = vmatpush1.msra.mxu0 0.0
    %2786 = vmatprep.subr.mxu0 0.0
    %2787 = vmatpush1.msra.mxu0 0.0
    %2788 = vmatprep.subr.mxu0 0.0
    %2789 = vmatpush1.msra.mxu0 0.0
    %2790 = vmatprep.mubr.f32.mxu0 0.0
    %2791 = vmatmul.mubr.f32.gmra.mrb[0].mxu0 %v2703
    %v2792 = vpop.f32.mrb[0].mxu0
    %v2793 = vadd.f32 0.0, %v2792
    %v2794 = vpop.f32.mrb[0].mxu0
    %2795 = vmatprep.mubr.f32.mxu0 0.0
    %2796 = vmatmul.mubr.f32.gmra.mrb[0].mxu0 %v2706
    %v2797 = vpop.f32.mrb[0].mxu0
    %v2798 = vadd.f32 0.0, %v2797
    %v2799 = vpop.f32.mrb[0].mxu0
    %2800 = vmatprep.mubr.f32.mxu0 0.0
    %2801 = vmatmul.mubr.f32.gmra.mrb[0].mxu0 %v2709
    %v2802 = vpop.f32.mrb[0].mxu0
    %v2803 = vadd.f32 0.0, %v2802
    %v2804 = vpop.f32.mrb[0].mxu0
    %2805 = vmatprep.mubr.f32.mxu0 0.0
    %2806 = vmatmul.mubr.f32.gmra.mrb[0].mxu0 %v2712
    %v2807 = vpop.f32.mrb[0].mxu0
    %v2808 = vadd.f32 0.0, %v2807
    %v2809 = vpop.f32.mrb[0].mxu0
    %2810 = vmatprep.mubr.f32.mxu0 0.0
    %2811 = vmatmul.mubr.f32.gmra.mrb[0].mxu0 %v2715
    %v2812 = vpop.f32.mrb[0].mxu0
    %v2813 = vadd.f32 0.0, %v2812
    %v2814 = vpop.f32.mrb[0].mxu0
    %2815 = vmatprep.mubr.f32.mxu0 0.0
    %2816 = vmatmul.mubr.f32.gmra.mrb[0].mxu0 %v2718
    %v2817 = vpop.f32.mrb[0].mxu0
    %v2818 = vadd.f32 0.0, %v2817
    %v2819 = vpop.f32.mrb[0].mxu0
    %2820 = vmatprep.mubr.f32.mxu0 0.0
    %2821 = vmatmul.mubr.f32.gmra.mrb[0].mxu0 %v2721
    %v2822 = vpop.f32.mrb[0].mxu0
    %v2823 = vadd.f32 0.0, %v2822
    %v2824 = vpop.f32.mrb[0].mxu0
    %2825 = vmatprep.mubr.f32.mxu0 0.0
    %2826 = vmatmul.mubr.f32.gmra.mrb[0].mxu0 %v2724
    %v2827 = vpop.f32.mrb[0].mxu0
    %v2828 = vadd.f32 0.0, %v2827
    %v2829 = vpop.f32.mrb[0].mxu0
    %2830 = vdwg.mxu0
    %v2831 = vmul.f32 %v2793, %v29
    %v2832 = vmul.f32 %v2798, %v29
    %v2833 = vmul.f32 %v2803, %v33
    %v2834 = vmul.f32 %v2808, %v33
    %v2835 = vadd.f32 %v2831, %v2833
    %v2836 = vadd.f32 %v2832, %v2834
    %v2837 = vmul.f32 %v2813, %v37
    %v2838 = vmul.f32 %v2818, %v37
    %v2839 = vadd.f32 %v2835, %v2837
    %v2840 = vadd.f32 %v2836, %v2838
    %v2841 = vmul.f32 %v2823, %v41
    %v2842 = vmul.f32 %v2828, %v41
    %v2843 = vadd.f32 %v2839, %v2841
    %v2844 = vadd.f32 %v2840, %v2842
    %v2845 = vld [vmem:[%s4 + $0x1c0] sm:$0xff]
    %v2846 = vld [vmem:[%s4 + $0x1c8] sm:$0xff]
    %v2847 = vld [vmem:[%s4 + $0x1d0] sm:$0xff]
    %v2848 = vld [vmem:[%s4 + $0x1d8] sm:$0xff]
    %v2849 = vld [vmem:[%s5 + $0x13] sm:$0x1]
    %v2850 = vlaneseq
    %v2851 = vshrl.u32 %v2850, 7
    %v2852 = vsub.s32 0, %v2851
    %v2853 = vrot.slane %v2849, %v2852
    %v2855 = vsel %vm200, %v2843, 0
    %v2858 = vsel %vm200, %v2844, 0
    %2860 = vmatprep.subr.mxu0 0.0
    %2861 = vmatpush1.msra.mxu0 %v2845
    %2862 = vmatprep.subr.mxu0 0.0
    %2863 = vmatpush1.msra.mxu0 %v2846
    %2864 = vmatprep.subr.mxu0 0.0
    %2865 = vmatpush1.msra.mxu0 %v2847
    %2866 = vmatprep.subr.mxu0 0.0
    %2867 = vmatpush1.msra.mxu0 %v2848
    %2868 = vmatprep.subr.mxu0 0.0
    %2869 = vmatpush1.msra.mxu0 0.0
    %2870 = vmatprep.subr.mxu0 0.0
    %2871 = vmatpush1.msra.mxu0 0.0
    %2872 = vmatprep.subr.mxu0 0.0
    %2873 = vmatpush1.msra.mxu0 0.0
    %2874 = vmatprep.subr.mxu0 0.0
    %2875 = vmatpush1.msra.mxu0 0.0
    %2876 = vmatprep.subr.mxu0 0.0
    %2877 = vmatpush1.msra.mxu0 0.0
    %2878 = vmatprep.subr.mxu0 0.0
    %2879 = vmatpush1.msra.mxu0 0.0
    %2880 = vmatprep.subr.mxu0 0.0
    %2881 = vmatpush1.msra.mxu0 0.0
    %2882 = vmatprep.subr.mxu0 0.0
    %2883 = vmatpush1.msra.mxu0 0.0
    %2884 = vmatprep.subr.mxu0 0.0
    %2885 = vmatpush1.msra.mxu0 0.0
    %2886 = vmatprep.subr.mxu0 0.0
    %2887 = vmatpush1.msra.mxu0 0.0
    %2888 = vmatprep.subr.mxu0 0.0
    %2889 = vmatpush1.msra.mxu0 0.0
    %2890 = vmatprep.subr.mxu0 0.0
    %2891 = vmatpush1.msra.mxu0 0.0
    %2892 = vmatprep.subr.mxu0 0.0
    %2893 = vmatpush1.msra.mxu0 0.0
    %2894 = vmatprep.subr.mxu0 0.0
    %2895 = vmatpush1.msra.mxu0 0.0
    %2896 = vmatprep.subr.mxu0 0.0
    %2897 = vmatpush1.msra.mxu0 0.0
    %2898 = vmatprep.subr.mxu0 0.0
    %2899 = vmatpush1.msra.mxu0 0.0
    %2900 = vmatprep.subr.mxu0 0.0
    %2901 = vmatpush1.msra.mxu0 0.0
    %2902 = vmatprep.subr.mxu0 0.0
    %2903 = vmatpush1.msra.mxu0 0.0
    %2904 = vmatprep.subr.mxu0 0.0
    %2905 = vmatpush1.msra.mxu0 0.0
    %2906 = vmatprep.subr.mxu0 0.0
    %2907 = vmatpush1.msra.mxu0 0.0
    %2908 = vmatprep.subr.mxu0 0.0
    %2909 = vmatpush1.msra.mxu0 0.0
    %2910 = vmatprep.subr.mxu0 0.0
    %2911 = vmatpush1.msra.mxu0 0.0
    %2912 = vmatprep.subr.mxu0 0.0
    %2913 = vmatpush1.msra.mxu0 0.0
    %2914 = vmatprep.subr.mxu0 0.0
    %2915 = vmatpush1.msra.mxu0 0.0
    %2916 = vmatprep.subr.mxu0 0.0
    %2917 = vmatpush1.msra.mxu0 0.0
    %2918 = vmatprep.subr.mxu0 0.0
    %2919 = vmatpush1.msra.mxu0 0.0
    %2920 = vmatprep.subr.mxu0 0.0
    %2921 = vmatpush1.msra.mxu0 0.0
    %2922 = vmatprep.subr.mxu0 0.0
    %2923 = vmatpush1.msra.mxu0 0.0
    %2924 = vmatprep.mubr.f32.mxu0 0.0
    %2925 = vmatmul.mubr.f32.gmra.mrb[0].mxu0 %v2855
    %v2926 = vpop.f32.mrb[0].mxu0
    %v2927 = vadd.f32 %v2853, %v2926
    %v2928 = vpop.f32.mrb[0].mxu0
    %2929 = vmatprep.mubr.f32.mxu0 0.0
    %2930 = vmatmul.mubr.f32.gmra.mrb[0].mxu0 %v2858
    %v2931 = vpop.f32.mrb[0].mxu0
    %v2932 = vadd.f32 %v2853, %v2931
    %v2933 = vpop.f32.mrb[0].mxu0
    %2934 = vdwg.mxu0
    %v2935 = vadd.f32 %v2201, %v2927
    %v2936 = vadd.f32 %v2202, %v2932
    %v2937 = vld [vmem:[%s5 + $0x1a] sm:$0x1]
    %v2938 = vld [vmem:[%s5 + $0x1b] sm:$0x1]
    %v2939 = vsel %vm200, %v2935, 0.0
    %2940 = vadd.xlane.f32.xlu0 %v2939
    %v2941 = vpop.xlane.xlu0 %2940
    %v2942 = vsel %vm200, %v2936, 0.0
    %2943 = vadd.xlane.f32.xlu0 %v2942
    %v2944 = vpop.xlane.xlu0 %2943
    %v2945 = vmul.f32 %v2941, %v1335
    %v2946 = vmul.f32 %v2944, %v1335
    %v2947 = vsub.f32 %v2935, %v2945
    %v2948 = vsub.f32 %v2936, %v2946
    %v2949 = vmul.f32 %v2947, %v2947
    %v2950 = vmul.f32 %v2948, %v2948
    %v2951 = vsel %vm200, %v2949, 0.0
    %2952 = vadd.xlane.f32.xlu0 %v2951
    %v2953 = vpop.xlane.xlu0 %2952
    %v2954 = vsel %vm200, %v2950, 0.0
    %2955 = vadd.xlane.f32.xlu0 %v2954
    %v2956 = vpop.xlane.xlu0 %2955
    %v2957 = vmul.f32 %v2953, %v1335
    %v2958 = vmul.f32 %v2956, %v1335
    %v2959 = vadd.f32 %v2957, 1e-05
    %v2960 = vadd.f32 %v2958, 1e-05
    %v2961 = vrsqrt.pop %v2959
    %v2962 = vrsqrt.pop %v2960
    %v2963 = vmul.f32 %v2947, %v2961
    %v2964 = vmul.f32 %v2948, %v2962
    %v2965 = vlaneseq
    %v2966 = vshrl.u32 %v2965, 7
    %v2967 = vsub.s32 0, %v2966
    %v2968 = vrot.slane %v2937, %v2967
    %v2969 = vmul.f32 %v2963, %v2968
    %v2970 = vmul.f32 %v2964, %v2968
    %v2971 = vlaneseq
    %v2972 = vshrl.u32 %v2971, 7
    %v2973 = vsub.s32 0, %v2972
    %v2974 = vrot.slane %v2938, %v2973
    %v2975 = vadd.f32 %v2969, %v2974
    %v2976 = vadd.f32 %v2970, %v2974
    %v2977 = vadd.f32 %v2975, %v181
    %v2978 = vadd.f32 %v2976, %v182
    %v2979 = vld [vmem:[%s4 + $0x1e0] sm:$0xff]
    %v2980 = vld [vmem:[%s4 + $0x1e8] sm:$0xff]
    %v2981 = vld [vmem:[%s4 + $0x1f0] sm:$0xff]
    %v2982 = vld [vmem:[%s4 + $0x1f8] sm:$0xff]
    %v2983 = vld [vmem:[%s5 + $0x14] sm:$0x1]
    %v2984 = vlaneseq
    %v2985 = vshrl.u32 %v2984, 7
    %v2986 = vsub.s32 0, %v2985
    %v2987 = vrot.slane %v2983, %v2986
    %v2989 = vsel %vm200, %v2977, 0
    %v2992 = vsel %vm200, %v2978, 0
    %2994 = vmatprep.subr.mxu0 0.0
    %2995 = vmatpush1.msra.mxu0 %v2979
    %2996 = vmatprep.subr.mxu0 0.0
    %2997 = vmatpush1.msra.mxu0 %v2980
    %2998 = vmatprep.subr.mxu0 0.0
    %2999 = vmatpush1.msra.mxu0 %v2981
    %3000 = vmatprep.subr.mxu0 0.0
    %3001 = vmatpush1.msra.mxu0 %v2982
    %3002 = vmatprep.subr.mxu0 0.0
    %3003 = vmatpush1.msra.mxu0 0.0
    %3004 = vmatprep.subr.mxu0 0.0
    %3005 = vmatpush1.msra.mxu0 0.0
    %3006 = vmatprep.subr.mxu0 0.0
    %3007 = vmatpush1.msra.mxu0 0.0
    %3008 = vmatprep.subr.mxu0 0.0
    %3009 = vmatpush1.msra.mxu0 0.0
    %3010 = vmatprep.subr.mxu0 0.0
    %3011 = vmatpush1.msra.mxu0 0.0
    %3012 = vmatprep.subr.mxu0 0.0
    %3013 = vmatpush1.msra.mxu0 0.0
    %3014 = vmatprep.subr.mxu0 0.0
    %3015 = vmatpush1.msra.mxu0 0.0
    %3016 = vmatprep.subr.mxu0 0.0
    %3017 = vmatpush1.msra.mxu0 0.0
    %3018 = vmatprep.subr.mxu0 0.0
    %3019 = vmatpush1.msra.mxu0 0.0
    %3020 = vmatprep.subr.mxu0 0.0
    %3021 = vmatpush1.msra.mxu0 0.0
    %3022 = vmatprep.subr.mxu0 0.0
    %3023 = vmatpush1.msra.mxu0 0.0
    %3024 = vmatprep.subr.mxu0 0.0
    %3025 = vmatpush1.msra.mxu0 0.0
    %3026 = vmatprep.subr.mxu0 0.0
    %3027 = vmatpush1.msra.mxu0 0.0
    %3028 = vmatprep.subr.mxu0 0.0
    %3029 = vmatpush1.msra.mxu0 0.0
    %3030 = vmatprep.subr.mxu0 0.0
    %3031 = vmatpush1.msra.mxu0 0.0
    %3032 = vmatprep.subr.mxu0 0.0
    %3033 = vmatpush1.msra.mxu0 0.0
    %3034 = vmatprep.subr.mxu0 0.0
    %3035 = vmatpush1.msra.mxu0 0.0
    %3036 = vmatprep.subr.mxu0 0.0
    %3037 = vmatpush1.msra.mxu0 0.0
    %3038 = vmatprep.subr.mxu0 0.0
    %3039 = vmatpush1.msra.mxu0 0.0
    %3040 = vmatprep.subr.mxu0 0.0
    %3041 = vmatpush1.msra.mxu0 0.0
    %3042 = vmatprep.subr.mxu0 0.0
    %3043 = vmatpush1.msra.mxu0 0.0
    %3044 = vmatprep.subr.mxu0 0.0
    %3045 = vmatpush1.msra.mxu0 0.0
    %3046 = vmatprep.subr.mxu0 0.0
    %3047 = vmatpush1.msra.mxu0 0.0
    %3048 = vmatprep.subr.mxu0 0.0
    %3049 = vmatpush1.msra.mxu0 0.0
    %3050 = vmatprep.subr.mxu0 0.0
    %3051 = vmatpush1.msra.mxu0 0.0
    %3052 = vmatprep.subr.mxu0 0.0
    %3053 = vmatpush1.msra.mxu0 0.0
    %3054 = vmatprep.subr.mxu0 0.0
    %3055 = vmatpush1.msra.mxu0 0.0
    %3056 = vmatprep.subr.mxu0 0.0
    %3057 = vmatpush1.msra.mxu0 0.0
    %3058 = vmatprep.mubr.f32.mxu0 0.0
    %3059 = vmatmul.mubr.f32.gmra.mrb[0].mxu0 %v2989
    %v3060 = vpop.f32.mrb[0].mxu0
    %v3061 = vadd.f32 %v2987, %v3060
    %v3062 = vpop.f32.mrb[0].mxu0
    %3063 = vmatprep.mubr.f32.mxu0 0.0
    %3064 = vmatmul.mubr.f32.gmra.mrb[0].mxu0 %v2992
    %v3065 = vpop.f32.mrb[0].mxu0
    %v3066 = vadd.f32 %v2987, %v3065
    %v3067 = vpop.f32.mrb[0].mxu0
    %3068 = vdwg.mxu0
    %v3069 = vmul.f32 %v3061, 0.35355338
    %v3070 = vmul.f32 %v3066, 0.35355338
    %v3071 = vmul.f32 %v3069, %v29
    %v3072 = vmul.f32 %v3070, %v29
    %v3073 = vmul.f32 %v3069, %v33
    %v3074 = vmul.f32 %v3070, %v33
    %v3075 = vmul.f32 %v3069, %v37
    %v3076 = vmul.f32 %v3070, %v37
    %v3077 = vmul.f32 %v3069, %v41
    %v3078 = vmul.f32 %v3070, %v41
    %v3080 = vsel %vm200, %v3071, 0
    %v3083 = vsel %vm200, %v3072, 0
    %v3086 = vsel %vm200, %v3073, 0
    %v3089 = vsel %vm200, %v3074, 0
    %v3092 = vsel %vm200, %v3075, 0
    %v3095 = vsel %vm200, %v3076, 0
    %v3098 = vsel %vm200, %v3077, 0
    %v3101 = vsel %vm200, %v3078, 0
    %v3104 = vsel %vm200, %v480, 0
    %v3107 = vsel %vm200, %v485, 0
    %v3110 = vsel %vm200, %v490, 0
    %v3113 = vsel %vm200, %v495, 0
    %3115 = vmatprep.subr.mxu0 0.0
    %3116 = vmatpush1.xpose.msra.mxu0 %v3104
    %3117 = vmatprep.subr.mxu0 0.0
    %3118 = vmatpush1.xpose.msra.mxu0 %v3107
    %3119 = vmatprep.subr.mxu0 0.0
    %3120 = vmatpush1.xpose.msra.mxu0 %v3110
    %3121 = vmatprep.subr.mxu0 0.0
    %3122 = vmatpush1.xpose.msra.mxu0 %v3113
    %3123 = vmatprep.subr.mxu0 0.0
    %3124 = vmatpush1.xpose.msra.mxu0 0.0
    %3125 = vmatprep.subr.mxu0 0.0
    %3126 = vmatpush1.xpose.msra.mxu0 0.0
    %3127 = vmatprep.subr.mxu0 0.0
    %3128 = vmatpush1.xpose.msra.mxu0 0.0
    %3129 = vmatprep.subr.mxu0 0.0
    %3130 = vmatpush1.xpose.msra.mxu0 0.0
    %3131 = vmatprep.subr.mxu0 0.0
    %3132 = vmatpush1.xpose.msra.mxu0 0.0
    %3133 = vmatprep.subr.mxu0 0.0
    %3134 = vmatpush1.xpose.msra.mxu0 0.0
    %3135 = vmatprep.subr.mxu0 0.0
    %3136 = vmatpush1.xpose.msra.mxu0 0.0
    %3137 = vmatprep.subr.mxu0 0.0
    %3138 = vmatpush1.xpose.msra.mxu0 0.0
    %3139 = vmatprep.subr.mxu0 0.0
    %3140 = vmatpush1.xpose.msra.mxu0 0.0
    %3141 = vmatprep.subr.mxu0 0.0
    %3142 = vmatpush1.xpose.msra.mxu0 0.0
    %3143 = vmatprep.subr.mxu0 0.0
    %3144 = vmatpush1.xpose.msra.mxu0 0.0
    %3145 = vmatprep.subr.mxu0 0.0
    %3146 = vmatpush1.xpose.msra.mxu0 0.0
    %3147 = vmatprep.subr.mxu0 0.0
    %3148 = vmatpush1.xpose.msra.mxu0 0.0
    %3149 = vmatprep.subr.mxu0 0.0
    %3150 = vmatpush1.xpose.msra.mxu0 0.0
    %3151 = vmatprep.subr.mxu0 0.0
    %3152 = vmatpush1.xpose.msra.mxu0 0.0
    %3153 = vmatprep.subr.mxu0 0.0
    %3154 = vmatpush1.xpose.msra.mxu0 0.0
    %3155 = vmatprep.subr.mxu0 0.0
    %3156 = vmatpush1.xpose.msra.mxu0 0.0
    %3157 = vmatprep.subr.mxu0 0.0
    %3158 = vmatpush1.xpose.msra.mxu0 0.0
    %3159 = vmatprep.subr.mxu0 0.0
    %3160 = vmatpush1.xpose.msra.mxu0 0.0
    %3161 = vmatprep.subr.mxu0 0.0
    %3162 = vmatpush1.xpose.msra.mxu0 0.0
    %3163 = vmatprep.subr.mxu0 0.0
    %3164 = vmatpush1.xpose.msra.mxu0 0.0
    %3165 = vmatprep.subr.mxu0 0.0
    %3166 = vmatpush1.xpose.msra.mxu0 0.0
    %3167 = vmatprep.subr.mxu0 0.0
    %3168 = vmatpush1.xpose.msra.mxu0 0.0
    %3169 = vmatprep.subr.mxu0 0.0
    %3170 = vmatpush1.xpose.msra.mxu0 0.0
    %3171 = vmatprep.subr.mxu0 0.0
    %3172 = vmatpush1.xpose.msra.mxu0 0.0
    %3173 = vmatprep.subr.mxu0 0.0
    %3174 = vmatpush1.xpose.msra.mxu0 0.0
    %3175 = vmatprep.subr.mxu0 0.0
    %3176 = vmatpush1.xpose.msra.mxu0 0.0
    %3177 = vmatprep.subr.mxu0 0.0
    %3178 = vmatpush1.xpose.msra.mxu0 0.0
    %3179 = vmatprep.mubr.f32.mxu0 0.0
    %3180 = vmatmul.mubr.f32.gmra.mrb[0].mxu0 %v3080
    %v3181 = vpop.f32.mrb[0].mxu0
    %v3182 = vadd.f32 %v167, %v3181
    %v3183 = vpop.f32.mrb[0].mxu0
    %3184 = vmatprep.mubr.f32.mxu0 0.0
    %3185 = vmatmul.mubr.f32.gmra.mrb[0].mxu0 %v3083
    %v3186 = vpop.f32.mrb[0].mxu0
    %v3187 = vadd.f32 %v168, %v3186
    %v3188 = vpop.f32.mrb[0].mxu0
    %3189 = vmatprep.mubr.f32.mxu0 0.0
    %3190 = vmatmul.mubr.f32.gmra.mrb[0].mxu0 %v3086
    %v3191 = vpop.f32.mrb[0].mxu0
    %v3192 = vadd.f32 %v169, %v3191
    %v3193 = vpop.f32.mrb[0].mxu0
    %3194 = vmatprep.mubr.f32.mxu0 0.0
    %3195 = vmatmul.mubr.f32.gmra.mrb[0].mxu0 %v3089
    %v3196 = vpop.f32.mrb[0].mxu0
    %v3197 = vadd.f32 %v170, %v3196
    %v3198 = vpop.f32.mrb[0].mxu0
    %3199 = vmatprep.mubr.f32.mxu0 0.0
    %3200 = vmatmul.mubr.f32.gmra.mrb[0].mxu0 %v3092
    %v3201 = vpop.f32.mrb[0].mxu0
    %v3202 = vadd.f32 %v171, %v3201
    %v3203 = vpop.f32.mrb[0].mxu0
    %3204 = vmatprep.mubr.f32.mxu0 0.0
    %3205 = vmatmul.mubr.f32.gmra.mrb[0].mxu0 %v3095
    %v3206 = vpop.f32.mrb[0].mxu0
    %v3207 = vadd.f32 %v172, %v3206
    %v3208 = vpop.f32.mrb[0].mxu0
    %3209 = vmatprep.mubr.f32.mxu0 0.0
    %3210 = vmatmul.mubr.f32.gmra.mrb[0].mxu0 %v3098
    %v3211 = vpop.f32.mrb[0].mxu0
    %v3212 = vadd.f32 %v173, %v3211
    %v3213 = vpop.f32.mrb[0].mxu0
    %3214 = vmatprep.mubr.f32.mxu0 0.0
    %3215 = vmatmul.mubr.f32.gmra.mrb[0].mxu0 %v3101
    %v3216 = vpop.f32.mrb[0].mxu0
    %v3217 = vadd.f32 %v174, %v3216
    %v3218 = vpop.f32.mrb[0].mxu0
    %3219 = vdwg.mxu0
    %v3220 = vsel %vm200, %v3182, -inf
    %3221 = vmax.xlane.f32.xlu0 %v3220
    %v3222 = vpop.xlane.xlu0 %3221
    %v3223 = vsel %vm200, %v3187, -inf
    %3224 = vmax.xlane.f32.xlu0 %v3223
    %v3225 = vpop.xlane.xlu0 %3224
    %v3226 = vsel %vm200, %v3192, -inf
    %3227 = vmax.xlane.f32.xlu0 %v3226
    %v3228 = vpop.xlane.xlu0 %3227
    %v3229 = vsel %vm200, %v3197, -inf
    %3230 = vmax.xlane.f32.xlu0 %v3229
    %v3231 = vpop.xlane.xlu0 %3230
    %v3232 = vsel %vm200, %v3202, -inf
    %3233 = vmax.xlane.f32.xlu0 %v3232
    %v3234 = vpop.xlane.xlu0 %3233
    %v3235 = vsel %vm200, %v3207, -inf
    %3236 = vmax.xlane.f32.xlu0 %v3235
    %v3237 = vpop.xlane.xlu0 %3236
    %v3238 = vsel %vm200, %v3212, -inf
    %3239 = vmax.xlane.f32.xlu0 %v3238
    %v3240 = vpop.xlane.xlu0 %3239
    %v3241 = vsel %vm200, %v3217, -inf
    %3242 = vmax.xlane.f32.xlu0 %v3241
    %v3243 = vpop.xlane.xlu0 %3242
    %v3244 = vsub.f32 %v3182, %v3222
    %v3245 = vsub.f32 %v3187, %v3225
    %v3246 = vsub.f32 %v3192, %v3228
    %v3247 = vsub.f32 %v3197, %v3231
    %v3248 = vsub.f32 %v3202, %v3234
    %v3249 = vsub.f32 %v3207, %v3237
    %v3250 = vsub.f32 %v3212, %v3240
    %v3251 = vsub.f32 %v3217, %v3243
    %v3252 = vmul.f32 %v3244, 1.442695
    %v3253 = vpow.pop %v3252
    %v3254 = vmul.f32 %v3245, 1.442695
    %v3255 = vpow.pop %v3254
    %v3256 = vmul.f32 %v3246, 1.442695
    %v3257 = vpow.pop %v3256
    %v3258 = vmul.f32 %v3247, 1.442695
    %v3259 = vpow.pop %v3258
    %v3260 = vmul.f32 %v3248, 1.442695
    %v3261 = vpow.pop %v3260
    %v3262 = vmul.f32 %v3249, 1.442695
    %v3263 = vpow.pop %v3262
    %v3264 = vmul.f32 %v3250, 1.442695
    %v3265 = vpow.pop %v3264
    %v3266 = vmul.f32 %v3251, 1.442695
    %v3267 = vpow.pop %v3266
    %v3268 = vsel %vm200, %v3253, 0.0
    %3269 = vadd.xlane.f32.xlu0 %v3268
    %v3270 = vpop.xlane.xlu0 %3269
    %v3271 = vsel %vm200, %v3255, 0.0
    %3272 = vadd.xlane.f32.xlu0 %v3271
    %v3273 = vpop.xlane.xlu0 %3272
    %v3274 = vsel %vm200, %v3257, 0.0
    %3275 = vadd.xlane.f32.xlu0 %v3274
    %v3276 = vpop.xlane.xlu0 %3275
    %v3277 = vsel %vm200, %v3259, 0.0
    %3278 = vadd.xlane.f32.xlu0 %v3277
    %v3279 = vpop.xlane.xlu0 %3278
    %v3280 = vsel %vm200, %v3261, 0.0
    %3281 = vadd.xlane.f32.xlu0 %v3280
    %v3282 = vpop.xlane.xlu0 %3281
    %v3283 = vsel %vm200, %v3263, 0.0
    %3284 = vadd.xlane.f32.xlu0 %v3283
    %v3285 = vpop.xlane.xlu0 %3284
    %v3286 = vsel %vm200, %v3265, 0.0
    %3287 = vadd.xlane.f32.xlu0 %v3286
    %v3288 = vpop.xlane.xlu0 %3287
    %v3289 = vsel %vm200, %v3267, 0.0
    %3290 = vadd.xlane.f32.xlu0 %v3289
    %v3291 = vpop.xlane.xlu0 %3290
    %v3292 = vrcp.pop %v3270
    %v3293 = vmul.f32 %v3253, %v3292
    %v3294 = vrcp.pop %v3273
    %v3295 = vmul.f32 %v3255, %v3294
    %v3296 = vrcp.pop %v3276
    %v3297 = vmul.f32 %v3257, %v3296
    %v3298 = vrcp.pop %v3279
    %v3299 = vmul.f32 %v3259, %v3298
    %v3300 = vrcp.pop %v3282
    %v3301 = vmul.f32 %v3261, %v3300
    %v3302 = vrcp.pop %v3285
    %v3303 = vmul.f32 %v3263, %v3302
    %v3304 = vrcp.pop %v3288
    %v3305 = vmul.f32 %v3265, %v3304
    %v3306 = vrcp.pop %v3291
    %v3307 = vmul.f32 %v3267, %v3306
    %v3309 = vsel %vm200, %v3293, 0
    %v3312 = vsel %vm200, %v3295, 0
    %v3315 = vsel %vm200, %v3297, 0
    %v3318 = vsel %vm200, %v3299, 0
    %v3321 = vsel %vm200, %v3301, 0
    %v3324 = vsel %vm200, %v3303, 0
    %v3327 = vsel %vm200, %v3305, 0
    %v3330 = vsel %vm200, %v3307, 0
    %3332 = vmatprep.subr.mxu0 0.0
    %3333 = vmatpush1.msra.mxu0 %v574
    %3334 = vmatprep.subr.mxu0 0.0
    %3335 = vmatpush1.msra.mxu0 %v579
    %3336 = vmatprep.subr.mxu0 0.0
    %3337 = vmatpush1.msra.mxu0 %v584
    %3338 = vmatprep.subr.mxu0 0.0
    %3339 = vmatpush1.msra.mxu0 %v589
    %3340 = vmatprep.subr.mxu0 0.0
    %3341 = vmatpush1.msra.mxu0 0.0
    %3342 = vmatprep.subr.mxu0 0.0
    %3343 = vmatpush1.msra.mxu0 0.0
    %3344 = vmatprep.subr.mxu0 0.0
    %3345 = vmatpush1.msra.mxu0 0.0
    %3346 = vmatprep.subr.mxu0 0.0
    %3347 = vmatpush1.msra.mxu0 0.0
    %3348 = vmatprep.subr.mxu0 0.0
    %3349 = vmatpush1.msra.mxu0 0.0
    %3350 = vmatprep.subr.mxu0 0.0
    %3351 = vmatpush1.msra.mxu0 0.0
    %3352 = vmatprep.subr.mxu0 0.0
    %3353 = vmatpush1.msra.mxu0 0.0
    %3354 = vmatprep.subr.mxu0 0.0
    %3355 = vmatpush1.msra.mxu0 0.0
    %3356 = vmatprep.subr.mxu0 0.0
    %3357 = vmatpush1.msra.mxu0 0.0
    %3358 = vmatprep.subr.mxu0 0.0
    %3359 = vmatpush1.msra.mxu0 0.0
    %3360 = vmatprep.subr.mxu0 0.0
    %3361 = vmatpush1.msra.mxu0 0.0
    %3362 = vmatprep.subr.mxu0 0.0
    %3363 = vmatpush1.msra.mxu0 0.0
    %3364 = vmatprep.subr.mxu0 0.0
    %3365 = vmatpush1.msra.mxu0 0.0
    %3366 = vmatprep.subr.mxu0 0.0
    %3367 = vmatpush1.msra.mxu0 0.0
    %3368 = vmatprep.subr.mxu0 0.0
    %3369 = vmatpush1.msra.mxu0 0.0
    %3370 = vmatprep.subr.mxu0 0.0
    %3371 = vmatpush1.msra.mxu0 0.0
    %3372 = vmatprep.subr.mxu0 0.0
    %3373 = vmatpush1.msra.mxu0 0.0
    %3374 = vmatprep.subr.mxu0 0.0
    %3375 = vmatpush1.msra.mxu0 0.0
    %3376 = vmatprep.subr.mxu0 0.0
    %3377 = vmatpush1.msra.mxu0 0.0
    %3378 = vmatprep.subr.mxu0 0.0
    %3379 = vmatpush1.msra.mxu0 0.0
    %3380 = vmatprep.subr.mxu0 0.0
    %3381 = vmatpush1.msra.mxu0 0.0
    %3382 = vmatprep.subr.mxu0 0.0
    %3383 = vmatpush1.msra.mxu0 0.0
    %3384 = vmatprep.subr.mxu0 0.0
    %3385 = vmatpush1.msra.mxu0 0.0
    %3386 = vmatprep.subr.mxu0 0.0
    %3387 = vmatpush1.msra.mxu0 0.0
    %3388 = vmatprep.subr.mxu0 0.0
    %3389 = vmatpush1.msra.mxu0 0.0
    %3390 = vmatprep.subr.mxu0 0.0
    %3391 = vmatpush1.msra.mxu0 0.0
    %3392 = vmatprep.subr.mxu0 0.0
    %3393 = vmatpush1.msra.mxu0 0.0
    %3394 = vmatprep.subr.mxu0 0.0
    %3395 = vmatpush1.msra.mxu0 0.0
    %3396 = vmatprep.mubr.f32.mxu0 0.0
    %3397 = vmatmul.mubr.f32.gmra.mrb[0].mxu0 %v3309
    %v3398 = vpop.f32.mrb[0].mxu0
    %v3399 = vadd.f32 0.0, %v3398
    %v3400 = vpop.f32.mrb[0].mxu0
    %3401 = vmatprep.mubr.f32.mxu0 0.0
    %3402 = vmatmul.mubr.f32.gmra.mrb[0].mxu0 %v3312
    %v3403 = vpop.f32.mrb[0].mxu0
    %v3404 = vadd.f32 0.0, %v3403
    %v3405 = vpop.f32.mrb[0].mxu0
    %3406 = vmatprep.mubr.f32.mxu0 0.0
    %3407 = vmatmul.mubr.f32.gmra.mrb[0].mxu0 %v3315
    %v3408 = vpop.f32.mrb[0].mxu0
    %v3409 = vadd.f32 0.0, %v3408
    %v3410 = vpop.f32.mrb[0].mxu0
    %3411 = vmatprep.mubr.f32.mxu0 0.0
    %3412 = vmatmul.mubr.f32.gmra.mrb[0].mxu0 %v3318
    %v3413 = vpop.f32.mrb[0].mxu0
    %v3414 = vadd.f32 0.0, %v3413
    %v3415 = vpop.f32.mrb[0].mxu0
    %3416 = vmatprep.mubr.f32.mxu0 0.0
    %3417 = vmatmul.mubr.f32.gmra.mrb[0].mxu0 %v3321
    %v3418 = vpop.f32.mrb[0].mxu0
    %v3419 = vadd.f32 0.0, %v3418
    %v3420 = vpop.f32.mrb[0].mxu0
    %3421 = vmatprep.mubr.f32.mxu0 0.0
    %3422 = vmatmul.mubr.f32.gmra.mrb[0].mxu0 %v3324
    %v3423 = vpop.f32.mrb[0].mxu0
    %v3424 = vadd.f32 0.0, %v3423
    %v3425 = vpop.f32.mrb[0].mxu0
    %3426 = vmatprep.mubr.f32.mxu0 0.0
    %3427 = vmatmul.mubr.f32.gmra.mrb[0].mxu0 %v3327
    %v3428 = vpop.f32.mrb[0].mxu0
    %v3429 = vadd.f32 0.0, %v3428
    %v3430 = vpop.f32.mrb[0].mxu0
    %3431 = vmatprep.mubr.f32.mxu0 0.0
    %3432 = vmatmul.mubr.f32.gmra.mrb[0].mxu0 %v3330
    %v3433 = vpop.f32.mrb[0].mxu0
    %v3434 = vadd.f32 0.0, %v3433
    %v3435 = vpop.f32.mrb[0].mxu0
    %3436 = vdwg.mxu0
    %v3437 = vmul.f32 %v3399, %v29
    %v3438 = vmul.f32 %v3404, %v29
    %v3439 = vmul.f32 %v3409, %v33
    %v3440 = vmul.f32 %v3414, %v33
    %v3441 = vadd.f32 %v3437, %v3439
    %v3442 = vadd.f32 %v3438, %v3440
    %v3443 = vmul.f32 %v3419, %v37
    %v3444 = vmul.f32 %v3424, %v37
    %v3445 = vadd.f32 %v3441, %v3443
    %v3446 = vadd.f32 %v3442, %v3444
    %v3447 = vmul.f32 %v3429, %v41
    %v3448 = vmul.f32 %v3434, %v41
    %v3449 = vadd.f32 %v3445, %v3447
    %v3450 = vadd.f32 %v3446, %v3448
    %v3451 = vld [vmem:[%s4 + $0x240] sm:$0xff]
    %v3452 = vld [vmem:[%s4 + $0x248] sm:$0xff]
    %v3453 = vld [vmem:[%s4 + $0x250] sm:$0xff]
    %v3454 = vld [vmem:[%s4 + $0x258] sm:$0xff]
    %v3455 = vld [vmem:[%s5 + $0x17] sm:$0x1]
    %v3456 = vlaneseq
    %v3457 = vshrl.u32 %v3456, 7
    %v3458 = vsub.s32 0, %v3457
    %v3459 = vrot.slane %v3455, %v3458
    %v3461 = vsel %vm200, %v3449, 0
    %v3464 = vsel %vm200, %v3450, 0
    %3466 = vmatprep.subr.mxu0 0.0
    %3467 = vmatpush1.msra.mxu0 %v3451
    %3468 = vmatprep.subr.mxu0 0.0
    %3469 = vmatpush1.msra.mxu0 %v3452
    %3470 = vmatprep.subr.mxu0 0.0
    %3471 = vmatpush1.msra.mxu0 %v3453
    %3472 = vmatprep.subr.mxu0 0.0
    %3473 = vmatpush1.msra.mxu0 %v3454
    %3474 = vmatprep.subr.mxu0 0.0
    %3475 = vmatpush1.msra.mxu0 0.0
    %3476 = vmatprep.subr.mxu0 0.0
    %3477 = vmatpush1.msra.mxu0 0.0
    %3478 = vmatprep.subr.mxu0 0.0
    %3479 = vmatpush1.msra.mxu0 0.0
    %3480 = vmatprep.subr.mxu0 0.0
    %3481 = vmatpush1.msra.mxu0 0.0
    %3482 = vmatprep.subr.mxu0 0.0
    %3483 = vmatpush1.msra.mxu0 0.0
    %3484 = vmatprep.subr.mxu0 0.0
    %3485 = vmatpush1.msra.mxu0 0.0
    %3486 = vmatprep.subr.mxu0 0.0
    %3487 = vmatpush1.msra.mxu0 0.0
    %3488 = vmatprep.subr.mxu0 0.0
    %3489 = vmatpush1.msra.mxu0 0.0
    %3490 = vmatprep.subr.mxu0 0.0
    %3491 = vmatpush1.msra.mxu0 0.0
    %3492 = vmatprep.subr.mxu0 0.0
    %3493 = vmatpush1.msra.mxu0 0.0
    %3494 = vmatprep.subr.mxu0 0.0
    %3495 = vmatpush1.msra.mxu0 0.0
    %3496 = vmatprep.subr.mxu0 0.0
    %3497 = vmatpush1.msra.mxu0 0.0
    %3498 = vmatprep.subr.mxu0 0.0
    %3499 = vmatpush1.msra.mxu0 0.0
    %3500 = vmatprep.subr.mxu0 0.0
    %3501 = vmatpush1.msra.mxu0 0.0
    %3502 = vmatprep.subr.mxu0 0.0
    %3503 = vmatpush1.msra.mxu0 0.0
    %3504 = vmatprep.subr.mxu0 0.0
    %3505 = vmatpush1.msra.mxu0 0.0
    %3506 = vmatprep.subr.mxu0 0.0
    %3507 = vmatpush1.msra.mxu0 0.0
    %3508 = vmatprep.subr.mxu0 0.0
    %3509 = vmatpush1.msra.mxu0 0.0
    %3510 = vmatprep.subr.mxu0 0.0
    %3511 = vmatpush1.msra.mxu0 0.0
    %3512 = vmatprep.subr.mxu0 0.0
    %3513 = vmatpush1.msra.mxu0 0.0
    %3514 = vmatprep.subr.mxu0 0.0
    %3515 = vmatpush1.msra.mxu0 0.0
    %3516 = vmatprep.subr.mxu0 0.0
    %3517 = vmatpush1.msra.mxu0 0.0
    %3518 = vmatprep.subr.mxu0 0.0
    %3519 = vmatpush1.msra.mxu0 0.0
    %3520 = vmatprep.subr.mxu0 0.0
    %3521 = vmatpush1.msra.mxu0 0.0
    %3522 = vmatprep.subr.mxu0 0.0
    %3523 = vmatpush1.msra.mxu0 0.0
    %3524 = vmatprep.subr.mxu0 0.0
    %3525 = vmatpush1.msra.mxu0 0.0
    %3526 = vmatprep.subr.mxu0 0.0
    %3527 = vmatpush1.msra.mxu0 0.0
    %3528 = vmatprep.subr.mxu0 0.0
    %3529 = vmatpush1.msra.mxu0 0.0
    %3530 = vmatprep.mubr.f32.mxu0 0.0
    %3531 = vmatmul.mubr.f32.gmra.mrb[0].mxu0 %v3461
    %v3532 = vpop.f32.mrb[0].mxu0
    %v3533 = vadd.f32 %v3459, %v3532
    %v3534 = vpop.f32.mrb[0].mxu0
    %3535 = vmatprep.mubr.f32.mxu0 0.0
    %3536 = vmatmul.mubr.f32.gmra.mrb[0].mxu0 %v3464
    %v3537 = vpop.f32.mrb[0].mxu0
    %v3538 = vadd.f32 %v3459, %v3537
    %v3539 = vpop.f32.mrb[0].mxu0
    %3540 = vdwg.mxu0
    %v3541 = vadd.f32 %v2975, %v3533
    %v3542 = vadd.f32 %v2976, %v3538
    %v3543 = vld [vmem:[%s5 + $0x1c] sm:$0x1]
    %v3544 = vld [vmem:[%s5 + $0x1d] sm:$0x1]
    %v3545 = vsel %vm200, %v3541, 0.0
    %3546 = vadd.xlane.f32.xlu0 %v3545
    %v3547 = vpop.xlane.xlu0 %3546
    %v3548 = vsel %vm200, %v3542, 0.0
    %3549 = vadd.xlane.f32.xlu0 %v3548
    %v3550 = vpop.xlane.xlu0 %3549
    %v3551 = vmul.f32 %v3547, %v1335
    %v3552 = vmul.f32 %v3550, %v1335
    %v3553 = vsub.f32 %v3541, %v3551
    %v3554 = vsub.f32 %v3542, %v3552
    %v3555 = vmul.f32 %v3553, %v3553
    %v3556 = vmul.f32 %v3554, %v3554
    %v3557 = vsel %vm200, %v3555, 0.0
    %3558 = vadd.xlane.f32.xlu0 %v3557
    %v3559 = vpop.xlane.xlu0 %3558
    %v3560 = vsel %vm200, %v3556, 0.0
    %3561 = vadd.xlane.f32.xlu0 %v3560
    %v3562 = vpop.xlane.xlu0 %3561
    %v3563 = vmul.f32 %v3559, %v1335
    %v3564 = vmul.f32 %v3562, %v1335
    %v3565 = vadd.f32 %v3563, 1e-05
    %v3566 = vadd.f32 %v3564, 1e-05
    %v3567 = vrsqrt.pop %v3565
    %v3568 = vrsqrt.pop %v3566
    %v3569 = vmul.f32 %v3553, %v3567
    %v3570 = vmul.f32 %v3554, %v3568
    %v3571 = vlaneseq
    %v3572 = vshrl.u32 %v3571, 7
    %v3573 = vsub.s32 0, %v3572
    %v3574 = vrot.slane %v3543, %v3573
    %v3575 = vmul.f32 %v3569, %v3574
    %v3576 = vmul.f32 %v3570, %v3574
    %v3577 = vlaneseq
    %v3578 = vshrl.u32 %v3577, 7
    %v3579 = vsub.s32 0, %v3578
    %v3580 = vrot.slane %v3544, %v3579
    %v3581 = vadd.f32 %v3575, %v3580
    %v3582 = vadd.f32 %v3576, %v3580
    %v3583 = vld [vmem:[%s4 + $0x260] sm:$0xff]
    %v3584 = vld [vmem:[%s4 + $0x268] sm:$0xff]
    %v3585 = vld [vmem:[%s4 + $0x270] sm:$0xff]
    %v3586 = vld [vmem:[%s4 + $0x278] sm:$0xff]
    %v3587 = vld [vmem:[%s5 + $0x18] sm:$0x1]
    %v3588 = vlaneseq
    %v3589 = vshrl.u32 %v3588, 7
    %v3590 = vsub.s32 0, %v3589
    %v3591 = vrot.slane %v3587, %v3590
    %v3593 = vsel %vm200, %v3581, 0
    %v3596 = vsel %vm200, %v3582, 0
    %3598 = vmatprep.subr.mxu0 0.0
    %3599 = vmatpush1.msra.mxu0 %v3583
    %3600 = vmatprep.subr.mxu0 0.0
    %3601 = vmatpush1.msra.mxu0 %v3584
    %3602 = vmatprep.subr.mxu0 0.0
    %3603 = vmatpush1.msra.mxu0 %v3585
    %3604 = vmatprep.subr.mxu0 0.0
    %3605 = vmatpush1.msra.mxu0 %v3586
    %3606 = vmatprep.subr.mxu0 0.0
    %3607 = vmatpush1.msra.mxu0 0.0
    %3608 = vmatprep.subr.mxu0 0.0
    %3609 = vmatpush1.msra.mxu0 0.0
    %3610 = vmatprep.subr.mxu0 0.0
    %3611 = vmatpush1.msra.mxu0 0.0
    %3612 = vmatprep.subr.mxu0 0.0
    %3613 = vmatpush1.msra.mxu0 0.0
    %3614 = vmatprep.subr.mxu0 0.0
    %3615 = vmatpush1.msra.mxu0 0.0
    %3616 = vmatprep.subr.mxu0 0.0
    %3617 = vmatpush1.msra.mxu0 0.0
    %3618 = vmatprep.subr.mxu0 0.0
    %3619 = vmatpush1.msra.mxu0 0.0
    %3620 = vmatprep.subr.mxu0 0.0
    %3621 = vmatpush1.msra.mxu0 0.0
    %3622 = vmatprep.subr.mxu0 0.0
    %3623 = vmatpush1.msra.mxu0 0.0
    %3624 = vmatprep.subr.mxu0 0.0
    %3625 = vmatpush1.msra.mxu0 0.0
    %3626 = vmatprep.subr.mxu0 0.0
    %3627 = vmatpush1.msra.mxu0 0.0
    %3628 = vmatprep.subr.mxu0 0.0
    %3629 = vmatpush1.msra.mxu0 0.0
    %3630 = vmatprep.subr.mxu0 0.0
    %3631 = vmatpush1.msra.mxu0 0.0
    %3632 = vmatprep.subr.mxu0 0.0
    %3633 = vmatpush1.msra.mxu0 0.0
    %3634 = vmatprep.subr.mxu0 0.0
    %3635 = vmatpush1.msra.mxu0 0.0
    %3636 = vmatprep.subr.mxu0 0.0
    %3637 = vmatpush1.msra.mxu0 0.0
    %3638 = vmatprep.subr.mxu0 0.0
    %3639 = vmatpush1.msra.mxu0 0.0
    %3640 = vmatprep.subr.mxu0 0.0
    %3641 = vmatpush1.msra.mxu0 0.0
    %3642 = vmatprep.subr.mxu0 0.0
    %3643 = vmatpush1.msra.mxu0 0.0
    %3644 = vmatprep.subr.mxu0 0.0
    %3645 = vmatpush1.msra.mxu0 0.0
    %3646 = vmatprep.subr.mxu0 0.0
    %3647 = vmatpush1.msra.mxu0 0.0
    %3648 = vmatprep.subr.mxu0 0.0
    %3649 = vmatpush1.msra.mxu0 0.0
    %3650 = vmatprep.subr.mxu0 0.0
    %3651 = vmatpush1.msra.mxu0 0.0
    %3652 = vmatprep.subr.mxu0 0.0
    %3653 = vmatpush1.msra.mxu0 0.0
    %3654 = vmatprep.subr.mxu0 0.0
    %3655 = vmatpush1.msra.mxu0 0.0
    %3656 = vmatprep.subr.mxu0 0.0
    %3657 = vmatpush1.msra.mxu0 0.0
    %3658 = vmatprep.subr.mxu0 0.0
    %3659 = vmatpush1.msra.mxu0 0.0
    %3660 = vmatprep.subr.mxu0 0.0
    %3661 = vmatpush1.msra.mxu0 0.0
    %3662 = vmatprep.mubr.f32.mxu0 0.0
    %3663 = vmatmul.mubr.f32.gmra.mrb[0].mxu0 %v3593
    %v3664 = vpop.f32.mrb[0].mxu0
    %v3665 = vadd.f32 %v3591, %v3664
    %v3666 = vpop.f32.mrb[0].mxu0
    %3667 = vmatprep.mubr.f32.mxu0 0.0
    %3668 = vmatmul.mubr.f32.gmra.mrb[0].mxu0 %v3596
    %v3669 = vpop.f32.mrb[0].mxu0
    %v3670 = vadd.f32 %v3591, %v3669
    %v3671 = vpop.f32.mrb[0].mxu0
    %3672 = vdwg.mxu0
    %v3673 = vmax.f32 %v3665, 0.0
    %v3674 = vmax.f32 %v3670, 0.0
    %v3675 = vld [vmem:[%s4 + $0x280] sm:$0xff]
    %v3676 = vld [vmem:[%s4 + $0x288] sm:$0xff]
    %v3677 = vld [vmem:[%s4 + $0x290] sm:$0xff]
    %v3678 = vld [vmem:[%s4 + $0x298] sm:$0xff]
    %v3679 = vld [vmem:[%s4 + $0x2a0] sm:$0xff]
    %v3680 = vld [vmem:[%s4 + $0x2a8] sm:$0xff]
    %v3681 = vld [vmem:[%s4 + $0x2b0] sm:$0xff]
    %v3682 = vld [vmem:[%s4 + $0x2b8] sm:$0xff]
    %v3683 = vld [vmem:[%s5 + $0x19] sm:$0x1]
    %v3684 = vlaneseq
    %v3685 = vshrl.u32 %v3684, 7
    %v3686 = vsub.s32 0, %v3685
    %v3687 = vrot.slane %v3683, %v3686
    %v3689 = vsel %vm2079, %v3673, 0
    %v3692 = vsel %vm2079, %v3674, 0
    %3694 = vmatprep.subr.mxu0 0.0
    %3695 = vmatpush1.msra.mxu0 %v3675
    %3696 = vmatprep.subr.mxu0 0.0
    %3697 = vmatpush1.msra.mxu0 %v3676
    %3698 = vmatprep.subr.mxu0 0.0
    %3699 = vmatpush1.msra.mxu0 %v3677
    %3700 = vmatprep.subr.mxu0 0.0
    %3701 = vmatpush1.msra.mxu0 %v3678
    %3702 = vmatprep.subr.mxu0 0.0
    %3703 = vmatpush1.msra.mxu0 %v3679
    %3704 = vmatprep.subr.mxu0 0.0
    %3705 = vmatpush1.msra.mxu0 %v3680
    %3706 = vmatprep.subr.mxu0 0.0
    %3707 = vmatpush1.msra.mxu0 %v3681
    %3708 = vmatprep.subr.mxu0 0.0
    %3709 = vmatpush1.msra.mxu0 %v3682
    %3710 = vmatprep.subr.mxu0 0.0
    %3711 = vmatpush1.msra.mxu0 0.0
    %3712 = vmatprep.subr.mxu0 0.0
    %3713 = vmatpush1.msra.mxu0 0.0
    %3714 = vmatprep.subr.mxu0 0.0
    %3715 = vmatpush1.msra.mxu0 0.0
    %3716 = vmatprep.subr.mxu0 0.0
    %3717 = vmatpush1.msra.mxu0 0.0
    %3718 = vmatprep.subr.mxu0 0.0
    %3719 = vmatpush1.msra.mxu0 0.0
    %3720 = vmatprep.subr.mxu0 0.0
    %3721 = vmatpush1.msra.mxu0 0.0
    %3722 = vmatprep.subr.mxu0 0.0
    %3723 = vmatpush1.msra.mxu0 0.0
    %3724 = vmatprep.subr.mxu0 0.0
    %3725 = vmatpush1.msra.mxu0 0.0
    %3726 = vmatprep.subr.mxu0 0.0
    %3727 = vmatpush1.msra.mxu0 0.0
    %3728 = vmatprep.subr.mxu0 0.0
    %3729 = vmatpush1.msra.mxu0 0.0
    %3730 = vmatprep.subr.mxu0 0.0
    %3731 = vmatpush1.msra.mxu0 0.0
    %3732 = vmatprep.subr.mxu0 0.0
    %3733 = vmatpush1.msra.mxu0 0.0
    %3734 = vmatprep.subr.mxu0 0.0
    %3735 = vmatpush1.msra.mxu0 0.0
    %3736 = vmatprep.subr.mxu0 0.0
    %3737 = vmatpush1.msra.mxu0 0.0
    %3738 = vmatprep.subr.mxu0 0.0
    %3739 = vmatpush1.msra.mxu0 0.0
    %3740 = vmatprep.subr.mxu0 0.0
    %3741 = vmatpush1.msra.mxu0 0.0
    %3742 = vmatprep.subr.mxu0 0.0
    %3743 = vmatpush1.msra.mxu0 0.0
    %3744 = vmatprep.subr.mxu0 0.0
    %3745 = vmatpush1.msra.mxu0 0.0
    %3746 = vmatprep.subr.mxu0 0.0
    %3747 = vmatpush1.msra.mxu0 0.0
    %3748 = vmatprep.subr.mxu0 0.0
    %3749 = vmatpush1.msra.mxu0 0.0
    %3750 = vmatprep.subr.mxu0 0.0
    %3751 = vmatpush1.msra.mxu0 0.0
    %3752 = vmatprep.subr.mxu0 0.0
    %3753 = vmatpush1.msra.mxu0 0.0
    %3754 = vmatprep.subr.mxu0 0.0
    %3755 = vmatpush1.msra.mxu0 0.0
    %3756 = vmatprep.subr.mxu0 0.0
    %3757 = vmatpush1.msra.mxu0 0.0
    %3758 = vmatprep.mubr.f32.mxu0 0.0
    %3759 = vmatmul.mubr.f32.gmra.mrb[0].mxu0 %v3689
    %v3760 = vpop.f32.mrb[0].mxu0
    %v3761 = vadd.f32 %v3687, %v3760
    %v3762 = vpop.f32.mrb[0].mxu0
    %3763 = vmatprep.mubr.f32.mxu0 0.0
    %3764 = vmatmul.mubr.f32.gmra.mrb[0].mxu0 %v3692
    %v3765 = vpop.f32.mrb[0].mxu0
    %v3766 = vadd.f32 %v3687, %v3765
    %v3767 = vpop.f32.mrb[0].mxu0
    %3768 = vdwg.mxu0
    %v3769 = vadd.f32 %v3581, %v3761
    %v3770 = vadd.f32 %v3582, %v3766
    %v3771 = vld [vmem:[%s5 + $0x1e] sm:$0x1]
    %v3772 = vld [vmem:[%s5 + $0x1f] sm:$0x1]
    %v3773 = vsel %vm200, %v3769, 0.0
    %3774 = vadd.xlane.f32.xlu0 %v3773
    %v3775 = vpop.xlane.xlu0 %3774
    %v3776 = vsel %vm200, %v3770, 0.0
    %3777 = vadd.xlane.f32.xlu0 %v3776
    %v3778 = vpop.xlane.xlu0 %3777
    %v3779 = vmul.f32 %v3775, %v1335
    %v3780 = vmul.f32 %v3778, %v1335
    %v3781 = vsub.f32 %v3769, %v3779
    %v3782 = vsub.f32 %v3770, %v3780
    %v3783 = vmul.f32 %v3781, %v3781
    %v3784 = vmul.f32 %v3782, %v3782
    %v3785 = vsel %vm200, %v3783, 0.0
    %3786 = vadd.xlane.f32.xlu0 %v3785
    %v3787 = vpop.xlane.xlu0 %3786
    %v3788 = vsel %vm200, %v3784, 0.0
    %3789 = vadd.xlane.f32.xlu0 %v3788
    %v3790 = vpop.xlane.xlu0 %3789
    %v3791 = vmul.f32 %v3787, %v1335
    %v3792 = vmul.f32 %v3790, %v1335
    %v3793 = vadd.f32 %v3791, 1e-05
    %v3794 = vadd.f32 %v3792, 1e-05
    %v3795 = vrsqrt.pop %v3793
    %v3796 = vrsqrt.pop %v3794
    %v3797 = vmul.f32 %v3781, %v3795
    %v3798 = vmul.f32 %v3782, %v3796
    %v3799 = vlaneseq
    %v3800 = vshrl.u32 %v3799, 7
    %v3801 = vsub.s32 0, %v3800
    %v3802 = vrot.slane %v3771, %v3801
    %v3803 = vmul.f32 %v3797, %v3802
    %v3804 = vmul.f32 %v3798, %v3802
    %v3805 = vlaneseq
    %v3806 = vshrl.u32 %v3805, 7
    %v3807 = vsub.s32 0, %v3806
    %v3808 = vrot.slane %v3772, %v3807
    %v3809 = vadd.f32 %v3803, %v3808
    %v3810 = vadd.f32 %v3804, %v3808
    %v3811 = vld [vmem:[%s5 + $0x20] sm:$0x1]
    %v3812 = vld [vmem:[%s5 + $0x21] sm:$0x1]
    %v3813 = vsel %vm200, %v3809, 0.0
    %3814 = vadd.xlane.f32.xlu0 %v3813
    %v3815 = vpop.xlane.xlu0 %3814
    %v3816 = vsel %vm200, %v3810, 0.0
    %3817 = vadd.xlane.f32.xlu0 %v3816
    %v3818 = vpop.xlane.xlu0 %3817
    %v3819 = vmul.f32 %v3815, %v1335
    %v3820 = vmul.f32 %v3818, %v1335
    %v3821 = vsub.f32 %v3809, %v3819
    %v3822 = vsub.f32 %v3810, %v3820
    %v3823 = vmul.f32 %v3821, %v3821
    %v3824 = vmul.f32 %v3822, %v3822
    %v3825 = vsel %vm200, %v3823, 0.0
    %3826 = vadd.xlane.f32.xlu0 %v3825
    %v3827 = vpop.xlane.xlu0 %3826
    %v3828 = vsel %vm200, %v3824, 0.0
    %3829 = vadd.xlane.f32.xlu0 %v3828
    %v3830 = vpop.xlane.xlu0 %3829
    %v3831 = vmul.f32 %v3827, %v1335
    %v3832 = vmul.f32 %v3830, %v1335
    %v3833 = vadd.f32 %v3831, 1e-05
    %v3834 = vadd.f32 %v3832, 1e-05
    %v3835 = vrsqrt.pop %v3833
    %v3836 = vrsqrt.pop %v3834
    %v3837 = vmul.f32 %v3821, %v3835
    %v3838 = vmul.f32 %v3822, %v3836
    %v3839 = vlaneseq
    %v3840 = vshrl.u32 %v3839, 7
    %v3841 = vsub.s32 0, %v3840
    %v3842 = vrot.slane %v3811, %v3841
    %v3843 = vmul.f32 %v3837, %v3842
    %v3844 = vmul.f32 %v3838, %v3842
    %v3845 = vlaneseq
    %v3846 = vshrl.u32 %v3845, 7
    %v3847 = vsub.s32 0, %v3846
    %v3848 = vrot.slane %v3812, %v3847
    %v3849 = vadd.f32 %v3843, %v3848
    %v3850 = vadd.f32 %v3844, %v3848
    %3851 = vst.msk [vmem:[#allocation2] sm:$0xff] %vm200, %v3849
    %3852 = vst.msk [vmem:[#allocation2 + $0x8] sm:$0xff] %vm200, %v3850
    // Predicated region
    $region26: #{transformer_decoder.1} parent=1 // pred_check
      _
    $region27: #{transformer_decoder.1} parent=1 // pred_check_branch
      %3854 = sbr.rel (0) target = $region29
    $region28: #{transformer_decoder.1} parent=1 // pred_region
      %s3856 = ssub.s32 256, 256
      %3857 = vsyncadd [#allocation3], %s3856
      %s3858 = sshll.u32 [#allocation2], 4
      %s3859 = int_to_ptr.vmem [resolvable:$true] %s3858
      %3864 = dma.vmem_to_hbm [thread:$0]  %s3859, 256, %s6, [#allocation3], 128, 128, 8
    $region29: #{transformer_decoder.1} parent=1 // pred_fallthru
      _
    // Predicated region
    $region30: #{transformer_decoder.1} parent=1 // pred_check
      _
    $region31: #{transformer_decoder.1} parent=1 // pred_check_branch
      %3866 = sbr.rel (0) target = $region33
    $region32: #{transformer_decoder.1} parent=1 // pred_region
      %3867 = dma.done [#allocation3], 256
    $region33: #{transformer_decoder.1} parent=1 // pred_fallthru
      _
    %3868 = vsyncpa [#allocation3], 1

</llo_original>
